<compile_context>
chip_gen: v7x
topology: tpu7x:2x2x1
jax: 0.10.0
libtpu: 0.0.40
codegen_flags: <defaults>
</compile_context>

<pallas_src>
import math

import jax
import jax.numpy as jnp
from jax.experimental import pallas as pl
from jax.experimental.pallas import tpu as pltpu


def _round_up(v: int, m: int) -> int:
    return ((v + m - 1) // m) * m


# ----------------------------------------------------------------------------
# Kernel 1: nearest-neighbour upsample (scale s) in NHWC layout.
# ----------------------------------------------------------------------------
def _make_upsample_kernel(tr, s, w, c):
    def kernel(x_ref, o_ref):
        # x_ref: (tr, 1, w, 1, c)   o_ref: (tr, s, w, s, c)
        o_ref[...] = jnp.broadcast_to(x_ref[...], (tr, s, w, s, c))

    return kernel


def nearest_upsample_nhwc(x_nhwc, scale):
    n, h, w, c = x_nhwc.shape
    s = int(scale)
    if s == 1:
        return x_nhwc
    nh = n * h
    x5 = x_nhwc.reshape(nh, 1, w, 1, c)  # free contiguous view

    # Row-block size: as large as a modest VMEM budget allows (in + out,
    # double-buffered); keep well under the v7x 32 MiB scoped default.
    bytes_per_row = w * c * 4 * (1 + s * s) * 2
    tr = max(1, min(nh, (8 * 1024 * 1024) // max(1, bytes_per_row)))
    if tr >= 8:
        tr = (tr // 8) * 8

    out5 = pl.pallas_call(
        _make_upsample_kernel(tr, s, w, c),
        out_shape=jax.ShapeDtypeStruct((nh, s, w, s, c), x_nhwc.dtype),
        grid=(pl.cdiv(nh, tr),),
        in_specs=[pl.BlockSpec((tr, 1, w, 1, c), lambda i: (i, 0, 0, 0, 0))],
        out_specs=pl.BlockSpec((tr, s, w, s, c), lambda i: (i, 0, 0, 0, 0)),
        compiler_params=pltpu.CompilerParams(dimension_semantics=("parallel",)),
    )(x5)
    return out5.reshape(n, h * s, w * s, c)


# ----------------------------------------------------------------------------
# Kernel 2: KxK shape-preserving conv (padding = (K-1)/2) in NHWC layout.
# Implemented as K*K shifted matmuls on the flattened, zero-padded image.
# ----------------------------------------------------------------------------
def _make_conv_kernel(k, padding, hu, wu, cin, cout, pad_rows):
    hw = hu * wu

    def kernel(y_ref, w_ref, b_ref, m_ref, o_ref, ypad_ref):
        # y_ref: (1, hw, cin)   w_ref: (k, k, cin, cout)   b_ref: (1, cout)
        # m_ref: (hw, k)        o_ref: (1, hw, cout)
        # ypad_ref: VMEM scratch (hw + 2*pad_rows, cin)
        zeros_band = jnp.zeros((pad_rows, cin), ypad_ref.dtype)
        ypad_ref[0:pad_rows, :] = zeros_band                     # top zero pad
        ypad_ref[pad_rows + hw:pad_rows + hw + pad_rows, :] = zeros_band
        ypad_ref[pad_rows:pad_rows + hw, :] = y_ref[0]           # interior

        masks = m_ref[...]                                       # (hw, k)
        acc = jnp.broadcast_to(b_ref[...], (hw, cout)).astype(jnp.float32)
        for ky in range(k):
            for kx in range(k):
                shift = (ky - padding) * wu + (kx - padding)
                start = pad_rows + shift
                slab = ypad_ref[start:start + hw, :]             # (hw, cin)
                t = jnp.dot(slab, w_ref[ky, kx],
                            preferred_element_type=jnp.float32)  # MXU
                if kx != padding:                                # edge-column mask
                    t = t * masks[:, kx:kx + 1]
                acc = acc + t
        o_ref[0] = acc.astype(o_ref.dtype)

    return kernel


def conv_same_nhwc(y_nhwc, w, b, padding):
    n, hu, wu, cin = y_nhwc.shape
    k = w.shape[0]
    cout = w.shape[-1]
    assert w.shape == (k, k, cin, cout)
    assert 2 * padding == k - 1, "only shape-preserving convs supported"
    hw = hu * wu
    y2 = y_nhwc.reshape(n, hw, cin)

    # Per-tap column-validity mask (left/right zero padding of the flattened
    # image) — tiny (hw, k) array built once outside the kernel.
    col = jnp.arange(hw, dtype=jnp.int32) % wu
    kxs = jnp.arange(k, dtype=jnp.int32)
    src = col[:, None] + kxs[None, :] - padding
    mask = ((src >= 0) & (src < wu)).astype(y_nhwc.dtype)        # (hw, k)

    pad_rows = _round_up(max(padding, k - 1 - padding) * (wu + 1), 8)
    b2 = b.reshape(1, cout).astype(y_nhwc.dtype)

    # TODO(synk): for large images, row-tile this kernel (with a halo) and fuse
    # the upsample into it to skip the intermediate HBM round trip.
    out2 = pl.pallas_call(
        _make_conv_kernel(k, padding, hu, wu, cin, cout, pad_rows),
        out_shape=jax.ShapeDtypeStruct((n, hw, cout), y_nhwc.dtype),
        grid=(n,),
        in_specs=[
            pl.BlockSpec((1, hw, cin), lambda i: (i, 0, 0)),
            pl.BlockSpec((k, k, cin, cout), lambda i: (0, 0, 0, 0)),
            pl.BlockSpec((1, cout), lambda i: (0, 0)),
            pl.BlockSpec((hw, k), lambda i: (0, 0)),
        ],
        out_specs=pl.BlockSpec((1, hw, cout), lambda i: (i, 0, 0)),
        scratch_shapes=[pltpu.VMEM((hw + 2 * pad_rows, cin), y_nhwc.dtype)],
        compiler_params=pltpu.CompilerParams(dimension_semantics=("parallel",)),
    )(y2, w, b2, mask)
    return out2.reshape(n, hu, wu, cout)


# ----------------------------------------------------------------------------
# Module wrapper
# ----------------------------------------------------------------------------
class Upsample:
    """JAX/Pallas port of the PyTorch `Upsample` module (dims == 2 path)."""

    def __init__(self, channels, use_conv, dims=2, out_channels=None, padding=1,
                 third_up=False, kernel_size=3, scale_factor=2, *, key=None,
                 dtype=jnp.float32):
        if dims != 2:
            # TODO(synk): dims==1 (Conv1d) and dims==3 (Conv3d / third_up) paths
            # are not implemented; only the 2-D spatial path is.
            raise NotImplementedError("Only dims == 2 is implemented in Pallas.")
        self.channels = channels
        self.out_channels = out_channels or channels
        self.use_conv = use_conv
        self.dims = dims
        self.third_up = third_up
        self.scale_factor = int(scale_factor)
        self.padding = padding
        self.kernel_size = kernel_size
        if use_conv:
            assert 2 * padding == kernel_size - 1, \
                "Pallas conv path only supports shape-preserving convs"
            key = jax.random.PRNGKey(0) if key is None else key
            kw, kb = jax.random.split(key)
            fan_in = channels * kernel_size * kernel_size
            bound = 1.0 / math.sqrt(fan_in)
            # stored as (K, K, Cin, Cout)  (torch layout (Cout, Cin, K, K) transposed)
            self.w = jax.random.uniform(
                kw, (kernel_size, kernel_size, channels, self.out_channels),
                minval=-bound, maxval=bound, dtype=dtype)
            self.b = jax.random.uniform(
                kb, (self.out_channels,), minval=-bound, maxval=bound, dtype=dtype)
        else:
            self.w = None
            self.b = None

    def __call__(self, x):
        assert x.shape[1] == self.channels
        # NCHW -> NHWC layout glue (channels onto the lane axis for the kernels)
        x_nhwc = jnp.transpose(x, (0, 2, 3, 1))
        y_nhwc = nearest_upsample_nhwc(x_nhwc, self.scale_factor)
        if self.use_conv:
            y_nhwc = conv_same_nhwc(y_nhwc, self.w, self.b, self.padding)
        return jnp.transpose(y_nhwc, (0, 3, 1, 2))


# ----------------------------------------------------------------------------
# Reference (plain JAX / XLA) and self-test
# ----------------------------------------------------------------------------
def _reference_upsample(x, w_hwio, b, use_conv, scale, padding):
    y = jnp.repeat(jnp.repeat(x, scale, axis=2), scale, axis=3)  # nearest, NCHW
    if use_conv:
        w_oihw = jnp.transpose(w_hwio, (3, 2, 0, 1))
        y = jax.lax.conv_general_dilated(
            y, w_oihw, window_strides=(1, 1),
            padding=((padding, padding), (padding, padding)),
            dimension_numbers=("NCHW", "OIHW", "NCHW"),
            precision=jax.lax.Precision.HIGHEST)
        y = y + b[None, :, None, None]
    return y


if __name__ == "__main__":
    key = jax.random.PRNGKey(0)
    kx, kp = jax.random.split(key)

    N, C, H, W = 2, 8, 16, 16
    x = jax.random.normal(kx, (N, C, H, W), dtype=jnp.float32)

    # use_conv=True (the common configuration in the video model)
    up_conv = Upsample(channels=C, use_conv=True, dims=2, out_channels=C, key=kp)
    out = jax.block_until_ready(up_conv(x))
    ref = _reference_upsample(x, up_conv.w, up_conv.b, True,
                              up_conv.scale_factor, up_conv.padding)
    assert out.shape == (N, C, 2 * H, 2 * W), out.shape
    assert jnp.allclose(out, ref, atol=1e-2, rtol=1e-2), (
        "conv path mismatch, max err "
        f"{float(jnp.max(jnp.abs(out - ref)))}")

    # use_conv=False (pure nearest upsample)
    up_plain = Upsample(channels=C, use_conv=False)
    out2 = jax.block_until_ready(up_plain(x))
    ref2 = _reference_upsample(x, None, None, False, 2, 1)
    assert out2.shape == (N, C, 2 * H, 2 * W)
    assert jnp.allclose(out2, ref2), "nearest-upsample path mismatch"

    print("KERNEL_OK")
</pallas_src>

<mosaic_0001>
module attributes {stable_mosaic.version = 11 : i64} {
  func.func @kernel(%arg0: i32, %arg1: memref<32x1x16x1x8xf32, #tpu.memory_space<vmem>>, %arg2: memref<32x2x16x2x8xf32, #tpu.memory_space<vmem>>) attributes {dimension_semantics = [#tpu.dimension_semantics<parallel>], iteration_bounds = array<i64: 1>, scalar_prefetch = 0 : i64, scratch_operands = 0 : i64, tpu.core_type = #tpu.core_type<tc>, window_params = [{transform_indices = @transform_0, window_bounds = array<i64: 32, 1, 16, 1, 8>}, {transform_indices = @transform_1, window_bounds = array<i64: 32, 2, 16, 2, 8>}]} {
    %c0 = arith.constant 0 : index
    %c0_0 = arith.constant 0 : index
    %c0_1 = arith.constant 0 : index
    %c0_2 = arith.constant 0 : index
    %c0_3 = arith.constant 0 : index
    %0 = vector.load %arg1[%c0, %c0_0, %c0_1, %c0_2, %c0_3] : memref<32x1x16x1x8xf32, #tpu.memory_space<vmem>>, vector<32x1x16x1x8xf32>
    %1 = vector.shape_cast %0 : vector<32x1x16x1x8xf32> to vector<32x1x16x1x8xf32>
    %2 = vector.broadcast %1 : vector<32x1x16x1x8xf32> to vector<32x2x16x2x8xf32>
    %c0_4 = arith.constant 0 : index
    %c0_5 = arith.constant 0 : index
    %c0_6 = arith.constant 0 : index
    %c0_7 = arith.constant 0 : index
    %c0_8 = arith.constant 0 : index
    %3 = vector.load %arg2[%c0_4, %c0_5, %c0_6, %c0_7, %c0_8] : memref<32x2x16x2x8xf32, #tpu.memory_space<vmem>>, vector<32x2x16x2x8xf32>
    tpu.vector_store %arg2[%c0_4, %c0_5, %c0_6, %c0_7, %c0_8], %2 {strides = array<i32>} : memref<32x2x16x2x8xf32, #tpu.memory_space<vmem>>, vector<32x2x16x2x8xf32>,
    return
  }
  func.func @transform_0(%arg0: i32) -> (i32, i32, i32, i32, i32) {
    %c0_i32 = arith.constant 0 : i32
    %c0_i32_0 = arith.constant 0 : i32
    %c0_i32_1 = arith.constant 0 : i32
    %c0_i32_2 = arith.constant 0 : i32
    %c0_i32_3 = arith.constant 0 : i32
    return %arg0, %c0_i32, %c0_i32_0, %c0_i32_1, %c0_i32_2 : i32, i32, i32, i32, i32
  }
  func.func @transform_1(%arg0: i32) -> (i32, i32, i32, i32, i32) {
    %c0_i32 = arith.constant 0 : i32
    %c0_i32_0 = arith.constant 0 : i32
    %c0_i32_1 = arith.constant 0 : i32
    %c0_i32_2 = arith.constant 0 : i32
    %c0_i32_3 = arith.constant 0 : i32
    return %arg0, %c0_i32, %c0_i32_0, %c0_i32_1, %c0_i32_2 : i32, i32, i32, i32, i32
  }
}

</mosaic_0001>

<llo_original>
// kernel: tpu_custom_call.1
$region0: #{tpu_custom_call.1}
  #allocation0 [shape = 'u32[]', space=smem, size = 0x4, offset = 0x4, fixed_abs, tag = 'smem constant byte address 0x4 - core index']
  #allocation1 [shape = 'u32[144,128]{1,0:T(1,128)}', space=vmem, size = 0x12000, scoped, tag = 'internal scratch']
  %s0 = inlined_call_operand.vmem [shape: f32[32,1,16,1,8], index: 0, kind: input, shape index: {}]
  %s1 = inlined_call_operand.vmem [shape: f32[32,2,16,2,8], index: 1, kind: output, shape index: {}]
  %s2 = sld [smem:[#allocation0]]
  $region14: #{tpu_custom_call.1} parent=0
    _
  %s4 = ssub.s32 1, %s2
  %s5 = scalar_select 0, %s4, %s2
  // Predicated region
  $region2: #{tpu_custom_call.1} parent=0 // pred_check
    _
  $region3: #{tpu_custom_call.1} parent=0 // pred_check_branch
    %7 = sbr.rel (0) target = $region5
  $region4: #{tpu_custom_call.1} parent=0 // pred_region
    _
  $region5: #{tpu_custom_call.1} parent=0 // pred_fallthru
    _
  %v8 = vld [vmem:[%s0] sm:$0x1]
  %v9 = vld [vmem:[%s0 + $0x1] sm:$0x1]
  %v10 = vld [vmem:[%s0 + $0x2] sm:$0x1]
  %v11 = vld [vmem:[%s0 + $0x3] sm:$0x1]
  %v12 = vld [vmem:[%s0 + $0x4] sm:$0x1]
  %v13 = vld [vmem:[%s0 + $0x5] sm:$0x1]
  %v14 = vld [vmem:[%s0 + $0x6] sm:$0x1]
  %v15 = vld [vmem:[%s0 + $0x7] sm:$0x1]
  %v16 = vld [vmem:[%s0 + $0x8] sm:$0x1]
  %v17 = vld [vmem:[%s0 + $0x9] sm:$0x1]
  %v18 = vld [vmem:[%s0 + $0xa] sm:$0x1]
  %v19 = vld [vmem:[%s0 + $0xb] sm:$0x1]
  %v20 = vld [vmem:[%s0 + $0xc] sm:$0x1]
  %v21 = vld [vmem:[%s0 + $0xd] sm:$0x1]
  %v22 = vld [vmem:[%s0 + $0xe] sm:$0x1]
  %v23 = vld [vmem:[%s0 + $0xf] sm:$0x1]
  %v24 = vld [vmem:[%s0 + $0x10] sm:$0x1]
  %v25 = vld [vmem:[%s0 + $0x11] sm:$0x1]
  %v26 = vld [vmem:[%s0 + $0x12] sm:$0x1]
  %v27 = vld [vmem:[%s0 + $0x13] sm:$0x1]
  %v28 = vld [vmem:[%s0 + $0x14] sm:$0x1]
  %v29 = vld [vmem:[%s0 + $0x15] sm:$0x1]
  %v30 = vld [vmem:[%s0 + $0x16] sm:$0x1]
  %v31 = vld [vmem:[%s0 + $0x17] sm:$0x1]
  %v32 = vld [vmem:[%s0 + $0x18] sm:$0x1]
  %v33 = vld [vmem:[%s0 + $0x19] sm:$0x1]
  %v34 = vld [vmem:[%s0 + $0x1a] sm:$0x1]
  %v35 = vld [vmem:[%s0 + $0x1b] sm:$0x1]
  %v36 = vld [vmem:[%s0 + $0x1c] sm:$0x1]
  %v37 = vld [vmem:[%s0 + $0x1d] sm:$0x1]
  %v38 = vld [vmem:[%s0 + $0x1e] sm:$0x1]
  %v39 = vld [vmem:[%s0 + $0x1f] sm:$0x1]
  %v40 = vld [vmem:[%s0 + $0x20] sm:$0x1]
  %v41 = vld [vmem:[%s0 + $0x21] sm:$0x1]
  %v42 = vld [vmem:[%s0 + $0x22] sm:$0x1]
  %v43 = vld [vmem:[%s0 + $0x23] sm:$0x1]
  %v44 = vld [vmem:[%s0 + $0x24] sm:$0x1]
  %v45 = vld [vmem:[%s0 + $0x25] sm:$0x1]
  %v46 = vld [vmem:[%s0 + $0x26] sm:$0x1]
  %v47 = vld [vmem:[%s0 + $0x27] sm:$0x1]
  %v48 = vld [vmem:[%s0 + $0x28] sm:$0x1]
  %v49 = vld [vmem:[%s0 + $0x29] sm:$0x1]
  %v50 = vld [vmem:[%s0 + $0x2a] sm:$0x1]
  %v51 = vld [vmem:[%s0 + $0x2b] sm:$0x1]
  %v52 = vld [vmem:[%s0 + $0x2c] sm:$0x1]
  %v53 = vld [vmem:[%s0 + $0x2d] sm:$0x1]
  %v54 = vld [vmem:[%s0 + $0x2e] sm:$0x1]
  %v55 = vld [vmem:[%s0 + $0x2f] sm:$0x1]
  %v56 = vld [vmem:[%s0 + $0x30] sm:$0x1]
  %v57 = vld [vmem:[%s0 + $0x31] sm:$0x1]
  %v58 = vld [vmem:[%s0 + $0x32] sm:$0x1]
  %v59 = vld [vmem:[%s0 + $0x33] sm:$0x1]
  %v60 = vld [vmem:[%s0 + $0x34] sm:$0x1]
  %v61 = vld [vmem:[%s0 + $0x35] sm:$0x1]
  %v62 = vld [vmem:[%s0 + $0x36] sm:$0x1]
  %v63 = vld [vmem:[%s0 + $0x37] sm:$0x1]
  %v64 = vld [vmem:[%s0 + $0x38] sm:$0x1]
  %v65 = vld [vmem:[%s0 + $0x39] sm:$0x1]
  %v66 = vld [vmem:[%s0 + $0x3a] sm:$0x1]
  %v67 = vld [vmem:[%s0 + $0x3b] sm:$0x1]
  %v68 = vld [vmem:[%s0 + $0x3c] sm:$0x1]
  %v69 = vld [vmem:[%s0 + $0x3d] sm:$0x1]
  %v70 = vld [vmem:[%s0 + $0x3e] sm:$0x1]
  %v71 = vld [vmem:[%s0 + $0x3f] sm:$0x1]
  %v72 = vld [vmem:[%s0 + $0x40] sm:$0x1]
  %v73 = vld [vmem:[%s0 + $0x41] sm:$0x1]
  %v74 = vld [vmem:[%s0 + $0x42] sm:$0x1]
  %v75 = vld [vmem:[%s0 + $0x43] sm:$0x1]
  %v76 = vld [vmem:[%s0 + $0x44] sm:$0x1]
  %v77 = vld [vmem:[%s0 + $0x45] sm:$0x1]
  %v78 = vld [vmem:[%s0 + $0x46] sm:$0x1]
  %v79 = vld [vmem:[%s0 + $0x47] sm:$0x1]
  %v80 = vld [vmem:[%s0 + $0x48] sm:$0x1]
  %v81 = vld [vmem:[%s0 + $0x49] sm:$0x1]
  %v82 = vld [vmem:[%s0 + $0x4a] sm:$0x1]
  %v83 = vld [vmem:[%s0 + $0x4b] sm:$0x1]
  %v84 = vld [vmem:[%s0 + $0x4c] sm:$0x1]
  %v85 = vld [vmem:[%s0 + $0x4d] sm:$0x1]
  %v86 = vld [vmem:[%s0 + $0x4e] sm:$0x1]
  %v87 = vld [vmem:[%s0 + $0x4f] sm:$0x1]
  %v88 = vld [vmem:[%s0 + $0x50] sm:$0x1]
  %v89 = vld [vmem:[%s0 + $0x51] sm:$0x1]
  %v90 = vld [vmem:[%s0 + $0x52] sm:$0x1]
  %v91 = vld [vmem:[%s0 + $0x53] sm:$0x1]
  %v92 = vld [vmem:[%s0 + $0x54] sm:$0x1]
  %v93 = vld [vmem:[%s0 + $0x55] sm:$0x1]
  %v94 = vld [vmem:[%s0 + $0x56] sm:$0x1]
  %v95 = vld [vmem:[%s0 + $0x57] sm:$0x1]
  %v96 = vld [vmem:[%s0 + $0x58] sm:$0x1]
  %v97 = vld [vmem:[%s0 + $0x59] sm:$0x1]
  %v98 = vld [vmem:[%s0 + $0x5a] sm:$0x1]
  %v99 = vld [vmem:[%s0 + $0x5b] sm:$0x1]
  %v100 = vld [vmem:[%s0 + $0x5c] sm:$0x1]
  %v101 = vld [vmem:[%s0 + $0x5d] sm:$0x1]
  %v102 = vld [vmem:[%s0 + $0x5e] sm:$0x1]
  %v103 = vld [vmem:[%s0 + $0x5f] sm:$0x1]
  %v104 = vld [vmem:[%s0 + $0x60] sm:$0x1]
  %v105 = vld [vmem:[%s0 + $0x61] sm:$0x1]
  %v106 = vld [vmem:[%s0 + $0x62] sm:$0x1]
  %v107 = vld [vmem:[%s0 + $0x63] sm:$0x1]
  %v108 = vld [vmem:[%s0 + $0x64] sm:$0x1]
  %v109 = vld [vmem:[%s0 + $0x65] sm:$0x1]
  %v110 = vld [vmem:[%s0 + $0x66] sm:$0x1]
  %v111 = vld [vmem:[%s0 + $0x67] sm:$0x1]
  %v112 = vld [vmem:[%s0 + $0x68] sm:$0x1]
  %v113 = vld [vmem:[%s0 + $0x69] sm:$0x1]
  %v114 = vld [vmem:[%s0 + $0x6a] sm:$0x1]
  %v115 = vld [vmem:[%s0 + $0x6b] sm:$0x1]
  %v116 = vld [vmem:[%s0 + $0x6c] sm:$0x1]
  %v117 = vld [vmem:[%s0 + $0x6d] sm:$0x1]
  %v118 = vld [vmem:[%s0 + $0x6e] sm:$0x1]
  %v119 = vld [vmem:[%s0 + $0x6f] sm:$0x1]
  %v120 = vld [vmem:[%s0 + $0x70] sm:$0x1]
  %v121 = vld [vmem:[%s0 + $0x71] sm:$0x1]
  %v122 = vld [vmem:[%s0 + $0x72] sm:$0x1]
  %v123 = vld [vmem:[%s0 + $0x73] sm:$0x1]
  %v124 = vld [vmem:[%s0 + $0x74] sm:$0x1]
  %v125 = vld [vmem:[%s0 + $0x75] sm:$0x1]
  %v126 = vld [vmem:[%s0 + $0x76] sm:$0x1]
  %v127 = vld [vmem:[%s0 + $0x77] sm:$0x1]
  %v128 = vld [vmem:[%s0 + $0x78] sm:$0x1]
  %v129 = vld [vmem:[%s0 + $0x79] sm:$0x1]
  %v130 = vld [vmem:[%s0 + $0x7a] sm:$0x1]
  %v131 = vld [vmem:[%s0 + $0x7b] sm:$0x1]
  %v132 = vld [vmem:[%s0 + $0x7c] sm:$0x1]
  %v133 = vld [vmem:[%s0 + $0x7d] sm:$0x1]
  %v134 = vld [vmem:[%s0 + $0x7e] sm:$0x1]
  %v135 = vld [vmem:[%s0 + $0x7f] sm:$0x1]
  %v136 = vld [vmem:[%s0 + $0x80] sm:$0x1]
  %v137 = vld [vmem:[%s0 + $0x81] sm:$0x1]
  %v138 = vld [vmem:[%s0 + $0x82] sm:$0x1]
  %v139 = vld [vmem:[%s0 + $0x83] sm:$0x1]
  %v140 = vld [vmem:[%s0 + $0x84] sm:$0x1]
  %v141 = vld [vmem:[%s0 + $0x85] sm:$0x1]
  %v142 = vld [vmem:[%s0 + $0x86] sm:$0x1]
  %v143 = vld [vmem:[%s0 + $0x87] sm:$0x1]
  %v144 = vld [vmem:[%s0 + $0x88] sm:$0x1]
  %v145 = vld [vmem:[%s0 + $0x89] sm:$0x1]
  %v146 = vld [vmem:[%s0 + $0x8a] sm:$0x1]
  %v147 = vld [vmem:[%s0 + $0x8b] sm:$0x1]
  %v148 = vld [vmem:[%s0 + $0x8c] sm:$0x1]
  %v149 = vld [vmem:[%s0 + $0x8d] sm:$0x1]
  %v150 = vld [vmem:[%s0 + $0x8e] sm:$0x1]
  %v151 = vld [vmem:[%s0 + $0x8f] sm:$0x1]
  %v152 = vld [vmem:[%s0 + $0x90] sm:$0x1]
  %v153 = vld [vmem:[%s0 + $0x91] sm:$0x1]
  %v154 = vld [vmem:[%s0 + $0x92] sm:$0x1]
  %v155 = vld [vmem:[%s0 + $0x93] sm:$0x1]
  %v156 = vld [vmem:[%s0 + $0x94] sm:$0x1]
  %v157 = vld [vmem:[%s0 + $0x95] sm:$0x1]
  %v158 = vld [vmem:[%s0 + $0x96] sm:$0x1]
  %v159 = vld [vmem:[%s0 + $0x97] sm:$0x1]
  %v160 = vld [vmem:[%s0 + $0x98] sm:$0x1]
  %v161 = vld [vmem:[%s0 + $0x99] sm:$0x1]
  %v162 = vld [vmem:[%s0 + $0x9a] sm:$0x1]
  %v163 = vld [vmem:[%s0 + $0x9b] sm:$0x1]
  %v164 = vld [vmem:[%s0 + $0x9c] sm:$0x1]
  %v165 = vld [vmem:[%s0 + $0x9d] sm:$0x1]
  %v166 = vld [vmem:[%s0 + $0x9e] sm:$0x1]
  %v167 = vld [vmem:[%s0 + $0x9f] sm:$0x1]
  %v168 = vld [vmem:[%s0 + $0xa0] sm:$0x1]
  %v169 = vld [vmem:[%s0 + $0xa1] sm:$0x1]
  %v170 = vld [vmem:[%s0 + $0xa2] sm:$0x1]
  %v171 = vld [vmem:[%s0 + $0xa3] sm:$0x1]
  %v172 = vld [vmem:[%s0 + $0xa4] sm:$0x1]
  %v173 = vld [vmem:[%s0 + $0xa5] sm:$0x1]
  %v174 = vld [vmem:[%s0 + $0xa6] sm:$0x1]
  %v175 = vld [vmem:[%s0 + $0xa7] sm:$0x1]
  %v176 = vld [vmem:[%s0 + $0xa8] sm:$0x1]
  %v177 = vld [vmem:[%s0 + $0xa9] sm:$0x1]
  %v178 = vld [vmem:[%s0 + $0xaa] sm:$0x1]
  %v179 = vld [vmem:[%s0 + $0xab] sm:$0x1]
  %v180 = vld [vmem:[%s0 + $0xac] sm:$0x1]
  %v181 = vld [vmem:[%s0 + $0xad] sm:$0x1]
  %v182 = vld [vmem:[%s0 + $0xae] sm:$0x1]
  %v183 = vld [vmem:[%s0 + $0xaf] sm:$0x1]
  %v184 = vld [vmem:[%s0 + $0xb0] sm:$0x1]
  %v185 = vld [vmem:[%s0 + $0xb1] sm:$0x1]
  %v186 = vld [vmem:[%s0 + $0xb2] sm:$0x1]
  %v187 = vld [vmem:[%s0 + $0xb3] sm:$0x1]
  %v188 = vld [vmem:[%s0 + $0xb4] sm:$0x1]
  %v189 = vld [vmem:[%s0 + $0xb5] sm:$0x1]
  %v190 = vld [vmem:[%s0 + $0xb6] sm:$0x1]
  %v191 = vld [vmem:[%s0 + $0xb7] sm:$0x1]
  %v192 = vld [vmem:[%s0 + $0xb8] sm:$0x1]
  %v193 = vld [vmem:[%s0 + $0xb9] sm:$0x1]
  %v194 = vld [vmem:[%s0 + $0xba] sm:$0x1]
  %v195 = vld [vmem:[%s0 + $0xbb] sm:$0x1]
  %v196 = vld [vmem:[%s0 + $0xbc] sm:$0x1]
  %v197 = vld [vmem:[%s0 + $0xbd] sm:$0x1]
  %v198 = vld [vmem:[%s0 + $0xbe] sm:$0x1]
  %v199 = vld [vmem:[%s0 + $0xbf] sm:$0x1]
  %v200 = vld [vmem:[%s0 + $0xc0] sm:$0x1]
  %v201 = vld [vmem:[%s0 + $0xc1] sm:$0x1]
  %v202 = vld [vmem:[%s0 + $0xc2] sm:$0x1]
  %v203 = vld [vmem:[%s0 + $0xc3] sm:$0x1]
  %v204 = vld [vmem:[%s0 + $0xc4] sm:$0x1]
  %v205 = vld [vmem:[%s0 + $0xc5] sm:$0x1]
  %v206 = vld [vmem:[%s0 + $0xc6] sm:$0x1]
  %v207 = vld [vmem:[%s0 + $0xc7] sm:$0x1]
  %v208 = vld [vmem:[%s0 + $0xc8] sm:$0x1]
  %v209 = vld [vmem:[%s0 + $0xc9] sm:$0x1]
  %v210 = vld [vmem:[%s0 + $0xca] sm:$0x1]
  %v211 = vld [vmem:[%s0 + $0xcb] sm:$0x1]
  %v212 = vld [vmem:[%s0 + $0xcc] sm:$0x1]
  %v213 = vld [vmem:[%s0 + $0xcd] sm:$0x1]
  %v214 = vld [vmem:[%s0 + $0xce] sm:$0x1]
  %v215 = vld [vmem:[%s0 + $0xcf] sm:$0x1]
  %v216 = vld [vmem:[%s0 + $0xd0] sm:$0x1]
  %v217 = vld [vmem:[%s0 + $0xd1] sm:$0x1]
  %v218 = vld [vmem:[%s0 + $0xd2] sm:$0x1]
  %v219 = vld [vmem:[%s0 + $0xd3] sm:$0x1]
  %v220 = vld [vmem:[%s0 + $0xd4] sm:$0x1]
  %v221 = vld [vmem:[%s0 + $0xd5] sm:$0x1]
  %v222 = vld [vmem:[%s0 + $0xd6] sm:$0x1]
  %v223 = vld [vmem:[%s0 + $0xd7] sm:$0x1]
  %v224 = vld [vmem:[%s0 + $0xd8] sm:$0x1]
  %v225 = vld [vmem:[%s0 + $0xd9] sm:$0x1]
  %v226 = vld [vmem:[%s0 + $0xda] sm:$0x1]
  %v227 = vld [vmem:[%s0 + $0xdb] sm:$0x1]
  %v228 = vld [vmem:[%s0 + $0xdc] sm:$0x1]
  %v229 = vld [vmem:[%s0 + $0xdd] sm:$0x1]
  %v230 = vld [vmem:[%s0 + $0xde] sm:$0x1]
  %v231 = vld [vmem:[%s0 + $0xdf] sm:$0x1]
  %v232 = vld [vmem:[%s0 + $0xe0] sm:$0x1]
  %v233 = vld [vmem:[%s0 + $0xe1] sm:$0x1]
  %v234 = vld [vmem:[%s0 + $0xe2] sm:$0x1]
  %v235 = vld [vmem:[%s0 + $0xe3] sm:$0x1]
  %v236 = vld [vmem:[%s0 + $0xe4] sm:$0x1]
  %v237 = vld [vmem:[%s0 + $0xe5] sm:$0x1]
  %v238 = vld [vmem:[%s0 + $0xe6] sm:$0x1]
  %v239 = vld [vmem:[%s0 + $0xe7] sm:$0x1]
  %v240 = vld [vmem:[%s0 + $0xe8] sm:$0x1]
  %v241 = vld [vmem:[%s0 + $0xe9] sm:$0x1]
  %v242 = vld [vmem:[%s0 + $0xea] sm:$0x1]
  %v243 = vld [vmem:[%s0 + $0xeb] sm:$0x1]
  %v244 = vld [vmem:[%s0 + $0xec] sm:$0x1]
  %v245 = vld [vmem:[%s0 + $0xed] sm:$0x1]
  %v246 = vld [vmem:[%s0 + $0xee] sm:$0x1]
  %v247 = vld [vmem:[%s0 + $0xef] sm:$0x1]
  %v248 = vld [vmem:[%s0 + $0xf0] sm:$0x1]
  %v249 = vld [vmem:[%s0 + $0xf1] sm:$0x1]
  %v250 = vld [vmem:[%s0 + $0xf2] sm:$0x1]
  %v251 = vld [vmem:[%s0 + $0xf3] sm:$0x1]
  %v252 = vld [vmem:[%s0 + $0xf4] sm:$0x1]
  %v253 = vld [vmem:[%s0 + $0xf5] sm:$0x1]
  %v254 = vld [vmem:[%s0 + $0xf6] sm:$0x1]
  %v255 = vld [vmem:[%s0 + $0xf7] sm:$0x1]
  %v256 = vld [vmem:[%s0 + $0xf8] sm:$0x1]
  %v257 = vld [vmem:[%s0 + $0xf9] sm:$0x1]
  %v258 = vld [vmem:[%s0 + $0xfa] sm:$0x1]
  %v259 = vld [vmem:[%s0 + $0xfb] sm:$0x1]
  %v260 = vld [vmem:[%s0 + $0xfc] sm:$0x1]
  %v261 = vld [vmem:[%s0 + $0xfd] sm:$0x1]
  %v262 = vld [vmem:[%s0 + $0xfe] sm:$0x1]
  %v263 = vld [vmem:[%s0 + $0xff] sm:$0x1]
  %v264 = vld [vmem:[%s0 + $0x100] sm:$0x1]
  %v265 = vld [vmem:[%s0 + $0x101] sm:$0x1]
  %v266 = vld [vmem:[%s0 + $0x102] sm:$0x1]
  %v267 = vld [vmem:[%s0 + $0x103] sm:$0x1]
  %v268 = vld [vmem:[%s0 + $0x104] sm:$0x1]
  %v269 = vld [vmem:[%s0 + $0x105] sm:$0x1]
  %v270 = vld [vmem:[%s0 + $0x106] sm:$0x1]
  %v271 = vld [vmem:[%s0 + $0x107] sm:$0x1]
  %v272 = vld [vmem:[%s0 + $0x108] sm:$0x1]
  %v273 = vld [vmem:[%s0 + $0x109] sm:$0x1]
  %v274 = vld [vmem:[%s0 + $0x10a] sm:$0x1]
  %v275 = vld [vmem:[%s0 + $0x10b] sm:$0x1]
  %v276 = vld [vmem:[%s0 + $0x10c] sm:$0x1]
  %v277 = vld [vmem:[%s0 + $0x10d] sm:$0x1]
  %v278 = vld [vmem:[%s0 + $0x10e] sm:$0x1]
  %v279 = vld [vmem:[%s0 + $0x10f] sm:$0x1]
  %v280 = vld [vmem:[%s0 + $0x110] sm:$0x1]
  %v281 = vld [vmem:[%s0 + $0x111] sm:$0x1]
  %v282 = vld [vmem:[%s0 + $0x112] sm:$0x1]
  %v283 = vld [vmem:[%s0 + $0x113] sm:$0x1]
  %v284 = vld [vmem:[%s0 + $0x114] sm:$0x1]
  %v285 = vld [vmem:[%s0 + $0x115] sm:$0x1]
  %v286 = vld [vmem:[%s0 + $0x116] sm:$0x1]
  %v287 = vld [vmem:[%s0 + $0x117] sm:$0x1]
  %v288 = vld [vmem:[%s0 + $0x118] sm:$0x1]
  %v289 = vld [vmem:[%s0 + $0x119] sm:$0x1]
  %v290 = vld [vmem:[%s0 + $0x11a] sm:$0x1]
  %v291 = vld [vmem:[%s0 + $0x11b] sm:$0x1]
  %v292 = vld [vmem:[%s0 + $0x11c] sm:$0x1]
  %v293 = vld [vmem:[%s0 + $0x11d] sm:$0x1]
  %v294 = vld [vmem:[%s0 + $0x11e] sm:$0x1]
  %v295 = vld [vmem:[%s0 + $0x11f] sm:$0x1]
  %v296 = vld [vmem:[%s0 + $0x120] sm:$0x1]
  %v297 = vld [vmem:[%s0 + $0x121] sm:$0x1]
  %v298 = vld [vmem:[%s0 + $0x122] sm:$0x1]
  %v299 = vld [vmem:[%s0 + $0x123] sm:$0x1]
  %v300 = vld [vmem:[%s0 + $0x124] sm:$0x1]
  %v301 = vld [vmem:[%s0 + $0x125] sm:$0x1]
  %v302 = vld [vmem:[%s0 + $0x126] sm:$0x1]
  %v303 = vld [vmem:[%s0 + $0x127] sm:$0x1]
  %v304 = vld [vmem:[%s0 + $0x128] sm:$0x1]
  %v305 = vld [vmem:[%s0 + $0x129] sm:$0x1]
  %v306 = vld [vmem:[%s0 + $0x12a] sm:$0x1]
  %v307 = vld [vmem:[%s0 + $0x12b] sm:$0x1]
  %v308 = vld [vmem:[%s0 + $0x12c] sm:$0x1]
  %v309 = vld [vmem:[%s0 + $0x12d] sm:$0x1]
  %v310 = vld [vmem:[%s0 + $0x12e] sm:$0x1]
  %v311 = vld [vmem:[%s0 + $0x12f] sm:$0x1]
  %v312 = vld [vmem:[%s0 + $0x130] sm:$0x1]
  %v313 = vld [vmem:[%s0 + $0x131] sm:$0x1]
  %v314 = vld [vmem:[%s0 + $0x132] sm:$0x1]
  %v315 = vld [vmem:[%s0 + $0x133] sm:$0x1]
  %v316 = vld [vmem:[%s0 + $0x134] sm:$0x1]
  %v317 = vld [vmem:[%s0 + $0x135] sm:$0x1]
  %v318 = vld [vmem:[%s0 + $0x136] sm:$0x1]
  %v319 = vld [vmem:[%s0 + $0x137] sm:$0x1]
  %v320 = vld [vmem:[%s0 + $0x138] sm:$0x1]
  %v321 = vld [vmem:[%s0 + $0x139] sm:$0x1]
  %v322 = vld [vmem:[%s0 + $0x13a] sm:$0x1]
  %v323 = vld [vmem:[%s0 + $0x13b] sm:$0x1]
  %v324 = vld [vmem:[%s0 + $0x13c] sm:$0x1]
  %v325 = vld [vmem:[%s0 + $0x13d] sm:$0x1]
  %v326 = vld [vmem:[%s0 + $0x13e] sm:$0x1]
  %v327 = vld [vmem:[%s0 + $0x13f] sm:$0x1]
  %v328 = vld [vmem:[%s0 + $0x140] sm:$0x1]
  %v329 = vld [vmem:[%s0 + $0x141] sm:$0x1]
  %v330 = vld [vmem:[%s0 + $0x142] sm:$0x1]
  %v331 = vld [vmem:[%s0 + $0x143] sm:$0x1]
  %v332 = vld [vmem:[%s0 + $0x144] sm:$0x1]
  %v333 = vld [vmem:[%s0 + $0x145] sm:$0x1]
  %v334 = vld [vmem:[%s0 + $0x146] sm:$0x1]
  %v335 = vld [vmem:[%s0 + $0x147] sm:$0x1]
  %v336 = vld [vmem:[%s0 + $0x148] sm:$0x1]
  %v337 = vld [vmem:[%s0 + $0x149] sm:$0x1]
  %v338 = vld [vmem:[%s0 + $0x14a] sm:$0x1]
  %v339 = vld [vmem:[%s0 + $0x14b] sm:$0x1]
  %v340 = vld [vmem:[%s0 + $0x14c] sm:$0x1]
  %v341 = vld [vmem:[%s0 + $0x14d] sm:$0x1]
  %v342 = vld [vmem:[%s0 + $0x14e] sm:$0x1]
  %v343 = vld [vmem:[%s0 + $0x14f] sm:$0x1]
  %v344 = vld [vmem:[%s0 + $0x150] sm:$0x1]
  %v345 = vld [vmem:[%s0 + $0x151] sm:$0x1]
  %v346 = vld [vmem:[%s0 + $0x152] sm:$0x1]
  %v347 = vld [vmem:[%s0 + $0x153] sm:$0x1]
  %v348 = vld [vmem:[%s0 + $0x154] sm:$0x1]
  %v349 = vld [vmem:[%s0 + $0x155] sm:$0x1]
  %v350 = vld [vmem:[%s0 + $0x156] sm:$0x1]
  %v351 = vld [vmem:[%s0 + $0x157] sm:$0x1]
  %v352 = vld [vmem:[%s0 + $0x158] sm:$0x1]
  %v353 = vld [vmem:[%s0 + $0x159] sm:$0x1]
  %v354 = vld [vmem:[%s0 + $0x15a] sm:$0x1]
  %v355 = vld [vmem:[%s0 + $0x15b] sm:$0x1]
  %v356 = vld [vmem:[%s0 + $0x15c] sm:$0x1]
  %v357 = vld [vmem:[%s0 + $0x15d] sm:$0x1]
  %v358 = vld [vmem:[%s0 + $0x15e] sm:$0x1]
  %v359 = vld [vmem:[%s0 + $0x15f] sm:$0x1]
  %v360 = vld [vmem:[%s0 + $0x160] sm:$0x1]
  %v361 = vld [vmem:[%s0 + $0x161] sm:$0x1]
  %v362 = vld [vmem:[%s0 + $0x162] sm:$0x1]
  %v363 = vld [vmem:[%s0 + $0x163] sm:$0x1]
  %v364 = vld [vmem:[%s0 + $0x164] sm:$0x1]
  %v365 = vld [vmem:[%s0 + $0x165] sm:$0x1]
  %v366 = vld [vmem:[%s0 + $0x166] sm:$0x1]
  %v367 = vld [vmem:[%s0 + $0x167] sm:$0x1]
  %v368 = vld [vmem:[%s0 + $0x168] sm:$0x1]
  %v369 = vld [vmem:[%s0 + $0x169] sm:$0x1]
  %v370 = vld [vmem:[%s0 + $0x16a] sm:$0x1]
  %v371 = vld [vmem:[%s0 + $0x16b] sm:$0x1]
  %v372 = vld [vmem:[%s0 + $0x16c] sm:$0x1]
  %v373 = vld [vmem:[%s0 + $0x16d] sm:$0x1]
  %v374 = vld [vmem:[%s0 + $0x16e] sm:$0x1]
  %v375 = vld [vmem:[%s0 + $0x16f] sm:$0x1]
  %v376 = vld [vmem:[%s0 + $0x170] sm:$0x1]
  %v377 = vld [vmem:[%s0 + $0x171] sm:$0x1]
  %v378 = vld [vmem:[%s0 + $0x172] sm:$0x1]
  %v379 = vld [vmem:[%s0 + $0x173] sm:$0x1]
  %v380 = vld [vmem:[%s0 + $0x174] sm:$0x1]
  %v381 = vld [vmem:[%s0 + $0x175] sm:$0x1]
  %v382 = vld [vmem:[%s0 + $0x176] sm:$0x1]
  %v383 = vld [vmem:[%s0 + $0x177] sm:$0x1]
  %v384 = vld [vmem:[%s0 + $0x178] sm:$0x1]
  %v385 = vld [vmem:[%s0 + $0x179] sm:$0x1]
  %v386 = vld [vmem:[%s0 + $0x17a] sm:$0x1]
  %v387 = vld [vmem:[%s0 + $0x17b] sm:$0x1]
  %v388 = vld [vmem:[%s0 + $0x17c] sm:$0x1]
  %v389 = vld [vmem:[%s0 + $0x17d] sm:$0x1]
  %v390 = vld [vmem:[%s0 + $0x17e] sm:$0x1]
  %v391 = vld [vmem:[%s0 + $0x17f] sm:$0x1]
  %v392 = vld [vmem:[%s0 + $0x180] sm:$0x1]
  %v393 = vld [vmem:[%s0 + $0x181] sm:$0x1]
  %v394 = vld [vmem:[%s0 + $0x182] sm:$0x1]
  %v395 = vld [vmem:[%s0 + $0x183] sm:$0x1]
  %v396 = vld [vmem:[%s0 + $0x184] sm:$0x1]
  %v397 = vld [vmem:[%s0 + $0x185] sm:$0x1]
  %v398 = vld [vmem:[%s0 + $0x186] sm:$0x1]
  %v399 = vld [vmem:[%s0 + $0x187] sm:$0x1]
  %v400 = vld [vmem:[%s0 + $0x188] sm:$0x1]
  %v401 = vld [vmem:[%s0 + $0x189] sm:$0x1]
  %v402 = vld [vmem:[%s0 + $0x18a] sm:$0x1]
  %v403 = vld [vmem:[%s0 + $0x18b] sm:$0x1]
  %v404 = vld [vmem:[%s0 + $0x18c] sm:$0x1]
  %v405 = vld [vmem:[%s0 + $0x18d] sm:$0x1]
  %v406 = vld [vmem:[%s0 + $0x18e] sm:$0x1]
  %v407 = vld [vmem:[%s0 + $0x18f] sm:$0x1]
  %v408 = vld [vmem:[%s0 + $0x190] sm:$0x1]
  %v409 = vld [vmem:[%s0 + $0x191] sm:$0x1]
  %v410 = vld [vmem:[%s0 + $0x192] sm:$0x1]
  %v411 = vld [vmem:[%s0 + $0x193] sm:$0x1]
  %v412 = vld [vmem:[%s0 + $0x194] sm:$0x1]
  %v413 = vld [vmem:[%s0 + $0x195] sm:$0x1]
  %v414 = vld [vmem:[%s0 + $0x196] sm:$0x1]
  %v415 = vld [vmem:[%s0 + $0x197] sm:$0x1]
  %v416 = vld [vmem:[%s0 + $0x198] sm:$0x1]
  %v417 = vld [vmem:[%s0 + $0x199] sm:$0x1]
  %v418 = vld [vmem:[%s0 + $0x19a] sm:$0x1]
  %v419 = vld [vmem:[%s0 + $0x19b] sm:$0x1]
  %v420 = vld [vmem:[%s0 + $0x19c] sm:$0x1]
  %v421 = vld [vmem:[%s0 + $0x19d] sm:$0x1]
  %v422 = vld [vmem:[%s0 + $0x19e] sm:$0x1]
  %v423 = vld [vmem:[%s0 + $0x19f] sm:$0x1]
  %v424 = vld [vmem:[%s0 + $0x1a0] sm:$0x1]
  %v425 = vld [vmem:[%s0 + $0x1a1] sm:$0x1]
  %v426 = vld [vmem:[%s0 + $0x1a2] sm:$0x1]
  %v427 = vld [vmem:[%s0 + $0x1a3] sm:$0x1]
  %v428 = vld [vmem:[%s0 + $0x1a4] sm:$0x1]
  %v429 = vld [vmem:[%s0 + $0x1a5] sm:$0x1]
  %v430 = vld [vmem:[%s0 + $0x1a6] sm:$0x1]
  %v431 = vld [vmem:[%s0 + $0x1a7] sm:$0x1]
  %v432 = vld [vmem:[%s0 + $0x1a8] sm:$0x1]
  %v433 = vld [vmem:[%s0 + $0x1a9] sm:$0x1]
  %v434 = vld [vmem:[%s0 + $0x1aa] sm:$0x1]
  %v435 = vld [vmem:[%s0 + $0x1ab] sm:$0x1]
  %v436 = vld [vmem:[%s0 + $0x1ac] sm:$0x1]
  %v437 = vld [vmem:[%s0 + $0x1ad] sm:$0x1]
  %v438 = vld [vmem:[%s0 + $0x1ae] sm:$0x1]
  %v439 = vld [vmem:[%s0 + $0x1af] sm:$0x1]
  %v440 = vld [vmem:[%s0 + $0x1b0] sm:$0x1]
  %v441 = vld [vmem:[%s0 + $0x1b1] sm:$0x1]
  %v442 = vld [vmem:[%s0 + $0x1b2] sm:$0x1]
  %v443 = vld [vmem:[%s0 + $0x1b3] sm:$0x1]
  %v444 = vld [vmem:[%s0 + $0x1b4] sm:$0x1]
  %v445 = vld [vmem:[%s0 + $0x1b5] sm:$0x1]
  %v446 = vld [vmem:[%s0 + $0x1b6] sm:$0x1]
  %v447 = vld [vmem:[%s0 + $0x1b7] sm:$0x1]
  %v448 = vld [vmem:[%s0 + $0x1b8] sm:$0x1]
  %v449 = vld [vmem:[%s0 + $0x1b9] sm:$0x1]
  %v450 = vld [vmem:[%s0 + $0x1ba] sm:$0x1]
  %v451 = vld [vmem:[%s0 + $0x1bb] sm:$0x1]
  %v452 = vld [vmem:[%s0 + $0x1bc] sm:$0x1]
  %v453 = vld [vmem:[%s0 + $0x1bd] sm:$0x1]
  %v454 = vld [vmem:[%s0 + $0x1be] sm:$0x1]
  %v455 = vld [vmem:[%s0 + $0x1bf] sm:$0x1]
  %v456 = vld [vmem:[%s0 + $0x1c0] sm:$0x1]
  %v457 = vld [vmem:[%s0 + $0x1c1] sm:$0x1]
  %v458 = vld [vmem:[%s0 + $0x1c2] sm:$0x1]
  %v459 = vld [vmem:[%s0 + $0x1c3] sm:$0x1]
  %v460 = vld [vmem:[%s0 + $0x1c4] sm:$0x1]
  %v461 = vld [vmem:[%s0 + $0x1c5] sm:$0x1]
  %v462 = vld [vmem:[%s0 + $0x1c6] sm:$0x1]
  %v463 = vld [vmem:[%s0 + $0x1c7] sm:$0x1]
  %v464 = vld [vmem:[%s0 + $0x1c8] sm:$0x1]
  %v465 = vld [vmem:[%s0 + $0x1c9] sm:$0x1]
  %v466 = vld [vmem:[%s0 + $0x1ca] sm:$0x1]
  %v467 = vld [vmem:[%s0 + $0x1cb] sm:$0x1]
  %v468 = vld [vmem:[%s0 + $0x1cc] sm:$0x1]
  %v469 = vld [vmem:[%s0 + $0x1cd] sm:$0x1]
  %v470 = vld [vmem:[%s0 + $0x1ce] sm:$0x1]
  %v471 = vld [vmem:[%s0 + $0x1cf] sm:$0x1]
  %v472 = vld [vmem:[%s0 + $0x1d0] sm:$0x1]
  %v473 = vld [vmem:[%s0 + $0x1d1] sm:$0x1]
  %v474 = vld [vmem:[%s0 + $0x1d2] sm:$0x1]
  %v475 = vld [vmem:[%s0 + $0x1d3] sm:$0x1]
  %v476 = vld [vmem:[%s0 + $0x1d4] sm:$0x1]
  %v477 = vld [vmem:[%s0 + $0x1d5] sm:$0x1]
  %v478 = vld [vmem:[%s0 + $0x1d6] sm:$0x1]
  %v479 = vld [vmem:[%s0 + $0x1d7] sm:$0x1]
  %v480 = vld [vmem:[%s0 + $0x1d8] sm:$0x1]
  %v481 = vld [vmem:[%s0 + $0x1d9] sm:$0x1]
  %v482 = vld [vmem:[%s0 + $0x1da] sm:$0x1]
  %v483 = vld [vmem:[%s0 + $0x1db] sm:$0x1]
  %v484 = vld [vmem:[%s0 + $0x1dc] sm:$0x1]
  %v485 = vld [vmem:[%s0 + $0x1dd] sm:$0x1]
  %v486 = vld [vmem:[%s0 + $0x1de] sm:$0x1]
  %v487 = vld [vmem:[%s0 + $0x1df] sm:$0x1]
  %v488 = vld [vmem:[%s0 + $0x1e0] sm:$0x1]
  %v489 = vld [vmem:[%s0 + $0x1e1] sm:$0x1]
  %v490 = vld [vmem:[%s0 + $0x1e2] sm:$0x1]
  %v491 = vld [vmem:[%s0 + $0x1e3] sm:$0x1]
  %v492 = vld [vmem:[%s0 + $0x1e4] sm:$0x1]
  %v493 = vld [vmem:[%s0 + $0x1e5] sm:$0x1]
  %v494 = vld [vmem:[%s0 + $0x1e6] sm:$0x1]
  %v495 = vld [vmem:[%s0 + $0x1e7] sm:$0x1]
  %v496 = vld [vmem:[%s0 + $0x1e8] sm:$0x1]
  %v497 = vld [vmem:[%s0 + $0x1e9] sm:$0x1]
  %v498 = vld [vmem:[%s0 + $0x1ea] sm:$0x1]
  %v499 = vld [vmem:[%s0 + $0x1eb] sm:$0x1]
  %v500 = vld [vmem:[%s0 + $0x1ec] sm:$0x1]
  %v501 = vld [vmem:[%s0 + $0x1ed] sm:$0x1]
  %v502 = vld [vmem:[%s0 + $0x1ee] sm:$0x1]
  %v503 = vld [vmem:[%s0 + $0x1ef] sm:$0x1]
  %v504 = vld [vmem:[%s0 + $0x1f0] sm:$0x1]
  %v505 = vld [vmem:[%s0 + $0x1f1] sm:$0x1]
  %v506 = vld [vmem:[%s0 + $0x1f2] sm:$0x1]
  %v507 = vld [vmem:[%s0 + $0x1f3] sm:$0x1]
  %v508 = vld [vmem:[%s0 + $0x1f4] sm:$0x1]
  %v509 = vld [vmem:[%s0 + $0x1f5] sm:$0x1]
  %v510 = vld [vmem:[%s0 + $0x1f6] sm:$0x1]
  %v511 = vld [vmem:[%s0 + $0x1f7] sm:$0x1]
  %v512 = vld [vmem:[%s0 + $0x1f8] sm:$0x1]
  %v513 = vld [vmem:[%s0 + $0x1f9] sm:$0x1]
  %v514 = vld [vmem:[%s0 + $0x1fa] sm:$0x1]
  %v515 = vld [vmem:[%s0 + $0x1fb] sm:$0x1]
  %v516 = vld [vmem:[%s0 + $0x1fc] sm:$0x1]
  %v517 = vld [vmem:[%s0 + $0x1fd] sm:$0x1]
  %v518 = vld [vmem:[%s0 + $0x1fe] sm:$0x1]
  %v519 = vld [vmem:[%s0 + $0x1ff] sm:$0x1]
  %v1032 = vlaneseq
  %v1033 = vshrl.u32 %v1032, 7
  %v1034 = vsub.s32 0, %v1033
  %v1035 = vrot.slane %v8, %v1034
  %v1036 = vlaneseq
  %v1037 = vshrl.u32 %v1036, 7
  %v1038 = vsub.s32 0, %v1037
  %v1039 = vrot.slane %v9, %v1038
  %v1040 = vlaneseq
  %v1041 = vshrl.u32 %v1040, 7
  %v1042 = vsub.s32 0, %v1041
  %v1043 = vrot.slane %v10, %v1042
  %v1044 = vlaneseq
  %v1045 = vshrl.u32 %v1044, 7
  %v1046 = vsub.s32 0, %v1045
  %v1047 = vrot.slane %v11, %v1046
  %v1048 = vlaneseq
  %v1049 = vshrl.u32 %v1048, 7
  %v1050 = vsub.s32 0, %v1049
  %v1051 = vrot.slane %v12, %v1050
  %v1052 = vlaneseq
  %v1053 = vshrl.u32 %v1052, 7
  %v1054 = vsub.s32 0, %v1053
  %v1055 = vrot.slane %v13, %v1054
  %v1056 = vlaneseq
  %v1057 = vshrl.u32 %v1056, 7
  %v1058 = vsub.s32 0, %v1057
  %v1059 = vrot.slane %v14, %v1058
  %v1060 = vlaneseq
  %v1061 = vshrl.u32 %v1060, 7
  %v1062 = vsub.s32 0, %v1061
  %v1063 = vrot.slane %v15, %v1062
  %v1064 = vlaneseq
  %v1065 = vshrl.u32 %v1064, 7
  %v1066 = vsub.s32 0, %v1065
  %v1067 = vrot.slane %v16, %v1066
  %v1068 = vlaneseq
  %v1069 = vshrl.u32 %v1068, 7
  %v1070 = vsub.s32 0, %v1069
  %v1071 = vrot.slane %v17, %v1070
  %v1072 = vlaneseq
  %v1073 = vshrl.u32 %v1072, 7
  %v1074 = vsub.s32 0, %v1073
  %v1075 = vrot.slane %v18, %v1074
  %v1076 = vlaneseq
  %v1077 = vshrl.u32 %v1076, 7
  %v1078 = vsub.s32 0, %v1077
  %v1079 = vrot.slane %v19, %v1078
  %v1080 = vlaneseq
  %v1081 = vshrl.u32 %v1080, 7
  %v1082 = vsub.s32 0, %v1081
  %v1083 = vrot.slane %v20, %v1082
  %v1084 = vlaneseq
  %v1085 = vshrl.u32 %v1084, 7
  %v1086 = vsub.s32 0, %v1085
  %v1087 = vrot.slane %v21, %v1086
  %v1088 = vlaneseq
  %v1089 = vshrl.u32 %v1088, 7
  %v1090 = vsub.s32 0, %v1089
  %v1091 = vrot.slane %v22, %v1090
  %v1092 = vlaneseq
  %v1093 = vshrl.u32 %v1092, 7
  %v1094 = vsub.s32 0, %v1093
  %v1095 = vrot.slane %v23, %v1094
  %v1096 = vlaneseq
  %v1097 = vshrl.u32 %v1096, 7
  %v1098 = vsub.s32 0, %v1097
  %v1099 = vrot.slane %v24, %v1098
  %v1100 = vlaneseq
  %v1101 = vshrl.u32 %v1100, 7
  %v1102 = vsub.s32 0, %v1101
  %v1103 = vrot.slane %v25, %v1102
  %v1104 = vlaneseq
  %v1105 = vshrl.u32 %v1104, 7
  %v1106 = vsub.s32 0, %v1105
  %v1107 = vrot.slane %v26, %v1106
  %v1108 = vlaneseq
  %v1109 = vshrl.u32 %v1108, 7
  %v1110 = vsub.s32 0, %v1109
  %v1111 = vrot.slane %v27, %v1110
  %v1112 = vlaneseq
  %v1113 = vshrl.u32 %v1112, 7
  %v1114 = vsub.s32 0, %v1113
  %v1115 = vrot.slane %v28, %v1114
  %v1116 = vlaneseq
  %v1117 = vshrl.u32 %v1116, 7
  %v1118 = vsub.s32 0, %v1117
  %v1119 = vrot.slane %v29, %v1118
  %v1120 = vlaneseq
  %v1121 = vshrl.u32 %v1120, 7
  %v1122 = vsub.s32 0, %v1121
  %v1123 = vrot.slane %v30, %v1122
  %v1124 = vlaneseq
  %v1125 = vshrl.u32 %v1124, 7
  %v1126 = vsub.s32 0, %v1125
  %v1127 = vrot.slane %v31, %v1126
  %v1128 = vlaneseq
  %v1129 = vshrl.u32 %v1128, 7
  %v1130 = vsub.s32 0, %v1129
  %v1131 = vrot.slane %v32, %v1130
  %v1132 = vlaneseq
  %v1133 = vshrl.u32 %v1132, 7
  %v1134 = vsub.s32 0, %v1133
  %v1135 = vrot.slane %v33, %v1134
  %v1136 = vlaneseq
  %v1137 = vshrl.u32 %v1136, 7
  %v1138 = vsub.s32 0, %v1137
  %v1139 = vrot.slane %v34, %v1138
  %v1140 = vlaneseq
  %v1141 = vshrl.u32 %v1140, 7
  %v1142 = vsub.s32 0, %v1141
  %v1143 = vrot.slane %v35, %v1142
  %v1144 = vlaneseq
  %v1145 = vshrl.u32 %v1144, 7
  %v1146 = vsub.s32 0, %v1145
  %v1147 = vrot.slane %v36, %v1146
  %v1148 = vlaneseq
  %v1149 = vshrl.u32 %v1148, 7
  %v1150 = vsub.s32 0, %v1149
  %v1151 = vrot.slane %v37, %v1150
  %v1152 = vlaneseq
  %v1153 = vshrl.u32 %v1152, 7
  %v1154 = vsub.s32 0, %v1153
  %v1155 = vrot.slane %v38, %v1154
  %v1156 = vlaneseq
  %v1157 = vshrl.u32 %v1156, 7
  %v1158 = vsub.s32 0, %v1157
  %v1159 = vrot.slane %v39, %v1158
  %v1160 = vlaneseq
  %v1161 = vshrl.u32 %v1160, 7
  %v1162 = vsub.s32 0, %v1161
  %v1163 = vrot.slane %v40, %v1162
  %v1164 = vlaneseq
  %v1165 = vshrl.u32 %v1164, 7
  %v1166 = vsub.s32 0, %v1165
  %v1167 = vrot.slane %v41, %v1166
  %v1168 = vlaneseq
  %v1169 = vshrl.u32 %v1168, 7
  %v1170 = vsub.s32 0, %v1169
  %v1171 = vrot.slane %v42, %v1170
  %v1172 = vlaneseq
  %v1173 = vshrl.u32 %v1172, 7
  %v1174 = vsub.s32 0, %v1173
  %v1175 = vrot.slane %v43, %v1174
  %v1176 = vlaneseq
  %v1177 = vshrl.u32 %v1176, 7
  %v1178 = vsub.s32 0, %v1177
  %v1179 = vrot.slane %v44, %v1178
  %v1180 = vlaneseq
  %v1181 = vshrl.u32 %v1180, 7
  %v1182 = vsub.s32 0, %v1181
  %v1183 = vrot.slane %v45, %v1182
  %v1184 = vlaneseq
  %v1185 = vshrl.u32 %v1184, 7
  %v1186 = vsub.s32 0, %v1185
  %v1187 = vrot.slane %v46, %v1186
  %v1188 = vlaneseq
  %v1189 = vshrl.u32 %v1188, 7
  %v1190 = vsub.s32 0, %v1189
  %v1191 = vrot.slane %v47, %v1190
  %v1192 = vlaneseq
  %v1193 = vshrl.u32 %v1192, 7
  %v1194 = vsub.s32 0, %v1193
  %v1195 = vrot.slane %v48, %v1194
  %v1196 = vlaneseq
  %v1197 = vshrl.u32 %v1196, 7
  %v1198 = vsub.s32 0, %v1197
  %v1199 = vrot.slane %v49, %v1198
  %v1200 = vlaneseq
  %v1201 = vshrl.u32 %v1200, 7
  %v1202 = vsub.s32 0, %v1201
  %v1203 = vrot.slane %v50, %v1202
  %v1204 = vlaneseq
  %v1205 = vshrl.u32 %v1204, 7
  %v1206 = vsub.s32 0, %v1205
  %v1207 = vrot.slane %v51, %v1206
  %v1208 = vlaneseq
  %v1209 = vshrl.u32 %v1208, 7
  %v1210 = vsub.s32 0, %v1209
  %v1211 = vrot.slane %v52, %v1210
  %v1212 = vlaneseq
  %v1213 = vshrl.u32 %v1212, 7
  %v1214 = vsub.s32 0, %v1213
  %v1215 = vrot.slane %v53, %v1214
  %v1216 = vlaneseq
  %v1217 = vshrl.u32 %v1216, 7
  %v1218 = vsub.s32 0, %v1217
  %v1219 = vrot.slane %v54, %v1218
  %v1220 = vlaneseq
  %v1221 = vshrl.u32 %v1220, 7
  %v1222 = vsub.s32 0, %v1221
  %v1223 = vrot.slane %v55, %v1222
  %v1224 = vlaneseq
  %v1225 = vshrl.u32 %v1224, 7
  %v1226 = vsub.s32 0, %v1225
  %v1227 = vrot.slane %v56, %v1226
  %v1228 = vlaneseq
  %v1229 = vshrl.u32 %v1228, 7
  %v1230 = vsub.s32 0, %v1229
  %v1231 = vrot.slane %v57, %v1230
  %v1232 = vlaneseq
  %v1233 = vshrl.u32 %v1232, 7
  %v1234 = vsub.s32 0, %v1233
  %v1235 = vrot.slane %v58, %v1234
  %v1236 = vlaneseq
  %v1237 = vshrl.u32 %v1236, 7
  %v1238 = vsub.s32 0, %v1237
  %v1239 = vrot.slane %v59, %v1238
  %v1240 = vlaneseq
  %v1241 = vshrl.u32 %v1240, 7
  %v1242 = vsub.s32 0, %v1241
  %v1243 = vrot.slane %v60, %v1242
  %v1244 = vlaneseq
  %v1245 = vshrl.u32 %v1244, 7
  %v1246 = vsub.s32 0, %v1245
  %v1247 = vrot.slane %v61, %v1246
  %v1248 = vlaneseq
  %v1249 = vshrl.u32 %v1248, 7
  %v1250 = vsub.s32 0, %v1249
  %v1251 = vrot.slane %v62, %v1250
  %v1252 = vlaneseq
  %v1253 = vshrl.u32 %v1252, 7
  %v1254 = vsub.s32 0, %v1253
  %v1255 = vrot.slane %v63, %v1254
  %v1256 = vlaneseq
  %v1257 = vshrl.u32 %v1256, 7
  %v1258 = vsub.s32 0, %v1257
  %v1259 = vrot.slane %v64, %v1258
  %v1260 = vlaneseq
  %v1261 = vshrl.u32 %v1260, 7
  %v1262 = vsub.s32 0, %v1261
  %v1263 = vrot.slane %v65, %v1262
  %v1264 = vlaneseq
  %v1265 = vshrl.u32 %v1264, 7
  %v1266 = vsub.s32 0, %v1265
  %v1267 = vrot.slane %v66, %v1266
  %v1268 = vlaneseq
  %v1269 = vshrl.u32 %v1268, 7
  %v1270 = vsub.s32 0, %v1269
  %v1271 = vrot.slane %v67, %v1270
  %v1272 = vlaneseq
  %v1273 = vshrl.u32 %v1272, 7
  %v1274 = vsub.s32 0, %v1273
  %v1275 = vrot.slane %v68, %v1274
  %v1276 = vlaneseq
  %v1277 = vshrl.u32 %v1276, 7
  %v1278 = vsub.s32 0, %v1277
  %v1279 = vrot.slane %v69, %v1278
  %v1280 = vlaneseq
  %v1281 = vshrl.u32 %v1280, 7
  %v1282 = vsub.s32 0, %v1281
  %v1283 = vrot.slane %v70, %v1282
  %v1284 = vlaneseq
  %v1285 = vshrl.u32 %v1284, 7
  %v1286 = vsub.s32 0, %v1285
  %v1287 = vrot.slane %v71, %v1286
  %v1288 = vlaneseq
  %v1289 = vshrl.u32 %v1288, 7
  %v1290 = vsub.s32 0, %v1289
  %v1291 = vrot.slane %v72, %v1290
  %v1292 = vlaneseq
  %v1293 = vshrl.u32 %v1292, 7
  %v1294 = vsub.s32 0, %v1293
  %v1295 = vrot.slane %v73, %v1294
  %v1296 = vlaneseq
  %v1297 = vshrl.u32 %v1296, 7
  %v1298 = vsub.s32 0, %v1297
  %v1299 = vrot.slane %v74, %v1298
  %v1300 = vlaneseq
  %v1301 = vshrl.u32 %v1300, 7
  %v1302 = vsub.s32 0, %v1301
  %v1303 = vrot.slane %v75, %v1302
  %v1304 = vlaneseq
  %v1305 = vshrl.u32 %v1304, 7
  %v1306 = vsub.s32 0, %v1305
  %v1307 = vrot.slane %v76, %v1306
  %v1308 = vlaneseq
  %v1309 = vshrl.u32 %v1308, 7
  %v1310 = vsub.s32 0, %v1309
  %v1311 = vrot.slane %v77, %v1310
  %v1312 = vlaneseq
  %v1313 = vshrl.u32 %v1312, 7
  %v1314 = vsub.s32 0, %v1313
  %v1315 = vrot.slane %v78, %v1314
  %v1316 = vlaneseq
  %v1317 = vshrl.u32 %v1316, 7
  %v1318 = vsub.s32 0, %v1317
  %v1319 = vrot.slane %v79, %v1318
  %v1320 = vlaneseq
  %v1321 = vshrl.u32 %v1320, 7
  %v1322 = vsub.s32 0, %v1321
  %v1323 = vrot.slane %v80, %v1322
  %v1324 = vlaneseq
  %v1325 = vshrl.u32 %v1324, 7
  %v1326 = vsub.s32 0, %v1325
  %v1327 = vrot.slane %v81, %v1326
  %v1328 = vlaneseq
  %v1329 = vshrl.u32 %v1328, 7
  %v1330 = vsub.s32 0, %v1329
  %v1331 = vrot.slane %v82, %v1330
  %v1332 = vlaneseq
  %v1333 = vshrl.u32 %v1332, 7
  %v1334 = vsub.s32 0, %v1333
  %v1335 = vrot.slane %v83, %v1334
  %v1336 = vlaneseq
  %v1337 = vshrl.u32 %v1336, 7
  %v1338 = vsub.s32 0, %v1337
  %v1339 = vrot.slane %v84, %v1338
  %v1340 = vlaneseq
  %v1341 = vshrl.u32 %v1340, 7
  %v1342 = vsub.s32 0, %v1341
  %v1343 = vrot.slane %v85, %v1342
  %v1344 = vlaneseq
  %v1345 = vshrl.u32 %v1344, 7
  %v1346 = vsub.s32 0, %v1345
  %v1347 = vrot.slane %v86, %v1346
  %v1348 = vlaneseq
  %v1349 = vshrl.u32 %v1348, 7
  %v1350 = vsub.s32 0, %v1349
  %v1351 = vrot.slane %v87, %v1350
  %v1352 = vlaneseq
  %v1353 = vshrl.u32 %v1352, 7
  %v1354 = vsub.s32 0, %v1353
  %v1355 = vrot.slane %v88, %v1354
  %v1356 = vlaneseq
  %v1357 = vshrl.u32 %v1356, 7
  %v1358 = vsub.s32 0, %v1357
  %v1359 = vrot.slane %v89, %v1358
  %v1360 = vlaneseq
  %v1361 = vshrl.u32 %v1360, 7
  %v1362 = vsub.s32 0, %v1361
  %v1363 = vrot.slane %v90, %v1362
  %v1364 = vlaneseq
  %v1365 = vshrl.u32 %v1364, 7
  %v1366 = vsub.s32 0, %v1365
  %v1367 = vrot.slane %v91, %v1366
  %v1368 = vlaneseq
  %v1369 = vshrl.u32 %v1368, 7
  %v1370 = vsub.s32 0, %v1369
  %v1371 = vrot.slane %v92, %v1370
  %v1372 = vlaneseq
  %v1373 = vshrl.u32 %v1372, 7
  %v1374 = vsub.s32 0, %v1373
  %v1375 = vrot.slane %v93, %v1374
  %v1376 = vlaneseq
  %v1377 = vshrl.u32 %v1376, 7
  %v1378 = vsub.s32 0, %v1377
  %v1379 = vrot.slane %v94, %v1378
  %v1380 = vlaneseq
  %v1381 = vshrl.u32 %v1380, 7
  %v1382 = vsub.s32 0, %v1381
  %v1383 = vrot.slane %v95, %v1382
  %v1384 = vlaneseq
  %v1385 = vshrl.u32 %v1384, 7
  %v1386 = vsub.s32 0, %v1385
  %v1387 = vrot.slane %v96, %v1386
  %v1388 = vlaneseq
  %v1389 = vshrl.u32 %v1388, 7
  %v1390 = vsub.s32 0, %v1389
  %v1391 = vrot.slane %v97, %v1390
  %v1392 = vlaneseq
  %v1393 = vshrl.u32 %v1392, 7
  %v1394 = vsub.s32 0, %v1393
  %v1395 = vrot.slane %v98, %v1394
  %v1396 = vlaneseq
  %v1397 = vshrl.u32 %v1396, 7
  %v1398 = vsub.s32 0, %v1397
  %v1399 = vrot.slane %v99, %v1398
  %v1400 = vlaneseq
  %v1401 = vshrl.u32 %v1400, 7
  %v1402 = vsub.s32 0, %v1401
  %v1403 = vrot.slane %v100, %v1402
  %v1404 = vlaneseq
  %v1405 = vshrl.u32 %v1404, 7
  %v1406 = vsub.s32 0, %v1405
  %v1407 = vrot.slane %v101, %v1406
  %v1408 = vlaneseq
  %v1409 = vshrl.u32 %v1408, 7
  %v1410 = vsub.s32 0, %v1409
  %v1411 = vrot.slane %v102, %v1410
  %v1412 = vlaneseq
  %v1413 = vshrl.u32 %v1412, 7
  %v1414 = vsub.s32 0, %v1413
  %v1415 = vrot.slane %v103, %v1414
  %v1416 = vlaneseq
  %v1417 = vshrl.u32 %v1416, 7
  %v1418 = vsub.s32 0, %v1417
  %v1419 = vrot.slane %v104, %v1418
  %v1420 = vlaneseq
  %v1421 = vshrl.u32 %v1420, 7
  %v1422 = vsub.s32 0, %v1421
  %v1423 = vrot.slane %v105, %v1422
  %v1424 = vlaneseq
  %v1425 = vshrl.u32 %v1424, 7
  %v1426 = vsub.s32 0, %v1425
  %v1427 = vrot.slane %v106, %v1426
  %v1428 = vlaneseq
  %v1429 = vshrl.u32 %v1428, 7
  %v1430 = vsub.s32 0, %v1429
  %v1431 = vrot.slane %v107, %v1430
  %v1432 = vlaneseq
  %v1433 = vshrl.u32 %v1432, 7
  %v1434 = vsub.s32 0, %v1433
  %v1435 = vrot.slane %v108, %v1434
  %v1436 = vlaneseq
  %v1437 = vshrl.u32 %v1436, 7
  %v1438 = vsub.s32 0, %v1437
  %v1439 = vrot.slane %v109, %v1438
  %v1440 = vlaneseq
  %v1441 = vshrl.u32 %v1440, 7
  %v1442 = vsub.s32 0, %v1441
  %v1443 = vrot.slane %v110, %v1442
  %v1444 = vlaneseq
  %v1445 = vshrl.u32 %v1444, 7
  %v1446 = vsub.s32 0, %v1445
  %v1447 = vrot.slane %v111, %v1446
  %v1448 = vlaneseq
  %v1449 = vshrl.u32 %v1448, 7
  %v1450 = vsub.s32 0, %v1449
  %v1451 = vrot.slane %v112, %v1450
  %v1452 = vlaneseq
  %v1453 = vshrl.u32 %v1452, 7
  %v1454 = vsub.s32 0, %v1453
  %v1455 = vrot.slane %v113, %v1454
  %v1456 = vlaneseq
  %v1457 = vshrl.u32 %v1456, 7
  %v1458 = vsub.s32 0, %v1457
  %v1459 = vrot.slane %v114, %v1458
  %v1460 = vlaneseq
  %v1461 = vshrl.u32 %v1460, 7
  %v1462 = vsub.s32 0, %v1461
  %v1463 = vrot.slane %v115, %v1462
  %v1464 = vlaneseq
  %v1465 = vshrl.u32 %v1464, 7
  %v1466 = vsub.s32 0, %v1465
  %v1467 = vrot.slane %v116, %v1466
  %v1468 = vlaneseq
  %v1469 = vshrl.u32 %v1468, 7
  %v1470 = vsub.s32 0, %v1469
  %v1471 = vrot.slane %v117, %v1470
  %v1472 = vlaneseq
  %v1473 = vshrl.u32 %v1472, 7
  %v1474 = vsub.s32 0, %v1473
  %v1475 = vrot.slane %v118, %v1474
  %v1476 = vlaneseq
  %v1477 = vshrl.u32 %v1476, 7
  %v1478 = vsub.s32 0, %v1477
  %v1479 = vrot.slane %v119, %v1478
  %v1480 = vlaneseq
  %v1481 = vshrl.u32 %v1480, 7
  %v1482 = vsub.s32 0, %v1481
  %v1483 = vrot.slane %v120, %v1482
  %v1484 = vlaneseq
  %v1485 = vshrl.u32 %v1484, 7
  %v1486 = vsub.s32 0, %v1485
  %v1487 = vrot.slane %v121, %v1486
  %v1488 = vlaneseq
  %v1489 = vshrl.u32 %v1488, 7
  %v1490 = vsub.s32 0, %v1489
  %v1491 = vrot.slane %v122, %v1490
  %v1492 = vlaneseq
  %v1493 = vshrl.u32 %v1492, 7
  %v1494 = vsub.s32 0, %v1493
  %v1495 = vrot.slane %v123, %v1494
  %v1496 = vlaneseq
  %v1497 = vshrl.u32 %v1496, 7
  %v1498 = vsub.s32 0, %v1497
  %v1499 = vrot.slane %v124, %v1498
  %v1500 = vlaneseq
  %v1501 = vshrl.u32 %v1500, 7
  %v1502 = vsub.s32 0, %v1501
  %v1503 = vrot.slane %v125, %v1502
  %v1504 = vlaneseq
  %v1505 = vshrl.u32 %v1504, 7
  %v1506 = vsub.s32 0, %v1505
  %v1507 = vrot.slane %v126, %v1506
  %v1508 = vlaneseq
  %v1509 = vshrl.u32 %v1508, 7
  %v1510 = vsub.s32 0, %v1509
  %v1511 = vrot.slane %v127, %v1510
  %v1512 = vlaneseq
  %v1513 = vshrl.u32 %v1512, 7
  %v1514 = vsub.s32 0, %v1513
  %v1515 = vrot.slane %v128, %v1514
  %v1516 = vlaneseq
  %v1517 = vshrl.u32 %v1516, 7
  %v1518 = vsub.s32 0, %v1517
  %v1519 = vrot.slane %v129, %v1518
  %v1520 = vlaneseq
  %v1521 = vshrl.u32 %v1520, 7
  %v1522 = vsub.s32 0, %v1521
  %v1523 = vrot.slane %v130, %v1522
  %v1524 = vlaneseq
  %v1525 = vshrl.u32 %v1524, 7
  %v1526 = vsub.s32 0, %v1525
  %v1527 = vrot.slane %v131, %v1526
  %v1528 = vlaneseq
  %v1529 = vshrl.u32 %v1528, 7
  %v1530 = vsub.s32 0, %v1529
  %v1531 = vrot.slane %v132, %v1530
  %v1532 = vlaneseq
  %v1533 = vshrl.u32 %v1532, 7
  %v1534 = vsub.s32 0, %v1533
  %v1535 = vrot.slane %v133, %v1534
  %v1536 = vlaneseq
  %v1537 = vshrl.u32 %v1536, 7
  %v1538 = vsub.s32 0, %v1537
  %v1539 = vrot.slane %v134, %v1538
  %v1540 = vlaneseq
  %v1541 = vshrl.u32 %v1540, 7
  %v1542 = vsub.s32 0, %v1541
  %v1543 = vrot.slane %v135, %v1542
  %v1544 = vlaneseq
  %v1545 = vshrl.u32 %v1544, 7
  %v1546 = vsub.s32 0, %v1545
  %v1547 = vrot.slane %v136, %v1546
  %v1548 = vlaneseq
  %v1549 = vshrl.u32 %v1548, 7
  %v1550 = vsub.s32 0, %v1549
  %v1551 = vrot.slane %v137, %v1550
  %v1552 = vlaneseq
  %v1553 = vshrl.u32 %v1552, 7
  %v1554 = vsub.s32 0, %v1553
  %v1555 = vrot.slane %v138, %v1554
  %v1556 = vlaneseq
  %v1557 = vshrl.u32 %v1556, 7
  %v1558 = vsub.s32 0, %v1557
  %v1559 = vrot.slane %v139, %v1558
  %v1560 = vlaneseq
  %v1561 = vshrl.u32 %v1560, 7
  %v1562 = vsub.s32 0, %v1561
  %v1563 = vrot.slane %v140, %v1562
  %v1564 = vlaneseq
  %v1565 = vshrl.u32 %v1564, 7
  %v1566 = vsub.s32 0, %v1565
  %v1567 = vrot.slane %v141, %v1566
  %v1568 = vlaneseq
  %v1569 = vshrl.u32 %v1568, 7
  %v1570 = vsub.s32 0, %v1569
  %v1571 = vrot.slane %v142, %v1570
  %v1572 = vlaneseq
  %v1573 = vshrl.u32 %v1572, 7
  %v1574 = vsub.s32 0, %v1573
  %v1575 = vrot.slane %v143, %v1574
  %v1576 = vlaneseq
  %v1577 = vshrl.u32 %v1576, 7
  %v1578 = vsub.s32 0, %v1577
  %v1579 = vrot.slane %v144, %v1578
  %v1580 = vlaneseq
  %v1581 = vshrl.u32 %v1580, 7
  %v1582 = vsub.s32 0, %v1581
  %v1583 = vrot.slane %v145, %v1582
  %v1584 = vlaneseq
  %v1585 = vshrl.u32 %v1584, 7
  %v1586 = vsub.s32 0, %v1585
  %v1587 = vrot.slane %v146, %v1586
  %v1588 = vlaneseq
  %v1589 = vshrl.u32 %v1588, 7
  %v1590 = vsub.s32 0, %v1589
  %v1591 = vrot.slane %v147, %v1590
  %v1592 = vlaneseq
  %v1593 = vshrl.u32 %v1592, 7
  %v1594 = vsub.s32 0, %v1593
  %v1595 = vrot.slane %v148, %v1594
  %v1596 = vlaneseq
  %v1597 = vshrl.u32 %v1596, 7
  %v1598 = vsub.s32 0, %v1597
  %v1599 = vrot.slane %v149, %v1598
  %v1600 = vlaneseq
  %v1601 = vshrl.u32 %v1600, 7
  %v1602 = vsub.s32 0, %v1601
  %v1603 = vrot.slane %v150, %v1602
  %v1604 = vlaneseq
  %v1605 = vshrl.u32 %v1604, 7
  %v1606 = vsub.s32 0, %v1605
  %v1607 = vrot.slane %v151, %v1606
  %v1608 = vlaneseq
  %v1609 = vshrl.u32 %v1608, 7
  %v1610 = vsub.s32 0, %v1609
  %v1611 = vrot.slane %v152, %v1610
  %v1612 = vlaneseq
  %v1613 = vshrl.u32 %v1612, 7
  %v1614 = vsub.s32 0, %v1613
  %v1615 = vrot.slane %v153, %v1614
  %v1616 = vlaneseq
  %v1617 = vshrl.u32 %v1616, 7
  %v1618 = vsub.s32 0, %v1617
  %v1619 = vrot.slane %v154, %v1618
  %v1620 = vlaneseq
  %v1621 = vshrl.u32 %v1620, 7
  %v1622 = vsub.s32 0, %v1621
  %v1623 = vrot.slane %v155, %v1622
  %v1624 = vlaneseq
  %v1625 = vshrl.u32 %v1624, 7
  %v1626 = vsub.s32 0, %v1625
  %v1627 = vrot.slane %v156, %v1626
  %v1628 = vlaneseq
  %v1629 = vshrl.u32 %v1628, 7
  %v1630 = vsub.s32 0, %v1629
  %v1631 = vrot.slane %v157, %v1630
  %v1632 = vlaneseq
  %v1633 = vshrl.u32 %v1632, 7
  %v1634 = vsub.s32 0, %v1633
  %v1635 = vrot.slane %v158, %v1634
  %v1636 = vlaneseq
  %v1637 = vshrl.u32 %v1636, 7
  %v1638 = vsub.s32 0, %v1637
  %v1639 = vrot.slane %v159, %v1638
  %v1640 = vlaneseq
  %v1641 = vshrl.u32 %v1640, 7
  %v1642 = vsub.s32 0, %v1641
  %v1643 = vrot.slane %v160, %v1642
  %v1644 = vlaneseq
  %v1645 = vshrl.u32 %v1644, 7
  %v1646 = vsub.s32 0, %v1645
  %v1647 = vrot.slane %v161, %v1646
  %v1648 = vlaneseq
  %v1649 = vshrl.u32 %v1648, 7
  %v1650 = vsub.s32 0, %v1649
  %v1651 = vrot.slane %v162, %v1650
  %v1652 = vlaneseq
  %v1653 = vshrl.u32 %v1652, 7
  %v1654 = vsub.s32 0, %v1653
  %v1655 = vrot.slane %v163, %v1654
  %v1656 = vlaneseq
  %v1657 = vshrl.u32 %v1656, 7
  %v1658 = vsub.s32 0, %v1657
  %v1659 = vrot.slane %v164, %v1658
  %v1660 = vlaneseq
  %v1661 = vshrl.u32 %v1660, 7
  %v1662 = vsub.s32 0, %v1661
  %v1663 = vrot.slane %v165, %v1662
  %v1664 = vlaneseq
  %v1665 = vshrl.u32 %v1664, 7
  %v1666 = vsub.s32 0, %v1665
  %v1667 = vrot.slane %v166, %v1666
  %v1668 = vlaneseq
  %v1669 = vshrl.u32 %v1668, 7
  %v1670 = vsub.s32 0, %v1669
  %v1671 = vrot.slane %v167, %v1670
  %v1672 = vlaneseq
  %v1673 = vshrl.u32 %v1672, 7
  %v1674 = vsub.s32 0, %v1673
  %v1675 = vrot.slane %v168, %v1674
  %v1676 = vlaneseq
  %v1677 = vshrl.u32 %v1676, 7
  %v1678 = vsub.s32 0, %v1677
  %v1679 = vrot.slane %v169, %v1678
  %v1680 = vlaneseq
  %v1681 = vshrl.u32 %v1680, 7
  %v1682 = vsub.s32 0, %v1681
  %v1683 = vrot.slane %v170, %v1682
  %v1684 = vlaneseq
  %v1685 = vshrl.u32 %v1684, 7
  %v1686 = vsub.s32 0, %v1685
  %v1687 = vrot.slane %v171, %v1686
  %v1688 = vlaneseq
  %v1689 = vshrl.u32 %v1688, 7
  %v1690 = vsub.s32 0, %v1689
  %v1691 = vrot.slane %v172, %v1690
  %v1692 = vlaneseq
  %v1693 = vshrl.u32 %v1692, 7
  %v1694 = vsub.s32 0, %v1693
  %v1695 = vrot.slane %v173, %v1694
  %v1696 = vlaneseq
  %v1697 = vshrl.u32 %v1696, 7
  %v1698 = vsub.s32 0, %v1697
  %v1699 = vrot.slane %v174, %v1698
  %v1700 = vlaneseq
  %v1701 = vshrl.u32 %v1700, 7
  %v1702 = vsub.s32 0, %v1701
  %v1703 = vrot.slane %v175, %v1702
  %v1704 = vlaneseq
  %v1705 = vshrl.u32 %v1704, 7
  %v1706 = vsub.s32 0, %v1705
  %v1707 = vrot.slane %v176, %v1706
  %v1708 = vlaneseq
  %v1709 = vshrl.u32 %v1708, 7
  %v1710 = vsub.s32 0, %v1709
  %v1711 = vrot.slane %v177, %v1710
  %v1712 = vlaneseq
  %v1713 = vshrl.u32 %v1712, 7
  %v1714 = vsub.s32 0, %v1713
  %v1715 = vrot.slane %v178, %v1714
  %v1716 = vlaneseq
  %v1717 = vshrl.u32 %v1716, 7
  %v1718 = vsub.s32 0, %v1717
  %v1719 = vrot.slane %v179, %v1718
  %v1720 = vlaneseq
  %v1721 = vshrl.u32 %v1720, 7
  %v1722 = vsub.s32 0, %v1721
  %v1723 = vrot.slane %v180, %v1722
  %v1724 = vlaneseq
  %v1725 = vshrl.u32 %v1724, 7
  %v1726 = vsub.s32 0, %v1725
  %v1727 = vrot.slane %v181, %v1726
  %v1728 = vlaneseq
  %v1729 = vshrl.u32 %v1728, 7
  %v1730 = vsub.s32 0, %v1729
  %v1731 = vrot.slane %v182, %v1730
  %v1732 = vlaneseq
  %v1733 = vshrl.u32 %v1732, 7
  %v1734 = vsub.s32 0, %v1733
  %v1735 = vrot.slane %v183, %v1734
  %v1736 = vlaneseq
  %v1737 = vshrl.u32 %v1736, 7
  %v1738 = vsub.s32 0, %v1737
  %v1739 = vrot.slane %v184, %v1738
  %v1740 = vlaneseq
  %v1741 = vshrl.u32 %v1740, 7
  %v1742 = vsub.s32 0, %v1741
  %v1743 = vrot.slane %v185, %v1742
  %v1744 = vlaneseq
  %v1745 = vshrl.u32 %v1744, 7
  %v1746 = vsub.s32 0, %v1745
  %v1747 = vrot.slane %v186, %v1746
  %v1748 = vlaneseq
  %v1749 = vshrl.u32 %v1748, 7
  %v1750 = vsub.s32 0, %v1749
  %v1751 = vrot.slane %v187, %v1750
  %v1752 = vlaneseq
  %v1753 = vshrl.u32 %v1752, 7
  %v1754 = vsub.s32 0, %v1753
  %v1755 = vrot.slane %v188, %v1754
  %v1756 = vlaneseq
  %v1757 = vshrl.u32 %v1756, 7
  %v1758 = vsub.s32 0, %v1757
  %v1759 = vrot.slane %v189, %v1758
  %v1760 = vlaneseq
  %v1761 = vshrl.u32 %v1760, 7
  %v1762 = vsub.s32 0, %v1761
  %v1763 = vrot.slane %v190, %v1762
  %v1764 = vlaneseq
  %v1765 = vshrl.u32 %v1764, 7
  %v1766 = vsub.s32 0, %v1765
  %v1767 = vrot.slane %v191, %v1766
  %v1768 = vlaneseq
  %v1769 = vshrl.u32 %v1768, 7
  %v1770 = vsub.s32 0, %v1769
  %v1771 = vrot.slane %v192, %v1770
  %v1772 = vlaneseq
  %v1773 = vshrl.u32 %v1772, 7
  %v1774 = vsub.s32 0, %v1773
  %v1775 = vrot.slane %v193, %v1774
  %v1776 = vlaneseq
  %v1777 = vshrl.u32 %v1776, 7
  %v1778 = vsub.s32 0, %v1777
  %v1779 = vrot.slane %v194, %v1778
  %v1780 = vlaneseq
  %v1781 = vshrl.u32 %v1780, 7
  %v1782 = vsub.s32 0, %v1781
  %v1783 = vrot.slane %v195, %v1782
  %v1784 = vlaneseq
  %v1785 = vshrl.u32 %v1784, 7
  %v1786 = vsub.s32 0, %v1785
  %v1787 = vrot.slane %v196, %v1786
  %v1788 = vlaneseq
  %v1789 = vshrl.u32 %v1788, 7
  %v1790 = vsub.s32 0, %v1789
  %v1791 = vrot.slane %v197, %v1790
  %v1792 = vlaneseq
  %v1793 = vshrl.u32 %v1792, 7
  %v1794 = vsub.s32 0, %v1793
  %v1795 = vrot.slane %v198, %v1794
  %v1796 = vlaneseq
  %v1797 = vshrl.u32 %v1796, 7
  %v1798 = vsub.s32 0, %v1797
  %v1799 = vrot.slane %v199, %v1798
  %v1800 = vlaneseq
  %v1801 = vshrl.u32 %v1800, 7
  %v1802 = vsub.s32 0, %v1801
  %v1803 = vrot.slane %v200, %v1802
  %v1804 = vlaneseq
  %v1805 = vshrl.u32 %v1804, 7
  %v1806 = vsub.s32 0, %v1805
  %v1807 = vrot.slane %v201, %v1806
  %v1808 = vlaneseq
  %v1809 = vshrl.u32 %v1808, 7
  %v1810 = vsub.s32 0, %v1809
  %v1811 = vrot.slane %v202, %v1810
  %v1812 = vlaneseq
  %v1813 = vshrl.u32 %v1812, 7
  %v1814 = vsub.s32 0, %v1813
  %v1815 = vrot.slane %v203, %v1814
  %v1816 = vlaneseq
  %v1817 = vshrl.u32 %v1816, 7
  %v1818 = vsub.s32 0, %v1817
  %v1819 = vrot.slane %v204, %v1818
  %v1820 = vlaneseq
  %v1821 = vshrl.u32 %v1820, 7
  %v1822 = vsub.s32 0, %v1821
  %v1823 = vrot.slane %v205, %v1822
  %v1824 = vlaneseq
  %v1825 = vshrl.u32 %v1824, 7
  %v1826 = vsub.s32 0, %v1825
  %v1827 = vrot.slane %v206, %v1826
  %v1828 = vlaneseq
  %v1829 = vshrl.u32 %v1828, 7
  %v1830 = vsub.s32 0, %v1829
  %v1831 = vrot.slane %v207, %v1830
  %v1832 = vlaneseq
  %v1833 = vshrl.u32 %v1832, 7
  %v1834 = vsub.s32 0, %v1833
  %v1835 = vrot.slane %v208, %v1834
  %v1836 = vlaneseq
  %v1837 = vshrl.u32 %v1836, 7
  %v1838 = vsub.s32 0, %v1837
  %v1839 = vrot.slane %v209, %v1838
  %v1840 = vlaneseq
  %v1841 = vshrl.u32 %v1840, 7
  %v1842 = vsub.s32 0, %v1841
  %v1843 = vrot.slane %v210, %v1842
  %v1844 = vlaneseq
  %v1845 = vshrl.u32 %v1844, 7
  %v1846 = vsub.s32 0, %v1845
  %v1847 = vrot.slane %v211, %v1846
  %v1848 = vlaneseq
  %v1849 = vshrl.u32 %v1848, 7
  %v1850 = vsub.s32 0, %v1849
  %v1851 = vrot.slane %v212, %v1850
  %v1852 = vlaneseq
  %v1853 = vshrl.u32 %v1852, 7
  %v1854 = vsub.s32 0, %v1853
  %v1855 = vrot.slane %v213, %v1854
  %v1856 = vlaneseq
  %v1857 = vshrl.u32 %v1856, 7
  %v1858 = vsub.s32 0, %v1857
  %v1859 = vrot.slane %v214, %v1858
  %v1860 = vlaneseq
  %v1861 = vshrl.u32 %v1860, 7
  %v1862 = vsub.s32 0, %v1861
  %v1863 = vrot.slane %v215, %v1862
  %v1864 = vlaneseq
  %v1865 = vshrl.u32 %v1864, 7
  %v1866 = vsub.s32 0, %v1865
  %v1867 = vrot.slane %v216, %v1866
  %v1868 = vlaneseq
  %v1869 = vshrl.u32 %v1868, 7
  %v1870 = vsub.s32 0, %v1869
  %v1871 = vrot.slane %v217, %v1870
  %v1872 = vlaneseq
  %v1873 = vshrl.u32 %v1872, 7
  %v1874 = vsub.s32 0, %v1873
  %v1875 = vrot.slane %v218, %v1874
  %v1876 = vlaneseq
  %v1877 = vshrl.u32 %v1876, 7
  %v1878 = vsub.s32 0, %v1877
  %v1879 = vrot.slane %v219, %v1878
  %v1880 = vlaneseq
  %v1881 = vshrl.u32 %v1880, 7
  %v1882 = vsub.s32 0, %v1881
  %v1883 = vrot.slane %v220, %v1882
  %v1884 = vlaneseq
  %v1885 = vshrl.u32 %v1884, 7
  %v1886 = vsub.s32 0, %v1885
  %v1887 = vrot.slane %v221, %v1886
  %v1888 = vlaneseq
  %v1889 = vshrl.u32 %v1888, 7
  %v1890 = vsub.s32 0, %v1889
  %v1891 = vrot.slane %v222, %v1890
  %v1892 = vlaneseq
  %v1893 = vshrl.u32 %v1892, 7
  %v1894 = vsub.s32 0, %v1893
  %v1895 = vrot.slane %v223, %v1894
  %v1896 = vlaneseq
  %v1897 = vshrl.u32 %v1896, 7
  %v1898 = vsub.s32 0, %v1897
  %v1899 = vrot.slane %v224, %v1898
  %v1900 = vlaneseq
  %v1901 = vshrl.u32 %v1900, 7
  %v1902 = vsub.s32 0, %v1901
  %v1903 = vrot.slane %v225, %v1902
  %v1904 = vlaneseq
  %v1905 = vshrl.u32 %v1904, 7
  %v1906 = vsub.s32 0, %v1905
  %v1907 = vrot.slane %v226, %v1906
  %v1908 = vlaneseq
  %v1909 = vshrl.u32 %v1908, 7
  %v1910 = vsub.s32 0, %v1909
  %v1911 = vrot.slane %v227, %v1910
  %v1912 = vlaneseq
  %v1913 = vshrl.u32 %v1912, 7
  %v1914 = vsub.s32 0, %v1913
  %v1915 = vrot.slane %v228, %v1914
  %v1916 = vlaneseq
  %v1917 = vshrl.u32 %v1916, 7
  %v1918 = vsub.s32 0, %v1917
  %v1919 = vrot.slane %v229, %v1918
  %v1920 = vlaneseq
  %v1921 = vshrl.u32 %v1920, 7
  %v1922 = vsub.s32 0, %v1921
  %v1923 = vrot.slane %v230, %v1922
  %v1924 = vlaneseq
  %v1925 = vshrl.u32 %v1924, 7
  %v1926 = vsub.s32 0, %v1925
  %v1927 = vrot.slane %v231, %v1926
  %v1928 = vlaneseq
  %v1929 = vshrl.u32 %v1928, 7
  %v1930 = vsub.s32 0, %v1929
  %v1931 = vrot.slane %v232, %v1930
  %v1932 = vlaneseq
  %v1933 = vshrl.u32 %v1932, 7
  %v1934 = vsub.s32 0, %v1933
  %v1935 = vrot.slane %v233, %v1934
  %v1936 = vlaneseq
  %v1937 = vshrl.u32 %v1936, 7
  %v1938 = vsub.s32 0, %v1937
  %v1939 = vrot.slane %v234, %v1938
  %v1940 = vlaneseq
  %v1941 = vshrl.u32 %v1940, 7
  %v1942 = vsub.s32 0, %v1941
  %v1943 = vrot.slane %v235, %v1942
  %v1944 = vlaneseq
  %v1945 = vshrl.u32 %v1944, 7
  %v1946 = vsub.s32 0, %v1945
  %v1947 = vrot.slane %v236, %v1946
  %v1948 = vlaneseq
  %v1949 = vshrl.u32 %v1948, 7
  %v1950 = vsub.s32 0, %v1949
  %v1951 = vrot.slane %v237, %v1950
  %v1952 = vlaneseq
  %v1953 = vshrl.u32 %v1952, 7
  %v1954 = vsub.s32 0, %v1953
  %v1955 = vrot.slane %v238, %v1954
  %v1956 = vlaneseq
  %v1957 = vshrl.u32 %v1956, 7
  %v1958 = vsub.s32 0, %v1957
  %v1959 = vrot.slane %v239, %v1958
  %v1960 = vlaneseq
  %v1961 = vshrl.u32 %v1960, 7
  %v1962 = vsub.s32 0, %v1961
  %v1963 = vrot.slane %v240, %v1962
  %v1964 = vlaneseq
  %v1965 = vshrl.u32 %v1964, 7
  %v1966 = vsub.s32 0, %v1965
  %v1967 = vrot.slane %v241, %v1966
  %v1968 = vlaneseq
  %v1969 = vshrl.u32 %v1968, 7
  %v1970 = vsub.s32 0, %v1969
  %v1971 = vrot.slane %v242, %v1970
  %v1972 = vlaneseq
  %v1973 = vshrl.u32 %v1972, 7
  %v1974 = vsub.s32 0, %v1973
  %v1975 = vrot.slane %v243, %v1974
  %v1976 = vlaneseq
  %v1977 = vshrl.u32 %v1976, 7
  %v1978 = vsub.s32 0, %v1977
  %v1979 = vrot.slane %v244, %v1978
  %v1980 = vlaneseq
  %v1981 = vshrl.u32 %v1980, 7
  %v1982 = vsub.s32 0, %v1981
  %v1983 = vrot.slane %v245, %v1982
  %v1984 = vlaneseq
  %v1985 = vshrl.u32 %v1984, 7
  %v1986 = vsub.s32 0, %v1985
  %v1987 = vrot.slane %v246, %v1986
  %v1988 = vlaneseq
  %v1989 = vshrl.u32 %v1988, 7
  %v1990 = vsub.s32 0, %v1989
  %v1991 = vrot.slane %v247, %v1990
  %v1992 = vlaneseq
  %v1993 = vshrl.u32 %v1992, 7
  %v1994 = vsub.s32 0, %v1993
  %v1995 = vrot.slane %v248, %v1994
  %v1996 = vlaneseq
  %v1997 = vshrl.u32 %v1996, 7
  %v1998 = vsub.s32 0, %v1997
  %v1999 = vrot.slane %v249, %v1998
  %v2000 = vlaneseq
  %v2001 = vshrl.u32 %v2000, 7
  %v2002 = vsub.s32 0, %v2001
  %v2003 = vrot.slane %v250, %v2002
  %v2004 = vlaneseq
  %v2005 = vshrl.u32 %v2004, 7
  %v2006 = vsub.s32 0, %v2005
  %v2007 = vrot.slane %v251, %v2006
  %v2008 = vlaneseq
  %v2009 = vshrl.u32 %v2008, 7
  %v2010 = vsub.s32 0, %v2009
  %v2011 = vrot.slane %v252, %v2010
  %v2012 = vlaneseq
  %v2013 = vshrl.u32 %v2012, 7
  %v2014 = vsub.s32 0, %v2013
  %v2015 = vrot.slane %v253, %v2014
  %v2016 = vlaneseq
  %v2017 = vshrl.u32 %v2016, 7
  %v2018 = vsub.s32 0, %v2017
  %v2019 = vrot.slane %v254, %v2018
  %v2020 = vlaneseq
  %v2021 = vshrl.u32 %v2020, 7
  %v2022 = vsub.s32 0, %v2021
  %v2023 = vrot.slane %v255, %v2022
  %v2024 = vlaneseq
  %v2025 = vshrl.u32 %v2024, 7
  %v2026 = vsub.s32 0, %v2025
  %v2027 = vrot.slane %v256, %v2026
  %v2028 = vlaneseq
  %v2029 = vshrl.u32 %v2028, 7
  %v2030 = vsub.s32 0, %v2029
  %v2031 = vrot.slane %v257, %v2030
  %v2032 = vlaneseq
  %v2033 = vshrl.u32 %v2032, 7
  %v2034 = vsub.s32 0, %v2033
  %v2035 = vrot.slane %v258, %v2034
  %v2036 = vlaneseq
  %v2037 = vshrl.u32 %v2036, 7
  %v2038 = vsub.s32 0, %v2037
  %v2039 = vrot.slane %v259, %v2038
  %v2040 = vlaneseq
  %v2041 = vshrl.u32 %v2040, 7
  %v2042 = vsub.s32 0, %v2041
  %v2043 = vrot.slane %v260, %v2042
  %v2044 = vlaneseq
  %v2045 = vshrl.u32 %v2044, 7
  %v2046 = vsub.s32 0, %v2045
  %v2047 = vrot.slane %v261, %v2046
  %v2048 = vlaneseq
  %v2049 = vshrl.u32 %v2048, 7
  %v2050 = vsub.s32 0, %v2049
  %v2051 = vrot.slane %v262, %v2050
  %v2052 = vlaneseq
  %v2053 = vshrl.u32 %v2052, 7
  %v2054 = vsub.s32 0, %v2053
  %v2055 = vrot.slane %v263, %v2054
  %v2056 = vlaneseq
  %v2057 = vshrl.u32 %v2056, 7
  %v2058 = vsub.s32 0, %v2057
  %v2059 = vrot.slane %v264, %v2058
  %v2060 = vlaneseq
  %v2061 = vshrl.u32 %v2060, 7
  %v2062 = vsub.s32 0, %v2061
  %v2063 = vrot.slane %v265, %v2062
  %v2064 = vlaneseq
  %v2065 = vshrl.u32 %v2064, 7
  %v2066 = vsub.s32 0, %v2065
  %v2067 = vrot.slane %v266, %v2066
  %v2068 = vlaneseq
  %v2069 = vshrl.u32 %v2068, 7
  %v2070 = vsub.s32 0, %v2069
  %v2071 = vrot.slane %v267, %v2070
  %v2072 = vlaneseq
  %v2073 = vshrl.u32 %v2072, 7
  %v2074 = vsub.s32 0, %v2073
  %v2075 = vrot.slane %v268, %v2074
  %v2076 = vlaneseq
  %v2077 = vshrl.u32 %v2076, 7
  %v2078 = vsub.s32 0, %v2077
  %v2079 = vrot.slane %v269, %v2078
  %v2080 = vlaneseq
  %v2081 = vshrl.u32 %v2080, 7
  %v2082 = vsub.s32 0, %v2081
  %v2083 = vrot.slane %v270, %v2082
  %v2084 = vlaneseq
  %v2085 = vshrl.u32 %v2084, 7
  %v2086 = vsub.s32 0, %v2085
  %v2087 = vrot.slane %v271, %v2086
  %v2088 = vlaneseq
  %v2089 = vshrl.u32 %v2088, 7
  %v2090 = vsub.s32 0, %v2089
  %v2091 = vrot.slane %v272, %v2090
  %v2092 = vlaneseq
  %v2093 = vshrl.u32 %v2092, 7
  %v2094 = vsub.s32 0, %v2093
  %v2095 = vrot.slane %v273, %v2094
  %v2096 = vlaneseq
  %v2097 = vshrl.u32 %v2096, 7
  %v2098 = vsub.s32 0, %v2097
  %v2099 = vrot.slane %v274, %v2098
  %v2100 = vlaneseq
  %v2101 = vshrl.u32 %v2100, 7
  %v2102 = vsub.s32 0, %v2101
  %v2103 = vrot.slane %v275, %v2102
  %v2104 = vlaneseq
  %v2105 = vshrl.u32 %v2104, 7
  %v2106 = vsub.s32 0, %v2105
  %v2107 = vrot.slane %v276, %v2106
  %v2108 = vlaneseq
  %v2109 = vshrl.u32 %v2108, 7
  %v2110 = vsub.s32 0, %v2109
  %v2111 = vrot.slane %v277, %v2110
  %v2112 = vlaneseq
  %v2113 = vshrl.u32 %v2112, 7
  %v2114 = vsub.s32 0, %v2113
  %v2115 = vrot.slane %v278, %v2114
  %v2116 = vlaneseq
  %v2117 = vshrl.u32 %v2116, 7
  %v2118 = vsub.s32 0, %v2117
  %v2119 = vrot.slane %v279, %v2118
  %v2120 = vlaneseq
  %v2121 = vshrl.u32 %v2120, 7
  %v2122 = vsub.s32 0, %v2121
  %v2123 = vrot.slane %v280, %v2122
  %v2124 = vlaneseq
  %v2125 = vshrl.u32 %v2124, 7
  %v2126 = vsub.s32 0, %v2125
  %v2127 = vrot.slane %v281, %v2126
  %v2128 = vlaneseq
  %v2129 = vshrl.u32 %v2128, 7
  %v2130 = vsub.s32 0, %v2129
  %v2131 = vrot.slane %v282, %v2130
  %v2132 = vlaneseq
  %v2133 = vshrl.u32 %v2132, 7
  %v2134 = vsub.s32 0, %v2133
  %v2135 = vrot.slane %v283, %v2134
  %v2136 = vlaneseq
  %v2137 = vshrl.u32 %v2136, 7
  %v2138 = vsub.s32 0, %v2137
  %v2139 = vrot.slane %v284, %v2138
  %v2140 = vlaneseq
  %v2141 = vshrl.u32 %v2140, 7
  %v2142 = vsub.s32 0, %v2141
  %v2143 = vrot.slane %v285, %v2142
  %v2144 = vlaneseq
  %v2145 = vshrl.u32 %v2144, 7
  %v2146 = vsub.s32 0, %v2145
  %v2147 = vrot.slane %v286, %v2146
  %v2148 = vlaneseq
  %v2149 = vshrl.u32 %v2148, 7
  %v2150 = vsub.s32 0, %v2149
  %v2151 = vrot.slane %v287, %v2150
  %v2152 = vlaneseq
  %v2153 = vshrl.u32 %v2152, 7
  %v2154 = vsub.s32 0, %v2153
  %v2155 = vrot.slane %v288, %v2154
  %v2156 = vlaneseq
  %v2157 = vshrl.u32 %v2156, 7
  %v2158 = vsub.s32 0, %v2157
  %v2159 = vrot.slane %v289, %v2158
  %v2160 = vlaneseq
  %v2161 = vshrl.u32 %v2160, 7
  %v2162 = vsub.s32 0, %v2161
  %v2163 = vrot.slane %v290, %v2162
  %v2164 = vlaneseq
  %v2165 = vshrl.u32 %v2164, 7
  %v2166 = vsub.s32 0, %v2165
  %v2167 = vrot.slane %v291, %v2166
  %v2168 = vlaneseq
  %v2169 = vshrl.u32 %v2168, 7
  %v2170 = vsub.s32 0, %v2169
  %v2171 = vrot.slane %v292, %v2170
  %v2172 = vlaneseq
  %v2173 = vshrl.u32 %v2172, 7
  %v2174 = vsub.s32 0, %v2173
  %v2175 = vrot.slane %v293, %v2174
  %v2176 = vlaneseq
  %v2177 = vshrl.u32 %v2176, 7
  %v2178 = vsub.s32 0, %v2177
  %v2179 = vrot.slane %v294, %v2178
  %v2180 = vlaneseq
  %v2181 = vshrl.u32 %v2180, 7
  %v2182 = vsub.s32 0, %v2181
  %v2183 = vrot.slane %v295, %v2182
  %v2184 = vlaneseq
  %v2185 = vshrl.u32 %v2184, 7
  %v2186 = vsub.s32 0, %v2185
  %v2187 = vrot.slane %v296, %v2186
  %v2188 = vlaneseq
  %v2189 = vshrl.u32 %v2188, 7
  %v2190 = vsub.s32 0, %v2189
  %v2191 = vrot.slane %v297, %v2190
  %v2192 = vlaneseq
  %v2193 = vshrl.u32 %v2192, 7
  %v2194 = vsub.s32 0, %v2193
  %v2195 = vrot.slane %v298, %v2194
  %v2196 = vlaneseq
  %v2197 = vshrl.u32 %v2196, 7
  %v2198 = vsub.s32 0, %v2197
  %v2199 = vrot.slane %v299, %v2198
  %v2200 = vlaneseq
  %v2201 = vshrl.u32 %v2200, 7
  %v2202 = vsub.s32 0, %v2201
  %v2203 = vrot.slane %v300, %v2202
  %v2204 = vlaneseq
  %v2205 = vshrl.u32 %v2204, 7
  %v2206 = vsub.s32 0, %v2205
  %v2207 = vrot.slane %v301, %v2206
  %v2208 = vlaneseq
  %v2209 = vshrl.u32 %v2208, 7
  %v2210 = vsub.s32 0, %v2209
  %v2211 = vrot.slane %v302, %v2210
  %v2212 = vlaneseq
  %v2213 = vshrl.u32 %v2212, 7
  %v2214 = vsub.s32 0, %v2213
  %v2215 = vrot.slane %v303, %v2214
  %v2216 = vlaneseq
  %v2217 = vshrl.u32 %v2216, 7
  %v2218 = vsub.s32 0, %v2217
  %v2219 = vrot.slane %v304, %v2218
  %v2220 = vlaneseq
  %v2221 = vshrl.u32 %v2220, 7
  %v2222 = vsub.s32 0, %v2221
  %v2223 = vrot.slane %v305, %v2222
  %v2224 = vlaneseq
  %v2225 = vshrl.u32 %v2224, 7
  %v2226 = vsub.s32 0, %v2225
  %v2227 = vrot.slane %v306, %v2226
  %v2228 = vlaneseq
  %v2229 = vshrl.u32 %v2228, 7
  %v2230 = vsub.s32 0, %v2229
  %v2231 = vrot.slane %v307, %v2230
  %v2232 = vlaneseq
  %v2233 = vshrl.u32 %v2232, 7
  %v2234 = vsub.s32 0, %v2233
  %v2235 = vrot.slane %v308, %v2234
  %v2236 = vlaneseq
  %v2237 = vshrl.u32 %v2236, 7
  %v2238 = vsub.s32 0, %v2237
  %v2239 = vrot.slane %v309, %v2238
  %v2240 = vlaneseq
  %v2241 = vshrl.u32 %v2240, 7
  %v2242 = vsub.s32 0, %v2241
  %v2243 = vrot.slane %v310, %v2242
  %v2244 = vlaneseq
  %v2245 = vshrl.u32 %v2244, 7
  %v2246 = vsub.s32 0, %v2245
  %v2247 = vrot.slane %v311, %v2246
  %v2248 = vlaneseq
  %v2249 = vshrl.u32 %v2248, 7
  %v2250 = vsub.s32 0, %v2249
  %v2251 = vrot.slane %v312, %v2250
  %v2252 = vlaneseq
  %v2253 = vshrl.u32 %v2252, 7
  %v2254 = vsub.s32 0, %v2253
  %v2255 = vrot.slane %v313, %v2254
  %v2256 = vlaneseq
  %v2257 = vshrl.u32 %v2256, 7
  %v2258 = vsub.s32 0, %v2257
  %v2259 = vrot.slane %v314, %v2258
  %v2260 = vlaneseq
  %v2261 = vshrl.u32 %v2260, 7
  %v2262 = vsub.s32 0, %v2261
  %v2263 = vrot.slane %v315, %v2262
  %v2264 = vlaneseq
  %v2265 = vshrl.u32 %v2264, 7
  %v2266 = vsub.s32 0, %v2265
  %v2267 = vrot.slane %v316, %v2266
  %v2268 = vlaneseq
  %v2269 = vshrl.u32 %v2268, 7
  %v2270 = vsub.s32 0, %v2269
  %v2271 = vrot.slane %v317, %v2270
  %v2272 = vlaneseq
  %v2273 = vshrl.u32 %v2272, 7
  %v2274 = vsub.s32 0, %v2273
  %v2275 = vrot.slane %v318, %v2274
  %v2276 = vlaneseq
  %v2277 = vshrl.u32 %v2276, 7
  %v2278 = vsub.s32 0, %v2277
  %v2279 = vrot.slane %v319, %v2278
  %v2280 = vlaneseq
  %v2281 = vshrl.u32 %v2280, 7
  %v2282 = vsub.s32 0, %v2281
  %v2283 = vrot.slane %v320, %v2282
  %v2284 = vlaneseq
  %v2285 = vshrl.u32 %v2284, 7
  %v2286 = vsub.s32 0, %v2285
  %v2287 = vrot.slane %v321, %v2286
  %v2288 = vlaneseq
  %v2289 = vshrl.u32 %v2288, 7
  %v2290 = vsub.s32 0, %v2289
  %v2291 = vrot.slane %v322, %v2290
  %v2292 = vlaneseq
  %v2293 = vshrl.u32 %v2292, 7
  %v2294 = vsub.s32 0, %v2293
  %v2295 = vrot.slane %v323, %v2294
  %v2296 = vlaneseq
  %v2297 = vshrl.u32 %v2296, 7
  %v2298 = vsub.s32 0, %v2297
  %v2299 = vrot.slane %v324, %v2298
  %v2300 = vlaneseq
  %v2301 = vshrl.u32 %v2300, 7
  %v2302 = vsub.s32 0, %v2301
  %v2303 = vrot.slane %v325, %v2302
  %v2304 = vlaneseq
  %v2305 = vshrl.u32 %v2304, 7
  %v2306 = vsub.s32 0, %v2305
  %v2307 = vrot.slane %v326, %v2306
  %v2308 = vlaneseq
  %v2309 = vshrl.u32 %v2308, 7
  %v2310 = vsub.s32 0, %v2309
  %v2311 = vrot.slane %v327, %v2310
  %v2312 = vlaneseq
  %v2313 = vshrl.u32 %v2312, 7
  %v2314 = vsub.s32 0, %v2313
  %v2315 = vrot.slane %v328, %v2314
  %v2316 = vlaneseq
  %v2317 = vshrl.u32 %v2316, 7
  %v2318 = vsub.s32 0, %v2317
  %v2319 = vrot.slane %v329, %v2318
  %v2320 = vlaneseq
  %v2321 = vshrl.u32 %v2320, 7
  %v2322 = vsub.s32 0, %v2321
  %v2323 = vrot.slane %v330, %v2322
  %v2324 = vlaneseq
  %v2325 = vshrl.u32 %v2324, 7
  %v2326 = vsub.s32 0, %v2325
  %v2327 = vrot.slane %v331, %v2326
  %v2328 = vlaneseq
  %v2329 = vshrl.u32 %v2328, 7
  %v2330 = vsub.s32 0, %v2329
  %v2331 = vrot.slane %v332, %v2330
  %v2332 = vlaneseq
  %v2333 = vshrl.u32 %v2332, 7
  %v2334 = vsub.s32 0, %v2333
  %v2335 = vrot.slane %v333, %v2334
  %v2336 = vlaneseq
  %v2337 = vshrl.u32 %v2336, 7
  %v2338 = vsub.s32 0, %v2337
  %v2339 = vrot.slane %v334, %v2338
  %v2340 = vlaneseq
  %v2341 = vshrl.u32 %v2340, 7
  %v2342 = vsub.s32 0, %v2341
  %v2343 = vrot.slane %v335, %v2342
  %v2344 = vlaneseq
  %v2345 = vshrl.u32 %v2344, 7
  %v2346 = vsub.s32 0, %v2345
  %v2347 = vrot.slane %v336, %v2346
  %v2348 = vlaneseq
  %v2349 = vshrl.u32 %v2348, 7
  %v2350 = vsub.s32 0, %v2349
  %v2351 = vrot.slane %v337, %v2350
  %v2352 = vlaneseq
  %v2353 = vshrl.u32 %v2352, 7
  %v2354 = vsub.s32 0, %v2353
  %v2355 = vrot.slane %v338, %v2354
  %v2356 = vlaneseq
  %v2357 = vshrl.u32 %v2356, 7
  %v2358 = vsub.s32 0, %v2357
  %v2359 = vrot.slane %v339, %v2358
  %v2360 = vlaneseq
  %v2361 = vshrl.u32 %v2360, 7
  %v2362 = vsub.s32 0, %v2361
  %v2363 = vrot.slane %v340, %v2362
  %v2364 = vlaneseq
  %v2365 = vshrl.u32 %v2364, 7
  %v2366 = vsub.s32 0, %v2365
  %v2367 = vrot.slane %v341, %v2366
  %v2368 = vlaneseq
  %v2369 = vshrl.u32 %v2368, 7
  %v2370 = vsub.s32 0, %v2369
  %v2371 = vrot.slane %v342, %v2370
  %v2372 = vlaneseq
  %v2373 = vshrl.u32 %v2372, 7
  %v2374 = vsub.s32 0, %v2373
  %v2375 = vrot.slane %v343, %v2374
  %v2376 = vlaneseq
  %v2377 = vshrl.u32 %v2376, 7
  %v2378 = vsub.s32 0, %v2377
  %v2379 = vrot.slane %v344, %v2378
  %v2380 = vlaneseq
  %v2381 = vshrl.u32 %v2380, 7
  %v2382 = vsub.s32 0, %v2381
  %v2383 = vrot.slane %v345, %v2382
  %v2384 = vlaneseq
  %v2385 = vshrl.u32 %v2384, 7
  %v2386 = vsub.s32 0, %v2385
  %v2387 = vrot.slane %v346, %v2386
  %v2388 = vlaneseq
  %v2389 = vshrl.u32 %v2388, 7
  %v2390 = vsub.s32 0, %v2389
  %v2391 = vrot.slane %v347, %v2390
  %v2392 = vlaneseq
  %v2393 = vshrl.u32 %v2392, 7
  %v2394 = vsub.s32 0, %v2393
  %v2395 = vrot.slane %v348, %v2394
  %v2396 = vlaneseq
  %v2397 = vshrl.u32 %v2396, 7
  %v2398 = vsub.s32 0, %v2397
  %v2399 = vrot.slane %v349, %v2398
  %v2400 = vlaneseq
  %v2401 = vshrl.u32 %v2400, 7
  %v2402 = vsub.s32 0, %v2401
  %v2403 = vrot.slane %v350, %v2402
  %v2404 = vlaneseq
  %v2405 = vshrl.u32 %v2404, 7
  %v2406 = vsub.s32 0, %v2405
  %v2407 = vrot.slane %v351, %v2406
  %v2408 = vlaneseq
  %v2409 = vshrl.u32 %v2408, 7
  %v2410 = vsub.s32 0, %v2409
  %v2411 = vrot.slane %v352, %v2410
  %v2412 = vlaneseq
  %v2413 = vshrl.u32 %v2412, 7
  %v2414 = vsub.s32 0, %v2413
  %v2415 = vrot.slane %v353, %v2414
  %v2416 = vlaneseq
  %v2417 = vshrl.u32 %v2416, 7
  %v2418 = vsub.s32 0, %v2417
  %v2419 = vrot.slane %v354, %v2418
  %v2420 = vlaneseq
  %v2421 = vshrl.u32 %v2420, 7
  %v2422 = vsub.s32 0, %v2421
  %v2423 = vrot.slane %v355, %v2422
  %v2424 = vlaneseq
  %v2425 = vshrl.u32 %v2424, 7
  %v2426 = vsub.s32 0, %v2425
  %v2427 = vrot.slane %v356, %v2426
  %v2428 = vlaneseq
  %v2429 = vshrl.u32 %v2428, 7
  %v2430 = vsub.s32 0, %v2429
  %v2431 = vrot.slane %v357, %v2430
  %v2432 = vlaneseq
  %v2433 = vshrl.u32 %v2432, 7
  %v2434 = vsub.s32 0, %v2433
  %v2435 = vrot.slane %v358, %v2434
  %v2436 = vlaneseq
  %v2437 = vshrl.u32 %v2436, 7
  %v2438 = vsub.s32 0, %v2437
  %v2439 = vrot.slane %v359, %v2438
  %v2440 = vlaneseq
  %v2441 = vshrl.u32 %v2440, 7
  %v2442 = vsub.s32 0, %v2441
  %v2443 = vrot.slane %v360, %v2442
  %v2444 = vlaneseq
  %v2445 = vshrl.u32 %v2444, 7
  %v2446 = vsub.s32 0, %v2445
  %v2447 = vrot.slane %v361, %v2446
  %v2448 = vlaneseq
  %v2449 = vshrl.u32 %v2448, 7
  %v2450 = vsub.s32 0, %v2449
  %v2451 = vrot.slane %v362, %v2450
  %v2452 = vlaneseq
  %v2453 = vshrl.u32 %v2452, 7
  %v2454 = vsub.s32 0, %v2453
  %v2455 = vrot.slane %v363, %v2454
  %v2456 = vlaneseq
  %v2457 = vshrl.u32 %v2456, 7
  %v2458 = vsub.s32 0, %v2457
  %v2459 = vrot.slane %v364, %v2458
  %v2460 = vlaneseq
  %v2461 = vshrl.u32 %v2460, 7
  %v2462 = vsub.s32 0, %v2461
  %v2463 = vrot.slane %v365, %v2462
  %v2464 = vlaneseq
  %v2465 = vshrl.u32 %v2464, 7
  %v2466 = vsub.s32 0, %v2465
  %v2467 = vrot.slane %v366, %v2466
  %v2468 = vlaneseq
  %v2469 = vshrl.u32 %v2468, 7
  %v2470 = vsub.s32 0, %v2469
  %v2471 = vrot.slane %v367, %v2470
  %v2472 = vlaneseq
  %v2473 = vshrl.u32 %v2472, 7
  %v2474 = vsub.s32 0, %v2473
  %v2475 = vrot.slane %v368, %v2474
  %v2476 = vlaneseq
  %v2477 = vshrl.u32 %v2476, 7
  %v2478 = vsub.s32 0, %v2477
  %v2479 = vrot.slane %v369, %v2478
  %v2480 = vlaneseq
  %v2481 = vshrl.u32 %v2480, 7
  %v2482 = vsub.s32 0, %v2481
  %v2483 = vrot.slane %v370, %v2482
  %v2484 = vlaneseq
  %v2485 = vshrl.u32 %v2484, 7
  %v2486 = vsub.s32 0, %v2485
  %v2487 = vrot.slane %v371, %v2486
  %v2488 = vlaneseq
  %v2489 = vshrl.u32 %v2488, 7
  %v2490 = vsub.s32 0, %v2489
  %v2491 = vrot.slane %v372, %v2490
  %v2492 = vlaneseq
  %v2493 = vshrl.u32 %v2492, 7
  %v2494 = vsub.s32 0, %v2493
  %v2495 = vrot.slane %v373, %v2494
  %v2496 = vlaneseq
  %v2497 = vshrl.u32 %v2496, 7
  %v2498 = vsub.s32 0, %v2497
  %v2499 = vrot.slane %v374, %v2498
  %v2500 = vlaneseq
  %v2501 = vshrl.u32 %v2500, 7
  %v2502 = vsub.s32 0, %v2501
  %v2503 = vrot.slane %v375, %v2502
  %v2504 = vlaneseq
  %v2505 = vshrl.u32 %v2504, 7
  %v2506 = vsub.s32 0, %v2505
  %v2507 = vrot.slane %v376, %v2506
  %v2508 = vlaneseq
  %v2509 = vshrl.u32 %v2508, 7
  %v2510 = vsub.s32 0, %v2509
  %v2511 = vrot.slane %v377, %v2510
  %v2512 = vlaneseq
  %v2513 = vshrl.u32 %v2512, 7
  %v2514 = vsub.s32 0, %v2513
  %v2515 = vrot.slane %v378, %v2514
  %v2516 = vlaneseq
  %v2517 = vshrl.u32 %v2516, 7
  %v2518 = vsub.s32 0, %v2517
  %v2519 = vrot.slane %v379, %v2518
  %v2520 = vlaneseq
  %v2521 = vshrl.u32 %v2520, 7
  %v2522 = vsub.s32 0, %v2521
  %v2523 = vrot.slane %v380, %v2522
  %v2524 = vlaneseq
  %v2525 = vshrl.u32 %v2524, 7
  %v2526 = vsub.s32 0, %v2525
  %v2527 = vrot.slane %v381, %v2526
  %v2528 = vlaneseq
  %v2529 = vshrl.u32 %v2528, 7
  %v2530 = vsub.s32 0, %v2529
  %v2531 = vrot.slane %v382, %v2530
  %v2532 = vlaneseq
  %v2533 = vshrl.u32 %v2532, 7
  %v2534 = vsub.s32 0, %v2533
  %v2535 = vrot.slane %v383, %v2534
  %v2536 = vlaneseq
  %v2537 = vshrl.u32 %v2536, 7
  %v2538 = vsub.s32 0, %v2537
  %v2539 = vrot.slane %v384, %v2538
  %v2540 = vlaneseq
  %v2541 = vshrl.u32 %v2540, 7
  %v2542 = vsub.s32 0, %v2541
  %v2543 = vrot.slane %v385, %v2542
  %v2544 = vlaneseq
  %v2545 = vshrl.u32 %v2544, 7
  %v2546 = vsub.s32 0, %v2545
  %v2547 = vrot.slane %v386, %v2546
  %v2548 = vlaneseq
  %v2549 = vshrl.u32 %v2548, 7
  %v2550 = vsub.s32 0, %v2549
  %v2551 = vrot.slane %v387, %v2550
  %v2552 = vlaneseq
  %v2553 = vshrl.u32 %v2552, 7
  %v2554 = vsub.s32 0, %v2553
  %v2555 = vrot.slane %v388, %v2554
  %v2556 = vlaneseq
  %v2557 = vshrl.u32 %v2556, 7
  %v2558 = vsub.s32 0, %v2557
  %v2559 = vrot.slane %v389, %v2558
  %v2560 = vlaneseq
  %v2561 = vshrl.u32 %v2560, 7
  %v2562 = vsub.s32 0, %v2561
  %v2563 = vrot.slane %v390, %v2562
  %v2564 = vlaneseq
  %v2565 = vshrl.u32 %v2564, 7
  %v2566 = vsub.s32 0, %v2565
  %v2567 = vrot.slane %v391, %v2566
  %v2568 = vlaneseq
  %v2569 = vshrl.u32 %v2568, 7
  %v2570 = vsub.s32 0, %v2569
  %v2571 = vrot.slane %v392, %v2570
  %v2572 = vlaneseq
  %v2573 = vshrl.u32 %v2572, 7
  %v2574 = vsub.s32 0, %v2573
  %v2575 = vrot.slane %v393, %v2574
  %v2576 = vlaneseq
  %v2577 = vshrl.u32 %v2576, 7
  %v2578 = vsub.s32 0, %v2577
  %v2579 = vrot.slane %v394, %v2578
  %v2580 = vlaneseq
  %v2581 = vshrl.u32 %v2580, 7
  %v2582 = vsub.s32 0, %v2581
  %v2583 = vrot.slane %v395, %v2582
  %v2584 = vlaneseq
  %v2585 = vshrl.u32 %v2584, 7
  %v2586 = vsub.s32 0, %v2585
  %v2587 = vrot.slane %v396, %v2586
  %v2588 = vlaneseq
  %v2589 = vshrl.u32 %v2588, 7
  %v2590 = vsub.s32 0, %v2589
  %v2591 = vrot.slane %v397, %v2590
  %v2592 = vlaneseq
  %v2593 = vshrl.u32 %v2592, 7
  %v2594 = vsub.s32 0, %v2593
  %v2595 = vrot.slane %v398, %v2594
  %v2596 = vlaneseq
  %v2597 = vshrl.u32 %v2596, 7
  %v2598 = vsub.s32 0, %v2597
  %v2599 = vrot.slane %v399, %v2598
  %v2600 = vlaneseq
  %v2601 = vshrl.u32 %v2600, 7
  %v2602 = vsub.s32 0, %v2601
  %v2603 = vrot.slane %v400, %v2602
  %v2604 = vlaneseq
  %v2605 = vshrl.u32 %v2604, 7
  %v2606 = vsub.s32 0, %v2605
  %v2607 = vrot.slane %v401, %v2606
  %v2608 = vlaneseq
  %v2609 = vshrl.u32 %v2608, 7
  %v2610 = vsub.s32 0, %v2609
  %v2611 = vrot.slane %v402, %v2610
  %v2612 = vlaneseq
  %v2613 = vshrl.u32 %v2612, 7
  %v2614 = vsub.s32 0, %v2613
  %v2615 = vrot.slane %v403, %v2614
  %v2616 = vlaneseq
  %v2617 = vshrl.u32 %v2616, 7
  %v2618 = vsub.s32 0, %v2617
  %v2619 = vrot.slane %v404, %v2618
  %v2620 = vlaneseq
  %v2621 = vshrl.u32 %v2620, 7
  %v2622 = vsub.s32 0, %v2621
  %v2623 = vrot.slane %v405, %v2622
  %v2624 = vlaneseq
  %v2625 = vshrl.u32 %v2624, 7
  %v2626 = vsub.s32 0, %v2625
  %v2627 = vrot.slane %v406, %v2626
  %v2628 = vlaneseq
  %v2629 = vshrl.u32 %v2628, 7
  %v2630 = vsub.s32 0, %v2629
  %v2631 = vrot.slane %v407, %v2630
  %v2632 = vlaneseq
  %v2633 = vshrl.u32 %v2632, 7
  %v2634 = vsub.s32 0, %v2633
  %v2635 = vrot.slane %v408, %v2634
  %v2636 = vlaneseq
  %v2637 = vshrl.u32 %v2636, 7
  %v2638 = vsub.s32 0, %v2637
  %v2639 = vrot.slane %v409, %v2638
  %v2640 = vlaneseq
  %v2641 = vshrl.u32 %v2640, 7
  %v2642 = vsub.s32 0, %v2641
  %v2643 = vrot.slane %v410, %v2642
  %v2644 = vlaneseq
  %v2645 = vshrl.u32 %v2644, 7
  %v2646 = vsub.s32 0, %v2645
  %v2647 = vrot.slane %v411, %v2646
  %v2648 = vlaneseq
  %v2649 = vshrl.u32 %v2648, 7
  %v2650 = vsub.s32 0, %v2649
  %v2651 = vrot.slane %v412, %v2650
  %v2652 = vlaneseq
  %v2653 = vshrl.u32 %v2652, 7
  %v2654 = vsub.s32 0, %v2653
  %v2655 = vrot.slane %v413, %v2654
  %v2656 = vlaneseq
  %v2657 = vshrl.u32 %v2656, 7
  %v2658 = vsub.s32 0, %v2657
  %v2659 = vrot.slane %v414, %v2658
  %v2660 = vlaneseq
  %v2661 = vshrl.u32 %v2660, 7
  %v2662 = vsub.s32 0, %v2661
  %v2663 = vrot.slane %v415, %v2662
  %v2664 = vlaneseq
  %v2665 = vshrl.u32 %v2664, 7
  %v2666 = vsub.s32 0, %v2665
  %v2667 = vrot.slane %v416, %v2666
  %v2668 = vlaneseq
  %v2669 = vshrl.u32 %v2668, 7
  %v2670 = vsub.s32 0, %v2669
  %v2671 = vrot.slane %v417, %v2670
  %v2672 = vlaneseq
  %v2673 = vshrl.u32 %v2672, 7
  %v2674 = vsub.s32 0, %v2673
  %v2675 = vrot.slane %v418, %v2674
  %v2676 = vlaneseq
  %v2677 = vshrl.u32 %v2676, 7
  %v2678 = vsub.s32 0, %v2677
  %v2679 = vrot.slane %v419, %v2678
  %v2680 = vlaneseq
  %v2681 = vshrl.u32 %v2680, 7
  %v2682 = vsub.s32 0, %v2681
  %v2683 = vrot.slane %v420, %v2682
  %v2684 = vlaneseq
  %v2685 = vshrl.u32 %v2684, 7
  %v2686 = vsub.s32 0, %v2685
  %v2687 = vrot.slane %v421, %v2686
  %v2688 = vlaneseq
  %v2689 = vshrl.u32 %v2688, 7
  %v2690 = vsub.s32 0, %v2689
  %v2691 = vrot.slane %v422, %v2690
  %v2692 = vlaneseq
  %v2693 = vshrl.u32 %v2692, 7
  %v2694 = vsub.s32 0, %v2693
  %v2695 = vrot.slane %v423, %v2694
  %v2696 = vlaneseq
  %v2697 = vshrl.u32 %v2696, 7
  %v2698 = vsub.s32 0, %v2697
  %v2699 = vrot.slane %v424, %v2698
  %v2700 = vlaneseq
  %v2701 = vshrl.u32 %v2700, 7
  %v2702 = vsub.s32 0, %v2701
  %v2703 = vrot.slane %v425, %v2702
  %v2704 = vlaneseq
  %v2705 = vshrl.u32 %v2704, 7
  %v2706 = vsub.s32 0, %v2705
  %v2707 = vrot.slane %v426, %v2706
  %v2708 = vlaneseq
  %v2709 = vshrl.u32 %v2708, 7
  %v2710 = vsub.s32 0, %v2709
  %v2711 = vrot.slane %v427, %v2710
  %v2712 = vlaneseq
  %v2713 = vshrl.u32 %v2712, 7
  %v2714 = vsub.s32 0, %v2713
  %v2715 = vrot.slane %v428, %v2714
  %v2716 = vlaneseq
  %v2717 = vshrl.u32 %v2716, 7
  %v2718 = vsub.s32 0, %v2717
  %v2719 = vrot.slane %v429, %v2718
  %v2720 = vlaneseq
  %v2721 = vshrl.u32 %v2720, 7
  %v2722 = vsub.s32 0, %v2721
  %v2723 = vrot.slane %v430, %v2722
  %v2724 = vlaneseq
  %v2725 = vshrl.u32 %v2724, 7
  %v2726 = vsub.s32 0, %v2725
  %v2727 = vrot.slane %v431, %v2726
  %v2728 = vlaneseq
  %v2729 = vshrl.u32 %v2728, 7
  %v2730 = vsub.s32 0, %v2729
  %v2731 = vrot.slane %v432, %v2730
  %v2732 = vlaneseq
  %v2733 = vshrl.u32 %v2732, 7
  %v2734 = vsub.s32 0, %v2733
  %v2735 = vrot.slane %v433, %v2734
  %v2736 = vlaneseq
  %v2737 = vshrl.u32 %v2736, 7
  %v2738 = vsub.s32 0, %v2737
  %v2739 = vrot.slane %v434, %v2738
  %v2740 = vlaneseq
  %v2741 = vshrl.u32 %v2740, 7
  %v2742 = vsub.s32 0, %v2741
  %v2743 = vrot.slane %v435, %v2742
  %v2744 = vlaneseq
  %v2745 = vshrl.u32 %v2744, 7
  %v2746 = vsub.s32 0, %v2745
  %v2747 = vrot.slane %v436, %v2746
  %v2748 = vlaneseq
  %v2749 = vshrl.u32 %v2748, 7
  %v2750 = vsub.s32 0, %v2749
  %v2751 = vrot.slane %v437, %v2750
  %v2752 = vlaneseq
  %v2753 = vshrl.u32 %v2752, 7
  %v2754 = vsub.s32 0, %v2753
  %v2755 = vrot.slane %v438, %v2754
  %v2756 = vlaneseq
  %v2757 = vshrl.u32 %v2756, 7
  %v2758 = vsub.s32 0, %v2757
  %v2759 = vrot.slane %v439, %v2758
  %v2760 = vlaneseq
  %v2761 = vshrl.u32 %v2760, 7
  %v2762 = vsub.s32 0, %v2761
  %v2763 = vrot.slane %v440, %v2762
  %v2764 = vlaneseq
  %v2765 = vshrl.u32 %v2764, 7
  %v2766 = vsub.s32 0, %v2765
  %v2767 = vrot.slane %v441, %v2766
  %v2768 = vlaneseq
  %v2769 = vshrl.u32 %v2768, 7
  %v2770 = vsub.s32 0, %v2769
  %v2771 = vrot.slane %v442, %v2770
  %v2772 = vlaneseq
  %v2773 = vshrl.u32 %v2772, 7
  %v2774 = vsub.s32 0, %v2773
  %v2775 = vrot.slane %v443, %v2774
  %v2776 = vlaneseq
  %v2777 = vshrl.u32 %v2776, 7
  %v2778 = vsub.s32 0, %v2777
  %v2779 = vrot.slane %v444, %v2778
  %v2780 = vlaneseq
  %v2781 = vshrl.u32 %v2780, 7
  %v2782 = vsub.s32 0, %v2781
  %v2783 = vrot.slane %v445, %v2782
  %v2784 = vlaneseq
  %v2785 = vshrl.u32 %v2784, 7
  %v2786 = vsub.s32 0, %v2785
  %v2787 = vrot.slane %v446, %v2786
  %v2788 = vlaneseq
  %v2789 = vshrl.u32 %v2788, 7
  %v2790 = vsub.s32 0, %v2789
  %v2791 = vrot.slane %v447, %v2790
  %v2792 = vlaneseq
  %v2793 = vshrl.u32 %v2792, 7
  %v2794 = vsub.s32 0, %v2793
  %v2795 = vrot.slane %v448, %v2794
  %v2796 = vlaneseq
  %v2797 = vshrl.u32 %v2796, 7
  %v2798 = vsub.s32 0, %v2797
  %v2799 = vrot.slane %v449, %v2798
  %v2800 = vlaneseq
  %v2801 = vshrl.u32 %v2800, 7
  %v2802 = vsub.s32 0, %v2801
  %v2803 = vrot.slane %v450, %v2802
  %v2804 = vlaneseq
  %v2805 = vshrl.u32 %v2804, 7
  %v2806 = vsub.s32 0, %v2805
  %v2807 = vrot.slane %v451, %v2806
  %v2808 = vlaneseq
  %v2809 = vshrl.u32 %v2808, 7
  %v2810 = vsub.s32 0, %v2809
  %v2811 = vrot.slane %v452, %v2810
  %v2812 = vlaneseq
  %v2813 = vshrl.u32 %v2812, 7
  %v2814 = vsub.s32 0, %v2813
  %v2815 = vrot.slane %v453, %v2814
  %v2816 = vlaneseq
  %v2817 = vshrl.u32 %v2816, 7
  %v2818 = vsub.s32 0, %v2817
  %v2819 = vrot.slane %v454, %v2818
  %v2820 = vlaneseq
  %v2821 = vshrl.u32 %v2820, 7
  %v2822 = vsub.s32 0, %v2821
  %v2823 = vrot.slane %v455, %v2822
  %v2824 = vlaneseq
  %v2825 = vshrl.u32 %v2824, 7
  %v2826 = vsub.s32 0, %v2825
  %v2827 = vrot.slane %v456, %v2826
  %v2828 = vlaneseq
  %v2829 = vshrl.u32 %v2828, 7
  %v2830 = vsub.s32 0, %v2829
  %v2831 = vrot.slane %v457, %v2830
  %v2832 = vlaneseq
  %v2833 = vshrl.u32 %v2832, 7
  %v2834 = vsub.s32 0, %v2833
  %v2835 = vrot.slane %v458, %v2834
  %v2836 = vlaneseq
  %v2837 = vshrl.u32 %v2836, 7
  %v2838 = vsub.s32 0, %v2837
  %v2839 = vrot.slane %v459, %v2838
  %v2840 = vlaneseq
  %v2841 = vshrl.u32 %v2840, 7
  %v2842 = vsub.s32 0, %v2841
  %v2843 = vrot.slane %v460, %v2842
  %v2844 = vlaneseq
  %v2845 = vshrl.u32 %v2844, 7
  %v2846 = vsub.s32 0, %v2845
  %v2847 = vrot.slane %v461, %v2846
  %v2848 = vlaneseq
  %v2849 = vshrl.u32 %v2848, 7
  %v2850 = vsub.s32 0, %v2849
  %v2851 = vrot.slane %v462, %v2850
  %v2852 = vlaneseq
  %v2853 = vshrl.u32 %v2852, 7
  %v2854 = vsub.s32 0, %v2853
  %v2855 = vrot.slane %v463, %v2854
  %v2856 = vlaneseq
  %v2857 = vshrl.u32 %v2856, 7
  %v2858 = vsub.s32 0, %v2857
  %v2859 = vrot.slane %v464, %v2858
  %v2860 = vlaneseq
  %v2861 = vshrl.u32 %v2860, 7
  %v2862 = vsub.s32 0, %v2861
  %v2863 = vrot.slane %v465, %v2862
  %v2864 = vlaneseq
  %v2865 = vshrl.u32 %v2864, 7
  %v2866 = vsub.s32 0, %v2865
  %v2867 = vrot.slane %v466, %v2866
  %v2868 = vlaneseq
  %v2869 = vshrl.u32 %v2868, 7
  %v2870 = vsub.s32 0, %v2869
  %v2871 = vrot.slane %v467, %v2870
  %v2872 = vlaneseq
  %v2873 = vshrl.u32 %v2872, 7
  %v2874 = vsub.s32 0, %v2873
  %v2875 = vrot.slane %v468, %v2874
  %v2876 = vlaneseq
  %v2877 = vshrl.u32 %v2876, 7
  %v2878 = vsub.s32 0, %v2877
  %v2879 = vrot.slane %v469, %v2878
  %v2880 = vlaneseq
  %v2881 = vshrl.u32 %v2880, 7
  %v2882 = vsub.s32 0, %v2881
  %v2883 = vrot.slane %v470, %v2882
  %v2884 = vlaneseq
  %v2885 = vshrl.u32 %v2884, 7
  %v2886 = vsub.s32 0, %v2885
  %v2887 = vrot.slane %v471, %v2886
  %v2888 = vlaneseq
  %v2889 = vshrl.u32 %v2888, 7
  %v2890 = vsub.s32 0, %v2889
  %v2891 = vrot.slane %v472, %v2890
  %v2892 = vlaneseq
  %v2893 = vshrl.u32 %v2892, 7
  %v2894 = vsub.s32 0, %v2893
  %v2895 = vrot.slane %v473, %v2894
  %v2896 = vlaneseq
  %v2897 = vshrl.u32 %v2896, 7
  %v2898 = vsub.s32 0, %v2897
  %v2899 = vrot.slane %v474, %v2898
  %v2900 = vlaneseq
  %v2901 = vshrl.u32 %v2900, 7
  %v2902 = vsub.s32 0, %v2901
  %v2903 = vrot.slane %v475, %v2902
  %v2904 = vlaneseq
  %v2905 = vshrl.u32 %v2904, 7
  %v2906 = vsub.s32 0, %v2905
  %v2907 = vrot.slane %v476, %v2906
  %v2908 = vlaneseq
  %v2909 = vshrl.u32 %v2908, 7
  %v2910 = vsub.s32 0, %v2909
  %v2911 = vrot.slane %v477, %v2910
  %v2912 = vlaneseq
  %v2913 = vshrl.u32 %v2912, 7
  %v2914 = vsub.s32 0, %v2913
  %v2915 = vrot.slane %v478, %v2914
  %v2916 = vlaneseq
  %v2917 = vshrl.u32 %v2916, 7
  %v2918 = vsub.s32 0, %v2917
  %v2919 = vrot.slane %v479, %v2918
  %v2920 = vlaneseq
  %v2921 = vshrl.u32 %v2920, 7
  %v2922 = vsub.s32 0, %v2921
  %v2923 = vrot.slane %v480, %v2922
  %v2924 = vlaneseq
  %v2925 = vshrl.u32 %v2924, 7
  %v2926 = vsub.s32 0, %v2925
  %v2927 = vrot.slane %v481, %v2926
  %v2928 = vlaneseq
  %v2929 = vshrl.u32 %v2928, 7
  %v2930 = vsub.s32 0, %v2929
  %v2931 = vrot.slane %v482, %v2930
  %v2932 = vlaneseq
  %v2933 = vshrl.u32 %v2932, 7
  %v2934 = vsub.s32 0, %v2933
  %v2935 = vrot.slane %v483, %v2934
  %v2936 = vlaneseq
  %v2937 = vshrl.u32 %v2936, 7
  %v2938 = vsub.s32 0, %v2937
  %v2939 = vrot.slane %v484, %v2938
  %v2940 = vlaneseq
  %v2941 = vshrl.u32 %v2940, 7
  %v2942 = vsub.s32 0, %v2941
  %v2943 = vrot.slane %v485, %v2942
  %v2944 = vlaneseq
  %v2945 = vshrl.u32 %v2944, 7
  %v2946 = vsub.s32 0, %v2945
  %v2947 = vrot.slane %v486, %v2946
  %v2948 = vlaneseq
  %v2949 = vshrl.u32 %v2948, 7
  %v2950 = vsub.s32 0, %v2949
  %v2951 = vrot.slane %v487, %v2950
  %v2952 = vlaneseq
  %v2953 = vshrl.u32 %v2952, 7
  %v2954 = vsub.s32 0, %v2953
  %v2955 = vrot.slane %v488, %v2954
  %v2956 = vlaneseq
  %v2957 = vshrl.u32 %v2956, 7
  %v2958 = vsub.s32 0, %v2957
  %v2959 = vrot.slane %v489, %v2958
  %v2960 = vlaneseq
  %v2961 = vshrl.u32 %v2960, 7
  %v2962 = vsub.s32 0, %v2961
  %v2963 = vrot.slane %v490, %v2962
  %v2964 = vlaneseq
  %v2965 = vshrl.u32 %v2964, 7
  %v2966 = vsub.s32 0, %v2965
  %v2967 = vrot.slane %v491, %v2966
  %v2968 = vlaneseq
  %v2969 = vshrl.u32 %v2968, 7
  %v2970 = vsub.s32 0, %v2969
  %v2971 = vrot.slane %v492, %v2970
  %v2972 = vlaneseq
  %v2973 = vshrl.u32 %v2972, 7
  %v2974 = vsub.s32 0, %v2973
  %v2975 = vrot.slane %v493, %v2974
  %v2976 = vlaneseq
  %v2977 = vshrl.u32 %v2976, 7
  %v2978 = vsub.s32 0, %v2977
  %v2979 = vrot.slane %v494, %v2978
  %v2980 = vlaneseq
  %v2981 = vshrl.u32 %v2980, 7
  %v2982 = vsub.s32 0, %v2981
  %v2983 = vrot.slane %v495, %v2982
  %v2984 = vlaneseq
  %v2985 = vshrl.u32 %v2984, 7
  %v2986 = vsub.s32 0, %v2985
  %v2987 = vrot.slane %v496, %v2986
  %v2988 = vlaneseq
  %v2989 = vshrl.u32 %v2988, 7
  %v2990 = vsub.s32 0, %v2989
  %v2991 = vrot.slane %v497, %v2990
  %v2992 = vlaneseq
  %v2993 = vshrl.u32 %v2992, 7
  %v2994 = vsub.s32 0, %v2993
  %v2995 = vrot.slane %v498, %v2994
  %v2996 = vlaneseq
  %v2997 = vshrl.u32 %v2996, 7
  %v2998 = vsub.s32 0, %v2997
  %v2999 = vrot.slane %v499, %v2998
  %v3000 = vlaneseq
  %v3001 = vshrl.u32 %v3000, 7
  %v3002 = vsub.s32 0, %v3001
  %v3003 = vrot.slane %v500, %v3002
  %v3004 = vlaneseq
  %v3005 = vshrl.u32 %v3004, 7
  %v3006 = vsub.s32 0, %v3005
  %v3007 = vrot.slane %v501, %v3006
  %v3008 = vlaneseq
  %v3009 = vshrl.u32 %v3008, 7
  %v3010 = vsub.s32 0, %v3009
  %v3011 = vrot.slane %v502, %v3010
  %v3012 = vlaneseq
  %v3013 = vshrl.u32 %v3012, 7
  %v3014 = vsub.s32 0, %v3013
  %v3015 = vrot.slane %v503, %v3014
  %v3016 = vlaneseq
  %v3017 = vshrl.u32 %v3016, 7
  %v3018 = vsub.s32 0, %v3017
  %v3019 = vrot.slane %v504, %v3018
  %v3020 = vlaneseq
  %v3021 = vshrl.u32 %v3020, 7
  %v3022 = vsub.s32 0, %v3021
  %v3023 = vrot.slane %v505, %v3022
  %v3024 = vlaneseq
  %v3025 = vshrl.u32 %v3024, 7
  %v3026 = vsub.s32 0, %v3025
  %v3027 = vrot.slane %v506, %v3026
  %v3028 = vlaneseq
  %v3029 = vshrl.u32 %v3028, 7
  %v3030 = vsub.s32 0, %v3029
  %v3031 = vrot.slane %v507, %v3030
  %v3032 = vlaneseq
  %v3033 = vshrl.u32 %v3032, 7
  %v3034 = vsub.s32 0, %v3033
  %v3035 = vrot.slane %v508, %v3034
  %v3036 = vlaneseq
  %v3037 = vshrl.u32 %v3036, 7
  %v3038 = vsub.s32 0, %v3037
  %v3039 = vrot.slane %v509, %v3038
  %v3040 = vlaneseq
  %v3041 = vshrl.u32 %v3040, 7
  %v3042 = vsub.s32 0, %v3041
  %v3043 = vrot.slane %v510, %v3042
  %v3044 = vlaneseq
  %v3045 = vshrl.u32 %v3044, 7
  %v3046 = vsub.s32 0, %v3045
  %v3047 = vrot.slane %v511, %v3046
  %v3048 = vlaneseq
  %v3049 = vshrl.u32 %v3048, 7
  %v3050 = vsub.s32 0, %v3049
  %v3051 = vrot.slane %v512, %v3050
  %v3052 = vlaneseq
  %v3053 = vshrl.u32 %v3052, 7
  %v3054 = vsub.s32 0, %v3053
  %v3055 = vrot.slane %v513, %v3054
  %v3056 = vlaneseq
  %v3057 = vshrl.u32 %v3056, 7
  %v3058 = vsub.s32 0, %v3057
  %v3059 = vrot.slane %v514, %v3058
  %v3060 = vlaneseq
  %v3061 = vshrl.u32 %v3060, 7
  %v3062 = vsub.s32 0, %v3061
  %v3063 = vrot.slane %v515, %v3062
  %v3064 = vlaneseq
  %v3065 = vshrl.u32 %v3064, 7
  %v3066 = vsub.s32 0, %v3065
  %v3067 = vrot.slane %v516, %v3066
  %v3068 = vlaneseq
  %v3069 = vshrl.u32 %v3068, 7
  %v3070 = vsub.s32 0, %v3069
  %v3071 = vrot.slane %v517, %v3070
  %v3072 = vlaneseq
  %v3073 = vshrl.u32 %v3072, 7
  %v3074 = vsub.s32 0, %v3073
  %v3075 = vrot.slane %v518, %v3074
  %v3076 = vlaneseq
  %v3077 = vshrl.u32 %v3076, 7
  %v3078 = vsub.s32 0, %v3077
  %v3079 = vrot.slane %v519, %v3078
  %vm3592 = vcmask 58368
  %3593 = vst.msk [vmem:[%s1] sm:$0x3] %vm3592, %v1035
  %3594 = vst.msk [vmem:[%s1 + $0x2] sm:$0x3] %vm3592, %v1039
  %3595 = vst.msk [vmem:[%s1 + $0x4] sm:$0x3] %vm3592, %v1043
  %3596 = vst.msk [vmem:[%s1 + $0x6] sm:$0x3] %vm3592, %v1047
  %3597 = vst.msk [vmem:[%s1 + $0x8] sm:$0x3] %vm3592, %v1051
  %3598 = vst.msk [vmem:[%s1 + $0xa] sm:$0x3] %vm3592, %v1055
  %3599 = vst.msk [vmem:[%s1 + $0xc] sm:$0x3] %vm3592, %v1059
  %3600 = vst.msk [vmem:[%s1 + $0xe] sm:$0x3] %vm3592, %v1063
  %3601 = vst.msk [vmem:[%s1 + $0x10] sm:$0x3] %vm3592, %v1067
  %3602 = vst.msk [vmem:[%s1 + $0x12] sm:$0x3] %vm3592, %v1071
  %3603 = vst.msk [vmem:[%s1 + $0x14] sm:$0x3] %vm3592, %v1075
  %3604 = vst.msk [vmem:[%s1 + $0x16] sm:$0x3] %vm3592, %v1079
  %3605 = vst.msk [vmem:[%s1 + $0x18] sm:$0x3] %vm3592, %v1083
  %3606 = vst.msk [vmem:[%s1 + $0x1a] sm:$0x3] %vm3592, %v1087
  %3607 = vst.msk [vmem:[%s1 + $0x1c] sm:$0x3] %vm3592, %v1091
  %3608 = vst.msk [vmem:[%s1 + $0x1e] sm:$0x3] %vm3592, %v1095
  %3609 = vst.msk [vmem:[%s1 + $0x20] sm:$0x3] %vm3592, %v1035
  %3610 = vst.msk [vmem:[%s1 + $0x22] sm:$0x3] %vm3592, %v1039
  %3611 = vst.msk [vmem:[%s1 + $0x24] sm:$0x3] %vm3592, %v1043
  %3612 = vst.msk [vmem:[%s1 + $0x26] sm:$0x3] %vm3592, %v1047
  %3613 = vst.msk [vmem:[%s1 + $0x28] sm:$0x3] %vm3592, %v1051
  %3614 = vst.msk [vmem:[%s1 + $0x2a] sm:$0x3] %vm3592, %v1055
  %3615 = vst.msk [vmem:[%s1 + $0x2c] sm:$0x3] %vm3592, %v1059
  %3616 = vst.msk [vmem:[%s1 + $0x2e] sm:$0x3] %vm3592, %v1063
  %3617 = vst.msk [vmem:[%s1 + $0x30] sm:$0x3] %vm3592, %v1067
  %3618 = vst.msk [vmem:[%s1 + $0x32] sm:$0x3] %vm3592, %v1071
  %3619 = vst.msk [vmem:[%s1 + $0x34] sm:$0x3] %vm3592, %v1075
  %3620 = vst.msk [vmem:[%s1 + $0x36] sm:$0x3] %vm3592, %v1079
  %3621 = vst.msk [vmem:[%s1 + $0x38] sm:$0x3] %vm3592, %v1083
  %3622 = vst.msk [vmem:[%s1 + $0x3a] sm:$0x3] %vm3592, %v1087
  %3623 = vst.msk [vmem:[%s1 + $0x3c] sm:$0x3] %vm3592, %v1091
  %3624 = vst.msk [vmem:[%s1 + $0x3e] sm:$0x3] %vm3592, %v1095
  %3625 = vst.msk [vmem:[%s1 + $0x40] sm:$0x3] %vm3592, %v1099
  %3626 = vst.msk [vmem:[%s1 + $0x42] sm:$0x3] %vm3592, %v1103
  %3627 = vst.msk [vmem:[%s1 + $0x44] sm:$0x3] %vm3592, %v1107
  %3628 = vst.msk [vmem:[%s1 + $0x46] sm:$0x3] %vm3592, %v1111
  %3629 = vst.msk [vmem:[%s1 + $0x48] sm:$0x3] %vm3592, %v1115
  %3630 = vst.msk [vmem:[%s1 + $0x4a] sm:$0x3] %vm3592, %v1119
  %3631 = vst.msk [vmem:[%s1 + $0x4c] sm:$0x3] %vm3592, %v1123
  %3632 = vst.msk [vmem:[%s1 + $0x4e] sm:$0x3] %vm3592, %v1127
  %3633 = vst.msk [vmem:[%s1 + $0x50] sm:$0x3] %vm3592, %v1131
  %3634 = vst.msk [vmem:[%s1 + $0x52] sm:$0x3] %vm3592, %v1135
  %3635 = vst.msk [vmem:[%s1 + $0x54] sm:$0x3] %vm3592, %v1139
  %3636 = vst.msk [vmem:[%s1 + $0x56] sm:$0x3] %vm3592, %v1143
  %3637 = vst.msk [vmem:[%s1 + $0x58] sm:$0x3] %vm3592, %v1147
  %3638 = vst.msk [vmem:[%s1 + $0x5a] sm:$0x3] %vm3592, %v1151
  %3639 = vst.msk [vmem:[%s1 + $0x5c] sm:$0x3] %vm3592, %v1155
  %3640 = vst.msk [vmem:[%s1 + $0x5e] sm:$0x3] %vm3592, %v1159
  %3641 = vst.msk [vmem:[%s1 + $0x60] sm:$0x3] %vm3592, %v1099
  %3642 = vst.msk [vmem:[%s1 + $0x62] sm:$0x3] %vm3592, %v1103
  %3643 = vst.msk [vmem:[%s1 + $0x64] sm:$0x3] %vm3592, %v1107
  %3644 = vst.msk [vmem:[%s1 + $0x66] sm:$0x3] %vm3592, %v1111
  %3645 = vst.msk [vmem:[%s1 + $0x68] sm:$0x3] %vm3592, %v1115
  %3646 = vst.msk [vmem:[%s1 + $0x6a] sm:$0x3] %vm3592, %v1119
  %3647 = vst.msk [vmem:[%s1 + $0x6c] sm:$0x3] %vm3592, %v1123
  %3648 = vst.msk [vmem:[%s1 + $0x6e] sm:$0x3] %vm3592, %v1127
  %3649 = vst.msk [vmem:[%s1 + $0x70] sm:$0x3] %vm3592, %v1131
  %3650 = vst.msk [vmem:[%s1 + $0x72] sm:$0x3] %vm3592, %v1135
  %3651 = vst.msk [vmem:[%s1 + $0x74] sm:$0x3] %vm3592, %v1139
  %3652 = vst.msk [vmem:[%s1 + $0x76] sm:$0x3] %vm3592, %v1143
  %3653 = vst.msk [vmem:[%s1 + $0x78] sm:$0x3] %vm3592, %v1147
  %3654 = vst.msk [vmem:[%s1 + $0x7a] sm:$0x3] %vm3592, %v1151
  %3655 = vst.msk [vmem:[%s1 + $0x7c] sm:$0x3] %vm3592, %v1155
  %3656 = vst.msk [vmem:[%s1 + $0x7e] sm:$0x3] %vm3592, %v1159
  %3657 = vst.msk [vmem:[%s1 + $0x80] sm:$0x3] %vm3592, %v1163
  %3658 = vst.msk [vmem:[%s1 + $0x82] sm:$0x3] %vm3592, %v1167
  %3659 = vst.msk [vmem:[%s1 + $0x84] sm:$0x3] %vm3592, %v1171
  %3660 = vst.msk [vmem:[%s1 + $0x86] sm:$0x3] %vm3592, %v1175
  %3661 = vst.msk [vmem:[%s1 + $0x88] sm:$0x3] %vm3592, %v1179
  %3662 = vst.msk [vmem:[%s1 + $0x8a] sm:$0x3] %vm3592, %v1183
  %3663 = vst.msk [vmem:[%s1 + $0x8c] sm:$0x3] %vm3592, %v1187
  %3664 = vst.msk [vmem:[%s1 + $0x8e] sm:$0x3] %vm3592, %v1191
  %3665 = vst.msk [vmem:[%s1 + $0x90] sm:$0x3] %vm3592, %v1195
  %3666 = vst.msk [vmem:[%s1 + $0x92] sm:$0x3] %vm3592, %v1199
  %3667 = vst.msk [vmem:[%s1 + $0x94] sm:$0x3] %vm3592, %v1203
  %3668 = vst.msk [vmem:[%s1 + $0x96] sm:$0x3] %vm3592, %v1207
  %3669 = vst.msk [vmem:[%s1 + $0x98] sm:$0x3] %vm3592, %v1211
  %3670 = vst.msk [vmem:[%s1 + $0x9a] sm:$0x3] %vm3592, %v1215
  %3671 = vst.msk [vmem:[%s1 + $0x9c] sm:$0x3] %vm3592, %v1219
  %3672 = vst.msk [vmem:[%s1 + $0x9e] sm:$0x3] %vm3592, %v1223
  %3673 = vst.msk [vmem:[%s1 + $0xa0] sm:$0x3] %vm3592, %v1163
  %3674 = vst.msk [vmem:[%s1 + $0xa2] sm:$0x3] %vm3592, %v1167
  %3675 = vst.msk [vmem:[%s1 + $0xa4] sm:$0x3] %vm3592, %v1171
  %3676 = vst.msk [vmem:[%s1 + $0xa6] sm:$0x3] %vm3592, %v1175
  %3677 = vst.msk [vmem:[%s1 + $0xa8] sm:$0x3] %vm3592, %v1179
  %3678 = vst.msk [vmem:[%s1 + $0xaa] sm:$0x3] %vm3592, %v1183
  %3679 = vst.msk [vmem:[%s1 + $0xac] sm:$0x3] %vm3592, %v1187
  %3680 = vst.msk [vmem:[%s1 + $0xae] sm:$0x3] %vm3592, %v1191
  %3681 = vst.msk [vmem:[%s1 + $0xb0] sm:$0x3] %vm3592, %v1195
  %3682 = vst.msk [vmem:[%s1 + $0xb2] sm:$0x3] %vm3592, %v1199
  %3683 = vst.msk [vmem:[%s1 + $0xb4] sm:$0x3] %vm3592, %v1203
  %3684 = vst.msk [vmem:[%s1 + $0xb6] sm:$0x3] %vm3592, %v1207
  %3685 = vst.msk [vmem:[%s1 + $0xb8] sm:$0x3] %vm3592, %v1211
  %3686 = vst.msk [vmem:[%s1 + $0xba] sm:$0x3] %vm3592, %v1215
  %3687 = vst.msk [vmem:[%s1 + $0xbc] sm:$0x3] %vm3592, %v1219
  %3688 = vst.msk [vmem:[%s1 + $0xbe] sm:$0x3] %vm3592, %v1223
  %3689 = vst.msk [vmem:[%s1 + $0xc0] sm:$0x3] %vm3592, %v1227
  %3690 = vst.msk [vmem:[%s1 + $0xc2] sm:$0x3] %vm3592, %v1231
  %3691 = vst.msk [vmem:[%s1 + $0xc4] sm:$0x3] %vm3592, %v1235
  %3692 = vst.msk [vmem:[%s1 + $0xc6] sm:$0x3] %vm3592, %v1239
  %3693 = vst.msk [vmem:[%s1 + $0xc8] sm:$0x3] %vm3592, %v1243
  %3694 = vst.msk [vmem:[%s1 + $0xca] sm:$0x3] %vm3592, %v1247
  %3695 = vst.msk [vmem:[%s1 + $0xcc] sm:$0x3] %vm3592, %v1251
  %3696 = vst.msk [vmem:[%s1 + $0xce] sm:$0x3] %vm3592, %v1255
  %3697 = vst.msk [vmem:[%s1 + $0xd0] sm:$0x3] %vm3592, %v1259
  %3698 = vst.msk [vmem:[%s1 + $0xd2] sm:$0x3] %vm3592, %v1263
  %3699 = vst.msk [vmem:[%s1 + $0xd4] sm:$0x3] %vm3592, %v1267
  %3700 = vst.msk [vmem:[%s1 + $0xd6] sm:$0x3] %vm3592, %v1271
  %3701 = vst.msk [vmem:[%s1 + $0xd8] sm:$0x3] %vm3592, %v1275
  %3702 = vst.msk [vmem:[%s1 + $0xda] sm:$0x3] %vm3592, %v1279
  %3703 = vst.msk [vmem:[%s1 + $0xdc] sm:$0x3] %vm3592, %v1283
  %3704 = vst.msk [vmem:[%s1 + $0xde] sm:$0x3] %vm3592, %v1287
  %3705 = vst.msk [vmem:[%s1 + $0xe0] sm:$0x3] %vm3592, %v1227
  %3706 = vst.msk [vmem:[%s1 + $0xe2] sm:$0x3] %vm3592, %v1231
  %3707 = vst.msk [vmem:[%s1 + $0xe4] sm:$0x3] %vm3592, %v1235
  %3708 = vst.msk [vmem:[%s1 + $0xe6] sm:$0x3] %vm3592, %v1239
  %3709 = vst.msk [vmem:[%s1 + $0xe8] sm:$0x3] %vm3592, %v1243
  %3710 = vst.msk [vmem:[%s1 + $0xea] sm:$0x3] %vm3592, %v1247
  %3711 = vst.msk [vmem:[%s1 + $0xec] sm:$0x3] %vm3592, %v1251
  %3712 = vst.msk [vmem:[%s1 + $0xee] sm:$0x3] %vm3592, %v1255
  %3713 = vst.msk [vmem:[%s1 + $0xf0] sm:$0x3] %vm3592, %v1259
  %3714 = vst.msk [vmem:[%s1 + $0xf2] sm:$0x3] %vm3592, %v1263
  %3715 = vst.msk [vmem:[%s1 + $0xf4] sm:$0x3] %vm3592, %v1267
  %3716 = vst.msk [vmem:[%s1 + $0xf6] sm:$0x3] %vm3592, %v1271
  %3717 = vst.msk [vmem:[%s1 + $0xf8] sm:$0x3] %vm3592, %v1275
  %3718 = vst.msk [vmem:[%s1 + $0xfa] sm:$0x3] %vm3592, %v1279
  %3719 = vst.msk [vmem:[%s1 + $0xfc] sm:$0x3] %vm3592, %v1283
  %3720 = vst.msk [vmem:[%s1 + $0xfe] sm:$0x3] %vm3592, %v1287
  %3721 = vst.msk [vmem:[%s1 + $0x100] sm:$0x3] %vm3592, %v1291
  %3722 = vst.msk [vmem:[%s1 + $0x102] sm:$0x3] %vm3592, %v1295
  %3723 = vst.msk [vmem:[%s1 + $0x104] sm:$0x3] %vm3592, %v1299
  %3724 = vst.msk [vmem:[%s1 + $0x106] sm:$0x3] %vm3592, %v1303
  %3725 = vst.msk [vmem:[%s1 + $0x108] sm:$0x3] %vm3592, %v1307
  %3726 = vst.msk [vmem:[%s1 + $0x10a] sm:$0x3] %vm3592, %v1311
  %3727 = vst.msk [vmem:[%s1 + $0x10c] sm:$0x3] %vm3592, %v1315
  %3728 = vst.msk [vmem:[%s1 + $0x10e] sm:$0x3] %vm3592, %v1319
  %3729 = vst.msk [vmem:[%s1 + $0x110] sm:$0x3] %vm3592, %v1323
  %3730 = vst.msk [vmem:[%s1 + $0x112] sm:$0x3] %vm3592, %v1327
  %3731 = vst.msk [vmem:[%s1 + $0x114] sm:$0x3] %vm3592, %v1331
  %3732 = vst.msk [vmem:[%s1 + $0x116] sm:$0x3] %vm3592, %v1335
  %3733 = vst.msk [vmem:[%s1 + $0x118] sm:$0x3] %vm3592, %v1339
  %3734 = vst.msk [vmem:[%s1 + $0x11a] sm:$0x3] %vm3592, %v1343
  %3735 = vst.msk [vmem:[%s1 + $0x11c] sm:$0x3] %vm3592, %v1347
  %3736 = vst.msk [vmem:[%s1 + $0x11e] sm:$0x3] %vm3592, %v1351
  %3737 = vst.msk [vmem:[%s1 + $0x120] sm:$0x3] %vm3592, %v1291
  %3738 = vst.msk [vmem:[%s1 + $0x122] sm:$0x3] %vm3592, %v1295
  %3739 = vst.msk [vmem:[%s1 + $0x124] sm:$0x3] %vm3592, %v1299
  %3740 = vst.msk [vmem:[%s1 + $0x126] sm:$0x3] %vm3592, %v1303
  %3741 = vst.msk [vmem:[%s1 + $0x128] sm:$0x3] %vm3592, %v1307
  %3742 = vst.msk [vmem:[%s1 + $0x12a] sm:$0x3] %vm3592, %v1311
  %3743 = vst.msk [vmem:[%s1 + $0x12c] sm:$0x3] %vm3592, %v1315
  %3744 = vst.msk [vmem:[%s1 + $0x12e] sm:$0x3] %vm3592, %v1319
  %3745 = vst.msk [vmem:[%s1 + $0x130] sm:$0x3] %vm3592, %v1323
  %3746 = vst.msk [vmem:[%s1 + $0x132] sm:$0x3] %vm3592, %v1327
  %3747 = vst.msk [vmem:[%s1 + $0x134] sm:$0x3] %vm3592, %v1331
  %3748 = vst.msk [vmem:[%s1 + $0x136] sm:$0x3] %vm3592, %v1335
  %3749 = vst.msk [vmem:[%s1 + $0x138] sm:$0x3] %vm3592, %v1339
  %3750 = vst.msk [vmem:[%s1 + $0x13a] sm:$0x3] %vm3592, %v1343
  %3751 = vst.msk [vmem:[%s1 + $0x13c] sm:$0x3] %vm3592, %v1347
  %3752 = vst.msk [vmem:[%s1 + $0x13e] sm:$0x3] %vm3592, %v1351
  %3753 = vst.msk [vmem:[%s1 + $0x140] sm:$0x3] %vm3592, %v1355
  %3754 = vst.msk [vmem:[%s1 + $0x142] sm:$0x3] %vm3592, %v1359
  %3755 = vst.msk [vmem:[%s1 + $0x144] sm:$0x3] %vm3592, %v1363
  %3756 = vst.msk [vmem:[%s1 + $0x146] sm:$0x3] %vm3592, %v1367
  %3757 = vst.msk [vmem:[%s1 + $0x148] sm:$0x3] %vm3592, %v1371
  %3758 = vst.msk [vmem:[%s1 + $0x14a] sm:$0x3] %vm3592, %v1375
  %3759 = vst.msk [vmem:[%s1 + $0x14c] sm:$0x3] %vm3592, %v1379
  %3760 = vst.msk [vmem:[%s1 + $0x14e] sm:$0x3] %vm3592, %v1383
  %3761 = vst.msk [vmem:[%s1 + $0x150] sm:$0x3] %vm3592, %v1387
  %3762 = vst.msk [vmem:[%s1 + $0x152] sm:$0x3] %vm3592, %v1391
  %3763 = vst.msk [vmem:[%s1 + $0x154] sm:$0x3] %vm3592, %v1395
  %3764 = vst.msk [vmem:[%s1 + $0x156] sm:$0x3] %vm3592, %v1399
  %3765 = vst.msk [vmem:[%s1 + $0x158] sm:$0x3] %vm3592, %v1403
  %3766 = vst.msk [vmem:[%s1 + $0x15a] sm:$0x3] %vm3592, %v1407
  %3767 = vst.msk [vmem:[%s1 + $0x15c] sm:$0x3] %vm3592, %v1411
  %3768 = vst.msk [vmem:[%s1 + $0x15e] sm:$0x3] %vm3592, %v1415
  %3769 = vst.msk [vmem:[%s1 + $0x160] sm:$0x3] %vm3592, %v1355
  %3770 = vst.msk [vmem:[%s1 + $0x162] sm:$0x3] %vm3592, %v1359
  %3771 = vst.msk [vmem:[%s1 + $0x164] sm:$0x3] %vm3592, %v1363
  %3772 = vst.msk [vmem:[%s1 + $0x166] sm:$0x3] %vm3592, %v1367
  %3773 = vst.msk [vmem:[%s1 + $0x168] sm:$0x3] %vm3592, %v1371
  %3774 = vst.msk [vmem:[%s1 + $0x16a] sm:$0x3] %vm3592, %v1375
  %3775 = vst.msk [vmem:[%s1 + $0x16c] sm:$0x3] %vm3592, %v1379
  %3776 = vst.msk [vmem:[%s1 + $0x16e] sm:$0x3] %vm3592, %v1383
  %3777 = vst.msk [vmem:[%s1 + $0x170] sm:$0x3] %vm3592, %v1387
  %3778 = vst.msk [vmem:[%s1 + $0x172] sm:$0x3] %vm3592, %v1391
  %3779 = vst.msk [vmem:[%s1 + $0x174] sm:$0x3] %vm3592, %v1395
  %3780 = vst.msk [vmem:[%s1 + $0x176] sm:$0x3] %vm3592, %v1399
  %3781 = vst.msk [vmem:[%s1 + $0x178] sm:$0x3] %vm3592, %v1403
  %3782 = vst.msk [vmem:[%s1 + $0x17a] sm:$0x3] %vm3592, %v1407
  %3783 = vst.msk [vmem:[%s1 + $0x17c] sm:$0x3] %vm3592, %v1411
  %3784 = vst.msk [vmem:[%s1 + $0x17e] sm:$0x3] %vm3592, %v1415
  %3785 = vst.msk [vmem:[%s1 + $0x180] sm:$0x3] %vm3592, %v1419
  %3786 = vst.msk [vmem:[%s1 + $0x182] sm:$0x3] %vm3592, %v1423
  %3787 = vst.msk [vmem:[%s1 + $0x184] sm:$0x3] %vm3592, %v1427
  %3788 = vst.msk [vmem:[%s1 + $0x186] sm:$0x3] %vm3592, %v1431
  %3789 = vst.msk [vmem:[%s1 + $0x188] sm:$0x3] %vm3592, %v1435
  %3790 = vst.msk [vmem:[%s1 + $0x18a] sm:$0x3] %vm3592, %v1439
  %3791 = vst.msk [vmem:[%s1 + $0x18c] sm:$0x3] %vm3592, %v1443
  %3792 = vst.msk [vmem:[%s1 + $0x18e] sm:$0x3] %vm3592, %v1447
  %3793 = vst.msk [vmem:[%s1 + $0x190] sm:$0x3] %vm3592, %v1451
  %3794 = vst.msk [vmem:[%s1 + $0x192] sm:$0x3] %vm3592, %v1455
  %3795 = vst.msk [vmem:[%s1 + $0x194] sm:$0x3] %vm3592, %v1459
  %3796 = vst.msk [vmem:[%s1 + $0x196] sm:$0x3] %vm3592, %v1463
  %3797 = vst.msk [vmem:[%s1 + $0x198] sm:$0x3] %vm3592, %v1467
  %3798 = vst.msk [vmem:[%s1 + $0x19a] sm:$0x3] %vm3592, %v1471
  %3799 = vst.msk [vmem:[%s1 + $0x19c] sm:$0x3] %vm3592, %v1475
  %3800 = vst.msk [vmem:[%s1 + $0x19e] sm:$0x3] %vm3592, %v1479
  %3801 = vst.msk [vmem:[%s1 + $0x1a0] sm:$0x3] %vm3592, %v1419
  %3802 = vst.msk [vmem:[%s1 + $0x1a2] sm:$0x3] %vm3592, %v1423
  %3803 = vst.msk [vmem:[%s1 + $0x1a4] sm:$0x3] %vm3592, %v1427
  %3804 = vst.msk [vmem:[%s1 + $0x1a6] sm:$0x3] %vm3592, %v1431
  %3805 = vst.msk [vmem:[%s1 + $0x1a8] sm:$0x3] %vm3592, %v1435
  %3806 = vst.msk [vmem:[%s1 + $0x1aa] sm:$0x3] %vm3592, %v1439
  %3807 = vst.msk [vmem:[%s1 + $0x1ac] sm:$0x3] %vm3592, %v1443
  %3808 = vst.msk [vmem:[%s1 + $0x1ae] sm:$0x3] %vm3592, %v1447
  %3809 = vst.msk [vmem:[%s1 + $0x1b0] sm:$0x3] %vm3592, %v1451
  %3810 = vst.msk [vmem:[%s1 + $0x1b2] sm:$0x3] %vm3592, %v1455
  %3811 = vst.msk [vmem:[%s1 + $0x1b4] sm:$0x3] %vm3592, %v1459
  %3812 = vst.msk [vmem:[%s1 + $0x1b6] sm:$0x3] %vm3592, %v1463
  %3813 = vst.msk [vmem:[%s1 + $0x1b8] sm:$0x3] %vm3592, %v1467
  %3814 = vst.msk [vmem:[%s1 + $0x1ba] sm:$0x3] %vm3592, %v1471
  %3815 = vst.msk [vmem:[%s1 + $0x1bc] sm:$0x3] %vm3592, %v1475
  %3816 = vst.msk [vmem:[%s1 + $0x1be] sm:$0x3] %vm3592, %v1479
  %3817 = vst.msk [vmem:[%s1 + $0x1c0] sm:$0x3] %vm3592, %v1483
  %3818 = vst.msk [vmem:[%s1 + $0x1c2] sm:$0x3] %vm3592, %v1487
  %3819 = vst.msk [vmem:[%s1 + $0x1c4] sm:$0x3] %vm3592, %v1491
  %3820 = vst.msk [vmem:[%s1 + $0x1c6] sm:$0x3] %vm3592, %v1495
  %3821 = vst.msk [vmem:[%s1 + $0x1c8] sm:$0x3] %vm3592, %v1499
  %3822 = vst.msk [vmem:[%s1 + $0x1ca] sm:$0x3] %vm3592, %v1503
  %3823 = vst.msk [vmem:[%s1 + $0x1cc] sm:$0x3] %vm3592, %v1507
  %3824 = vst.msk [vmem:[%s1 + $0x1ce] sm:$0x3] %vm3592, %v1511
  %3825 = vst.msk [vmem:[%s1 + $0x1d0] sm:$0x3] %vm3592, %v1515
  %3826 = vst.msk [vmem:[%s1 + $0x1d2] sm:$0x3] %vm3592, %v1519
  %3827 = vst.msk [vmem:[%s1 + $0x1d4] sm:$0x3] %vm3592, %v1523
  %3828 = vst.msk [vmem:[%s1 + $0x1d6] sm:$0x3] %vm3592, %v1527
  %3829 = vst.msk [vmem:[%s1 + $0x1d8] sm:$0x3] %vm3592, %v1531
  %3830 = vst.msk [vmem:[%s1 + $0x1da] sm:$0x3] %vm3592, %v1535
  %3831 = vst.msk [vmem:[%s1 + $0x1dc] sm:$0x3] %vm3592, %v1539
  %3832 = vst.msk [vmem:[%s1 + $0x1de] sm:$0x3] %vm3592, %v1543
  %3833 = vst.msk [vmem:[%s1 + $0x1e0] sm:$0x3] %vm3592, %v1483
  %3834 = vst.msk [vmem:[%s1 + $0x1e2] sm:$0x3] %vm3592, %v1487
  %3835 = vst.msk [vmem:[%s1 + $0x1e4] sm:$0x3] %vm3592, %v1491
  %3836 = vst.msk [vmem:[%s1 + $0x1e6] sm:$0x3] %vm3592, %v1495
  %3837 = vst.msk [vmem:[%s1 + $0x1e8] sm:$0x3] %vm3592, %v1499
  %3838 = vst.msk [vmem:[%s1 + $0x1ea] sm:$0x3] %vm3592, %v1503
  %3839 = vst.msk [vmem:[%s1 + $0x1ec] sm:$0x3] %vm3592, %v1507
  %3840 = vst.msk [vmem:[%s1 + $0x1ee] sm:$0x3] %vm3592, %v1511
  %3841 = vst.msk [vmem:[%s1 + $0x1f0] sm:$0x3] %vm3592, %v1515
  %3842 = vst.msk [vmem:[%s1 + $0x1f2] sm:$0x3] %vm3592, %v1519
  %3843 = vst.msk [vmem:[%s1 + $0x1f4] sm:$0x3] %vm3592, %v1523
  %3844 = vst.msk [vmem:[%s1 + $0x1f6] sm:$0x3] %vm3592, %v1527
  %3845 = vst.msk [vmem:[%s1 + $0x1f8] sm:$0x3] %vm3592, %v1531
  %3846 = vst.msk [vmem:[%s1 + $0x1fa] sm:$0x3] %vm3592, %v1535
  %3847 = vst.msk [vmem:[%s1 + $0x1fc] sm:$0x3] %vm3592, %v1539
  %3848 = vst.msk [vmem:[%s1 + $0x1fe] sm:$0x3] %vm3592, %v1543
  %3849 = vst.msk [vmem:[%s1 + $0x200] sm:$0x3] %vm3592, %v1547
  %3850 = vst.msk [vmem:[%s1 + $0x202] sm:$0x3] %vm3592, %v1551
  %3851 = vst.msk [vmem:[%s1 + $0x204] sm:$0x3] %vm3592, %v1555
  %3852 = vst.msk [vmem:[%s1 + $0x206] sm:$0x3] %vm3592, %v1559
  %3853 = vst.msk [vmem:[%s1 + $0x208] sm:$0x3] %vm3592, %v1563
  %3854 = vst.msk [vmem:[%s1 + $0x20a] sm:$0x3] %vm3592, %v1567
  %3855 = vst.msk [vmem:[%s1 + $0x20c] sm:$0x3] %vm3592, %v1571
  %3856 = vst.msk [vmem:[%s1 + $0x20e] sm:$0x3] %vm3592, %v1575
  %3857 = vst.msk [vmem:[%s1 + $0x210] sm:$0x3] %vm3592, %v1579
  %3858 = vst.msk [vmem:[%s1 + $0x212] sm:$0x3] %vm3592, %v1583
  %3859 = vst.msk [vmem:[%s1 + $0x214] sm:$0x3] %vm3592, %v1587
  %3860 = vst.msk [vmem:[%s1 + $0x216] sm:$0x3] %vm3592, %v1591
  %3861 = vst.msk [vmem:[%s1 + $0x218] sm:$0x3] %vm3592, %v1595
  %3862 = vst.msk [vmem:[%s1 + $0x21a] sm:$0x3] %vm3592, %v1599
  %3863 = vst.msk [vmem:[%s1 + $0x21c] sm:$0x3] %vm3592, %v1603
  %3864 = vst.msk [vmem:[%s1 + $0x21e] sm:$0x3] %vm3592, %v1607
  %3865 = vst.msk [vmem:[%s1 + $0x220] sm:$0x3] %vm3592, %v1547
  %3866 = vst.msk [vmem:[%s1 + $0x222] sm:$0x3] %vm3592, %v1551
  %3867 = vst.msk [vmem:[%s1 + $0x224] sm:$0x3] %vm3592, %v1555
  %3868 = vst.msk [vmem:[%s1 + $0x226] sm:$0x3] %vm3592, %v1559
  %3869 = vst.msk [vmem:[%s1 + $0x228] sm:$0x3] %vm3592, %v1563
  %3870 = vst.msk [vmem:[%s1 + $0x22a] sm:$0x3] %vm3592, %v1567
  %3871 = vst.msk [vmem:[%s1 + $0x22c] sm:$0x3] %vm3592, %v1571
  %3872 = vst.msk [vmem:[%s1 + $0x22e] sm:$0x3] %vm3592, %v1575
  %3873 = vst.msk [vmem:[%s1 + $0x230] sm:$0x3] %vm3592, %v1579
  %3874 = vst.msk [vmem:[%s1 + $0x232] sm:$0x3] %vm3592, %v1583
  %3875 = vst.msk [vmem:[%s1 + $0x234] sm:$0x3] %vm3592, %v1587
  %3876 = vst.msk [vmem:[%s1 + $0x236] sm:$0x3] %vm3592, %v1591
  %3877 = vst.msk [vmem:[%s1 + $0x238] sm:$0x3] %vm3592, %v1595
  %3878 = vst.msk [vmem:[%s1 + $0x23a] sm:$0x3] %vm3592, %v1599
  %3879 = vst.msk [vmem:[%s1 + $0x23c] sm:$0x3] %vm3592, %v1603
  %3880 = vst.msk [vmem:[%s1 + $0x23e] sm:$0x3] %vm3592, %v1607
  %3881 = vst.msk [vmem:[%s1 + $0x240] sm:$0x3] %vm3592, %v1611
  %3882 = vst.msk [vmem:[%s1 + $0x242] sm:$0x3] %vm3592, %v1615
  %3883 = vst.msk [vmem:[%s1 + $0x244] sm:$0x3] %vm3592, %v1619
  %3884 = vst.msk [vmem:[%s1 + $0x246] sm:$0x3] %vm3592, %v1623
  %3885 = vst.msk [vmem:[%s1 + $0x248] sm:$0x3] %vm3592, %v1627
  %3886 = vst.msk [vmem:[%s1 + $0x24a] sm:$0x3] %vm3592, %v1631
  %3887 = vst.msk [vmem:[%s1 + $0x24c] sm:$0x3] %vm3592, %v1635
  %3888 = vst.msk [vmem:[%s1 + $0x24e] sm:$0x3] %vm3592, %v1639
  %3889 = vst.msk [vmem:[%s1 + $0x250] sm:$0x3] %vm3592, %v1643
  %3890 = vst.msk [vmem:[%s1 + $0x252] sm:$0x3] %vm3592, %v1647
  %3891 = vst.msk [vmem:[%s1 + $0x254] sm:$0x3] %vm3592, %v1651
  %3892 = vst.msk [vmem:[%s1 + $0x256] sm:$0x3] %vm3592, %v1655
  %3893 = vst.msk [vmem:[%s1 + $0x258] sm:$0x3] %vm3592, %v1659
  %3894 = vst.msk [vmem:[%s1 + $0x25a] sm:$0x3] %vm3592, %v1663
  %3895 = vst.msk [vmem:[%s1 + $0x25c] sm:$0x3] %vm3592, %v1667
  %3896 = vst.msk [vmem:[%s1 + $0x25e] sm:$0x3] %vm3592, %v1671
  %3897 = vst.msk [vmem:[%s1 + $0x260] sm:$0x3] %vm3592, %v1611
  %3898 = vst.msk [vmem:[%s1 + $0x262] sm:$0x3] %vm3592, %v1615
  %3899 = vst.msk [vmem:[%s1 + $0x264] sm:$0x3] %vm3592, %v1619
  %3900 = vst.msk [vmem:[%s1 + $0x266] sm:$0x3] %vm3592, %v1623
  %3901 = vst.msk [vmem:[%s1 + $0x268] sm:$0x3] %vm3592, %v1627
  %3902 = vst.msk [vmem:[%s1 + $0x26a] sm:$0x3] %vm3592, %v1631
  %3903 = vst.msk [vmem:[%s1 + $0x26c] sm:$0x3] %vm3592, %v1635
  %3904 = vst.msk [vmem:[%s1 + $0x26e] sm:$0x3] %vm3592, %v1639
  %3905 = vst.msk [vmem:[%s1 + $0x270] sm:$0x3] %vm3592, %v1643
  %3906 = vst.msk [vmem:[%s1 + $0x272] sm:$0x3] %vm3592, %v1647
  %3907 = vst.msk [vmem:[%s1 + $0x274] sm:$0x3] %vm3592, %v1651
  %3908 = vst.msk [vmem:[%s1 + $0x276] sm:$0x3] %vm3592, %v1655
  %3909 = vst.msk [vmem:[%s1 + $0x278] sm:$0x3] %vm3592, %v1659
  %3910 = vst.msk [vmem:[%s1 + $0x27a] sm:$0x3] %vm3592, %v1663
  %3911 = vst.msk [vmem:[%s1 + $0x27c] sm:$0x3] %vm3592, %v1667
  %3912 = vst.msk [vmem:[%s1 + $0x27e] sm:$0x3] %vm3592, %v1671
  %3913 = vst.msk [vmem:[%s1 + $0x280] sm:$0x3] %vm3592, %v1675
  %3914 = vst.msk [vmem:[%s1 + $0x282] sm:$0x3] %vm3592, %v1679
  %3915 = vst.msk [vmem:[%s1 + $0x284] sm:$0x3] %vm3592, %v1683
  %3916 = vst.msk [vmem:[%s1 + $0x286] sm:$0x3] %vm3592, %v1687
  %3917 = vst.msk [vmem:[%s1 + $0x288] sm:$0x3] %vm3592, %v1691
  %3918 = vst.msk [vmem:[%s1 + $0x28a] sm:$0x3] %vm3592, %v1695
  %3919 = vst.msk [vmem:[%s1 + $0x28c] sm:$0x3] %vm3592, %v1699
  %3920 = vst.msk [vmem:[%s1 + $0x28e] sm:$0x3] %vm3592, %v1703
  %3921 = vst.msk [vmem:[%s1 + $0x290] sm:$0x3] %vm3592, %v1707
  %3922 = vst.msk [vmem:[%s1 + $0x292] sm:$0x3] %vm3592, %v1711
  %3923 = vst.msk [vmem:[%s1 + $0x294] sm:$0x3] %vm3592, %v1715
  %3924 = vst.msk [vmem:[%s1 + $0x296] sm:$0x3] %vm3592, %v1719
  %3925 = vst.msk [vmem:[%s1 + $0x298] sm:$0x3] %vm3592, %v1723
  %3926 = vst.msk [vmem:[%s1 + $0x29a] sm:$0x3] %vm3592, %v1727
  %3927 = vst.msk [vmem:[%s1 + $0x29c] sm:$0x3] %vm3592, %v1731
  %3928 = vst.msk [vmem:[%s1 + $0x29e] sm:$0x3] %vm3592, %v1735
  %3929 = vst.msk [vmem:[%s1 + $0x2a0] sm:$0x3] %vm3592, %v1675
  %3930 = vst.msk [vmem:[%s1 + $0x2a2] sm:$0x3] %vm3592, %v1679
  %3931 = vst.msk [vmem:[%s1 + $0x2a4] sm:$0x3] %vm3592, %v1683
  %3932 = vst.msk [vmem:[%s1 + $0x2a6] sm:$0x3] %vm3592, %v1687
  %3933 = vst.msk [vmem:[%s1 + $0x2a8] sm:$0x3] %vm3592, %v1691
  %3934 = vst.msk [vmem:[%s1 + $0x2aa] sm:$0x3] %vm3592, %v1695
  %3935 = vst.msk [vmem:[%s1 + $0x2ac] sm:$0x3] %vm3592, %v1699
  %3936 = vst.msk [vmem:[%s1 + $0x2ae] sm:$0x3] %vm3592, %v1703
  %3937 = vst.msk [vmem:[%s1 + $0x2b0] sm:$0x3] %vm3592, %v1707
  %3938 = vst.msk [vmem:[%s1 + $0x2b2] sm:$0x3] %vm3592, %v1711
  %3939 = vst.msk [vmem:[%s1 + $0x2b4] sm:$0x3] %vm3592, %v1715
  %3940 = vst.msk [vmem:[%s1 + $0x2b6] sm:$0x3] %vm3592, %v1719
  %3941 = vst.msk [vmem:[%s1 + $0x2b8] sm:$0x3] %vm3592, %v1723
  %3942 = vst.msk [vmem:[%s1 + $0x2ba] sm:$0x3] %vm3592, %v1727
  %3943 = vst.msk [vmem:[%s1 + $0x2bc] sm:$0x3] %vm3592, %v1731
  %3944 = vst.msk [vmem:[%s1 + $0x2be] sm:$0x3] %vm3592, %v1735
  %3945 = vst.msk [vmem:[%s1 + $0x2c0] sm:$0x3] %vm3592, %v1739
  %3946 = vst.msk [vmem:[%s1 + $0x2c2] sm:$0x3] %vm3592, %v1743
  %3947 = vst.msk [vmem:[%s1 + $0x2c4] sm:$0x3] %vm3592, %v1747
  %3948 = vst.msk [vmem:[%s1 + $0x2c6] sm:$0x3] %vm3592, %v1751
  %3949 = vst.msk [vmem:[%s1 + $0x2c8] sm:$0x3] %vm3592, %v1755
  %3950 = vst.msk [vmem:[%s1 + $0x2ca] sm:$0x3] %vm3592, %v1759
  %3951 = vst.msk [vmem:[%s1 + $0x2cc] sm:$0x3] %vm3592, %v1763
  %3952 = vst.msk [vmem:[%s1 + $0x2ce] sm:$0x3] %vm3592, %v1767
  %3953 = vst.msk [vmem:[%s1 + $0x2d0] sm:$0x3] %vm3592, %v1771
  %3954 = vst.msk [vmem:[%s1 + $0x2d2] sm:$0x3] %vm3592, %v1775
  %3955 = vst.msk [vmem:[%s1 + $0x2d4] sm:$0x3] %vm3592, %v1779
  %3956 = vst.msk [vmem:[%s1 + $0x2d6] sm:$0x3] %vm3592, %v1783
  %3957 = vst.msk [vmem:[%s1 + $0x2d8] sm:$0x3] %vm3592, %v1787
  %3958 = vst.msk [vmem:[%s1 + $0x2da] sm:$0x3] %vm3592, %v1791
  %3959 = vst.msk [vmem:[%s1 + $0x2dc] sm:$0x3] %vm3592, %v1795
  %3960 = vst.msk [vmem:[%s1 + $0x2de] sm:$0x3] %vm3592, %v1799
  %3961 = vst.msk [vmem:[%s1 + $0x2e0] sm:$0x3] %vm3592, %v1739
  %3962 = vst.msk [vmem:[%s1 + $0x2e2] sm:$0x3] %vm3592, %v1743
  %3963 = vst.msk [vmem:[%s1 + $0x2e4] sm:$0x3] %vm3592, %v1747
  %3964 = vst.msk [vmem:[%s1 + $0x2e6] sm:$0x3] %vm3592, %v1751
  %3965 = vst.msk [vmem:[%s1 + $0x2e8] sm:$0x3] %vm3592, %v1755
  %3966 = vst.msk [vmem:[%s1 + $0x2ea] sm:$0x3] %vm3592, %v1759
  %3967 = vst.msk [vmem:[%s1 + $0x2ec] sm:$0x3] %vm3592, %v1763
  %3968 = vst.msk [vmem:[%s1 + $0x2ee] sm:$0x3] %vm3592, %v1767
  %3969 = vst.msk [vmem:[%s1 + $0x2f0] sm:$0x3] %vm3592, %v1771
  %3970 = vst.msk [vmem:[%s1 + $0x2f2] sm:$0x3] %vm3592, %v1775
  %3971 = vst.msk [vmem:[%s1 + $0x2f4] sm:$0x3] %vm3592, %v1779
  %3972 = vst.msk [vmem:[%s1 + $0x2f6] sm:$0x3] %vm3592, %v1783
  %3973 = vst.msk [vmem:[%s1 + $0x2f8] sm:$0x3] %vm3592, %v1787
  %3974 = vst.msk [vmem:[%s1 + $0x2fa] sm:$0x3] %vm3592, %v1791
  %3975 = vst.msk [vmem:[%s1 + $0x2fc] sm:$0x3] %vm3592, %v1795
  %3976 = vst.msk [vmem:[%s1 + $0x2fe] sm:$0x3] %vm3592, %v1799
  %3977 = vst.msk [vmem:[%s1 + $0x300] sm:$0x3] %vm3592, %v1803
  %3978 = vst.msk [vmem:[%s1 + $0x302] sm:$0x3] %vm3592, %v1807
  %3979 = vst.msk [vmem:[%s1 + $0x304] sm:$0x3] %vm3592, %v1811
  %3980 = vst.msk [vmem:[%s1 + $0x306] sm:$0x3] %vm3592, %v1815
  %3981 = vst.msk [vmem:[%s1 + $0x308] sm:$0x3] %vm3592, %v1819
  %3982 = vst.msk [vmem:[%s1 + $0x30a] sm:$0x3] %vm3592, %v1823
  %3983 = vst.msk [vmem:[%s1 + $0x30c] sm:$0x3] %vm3592, %v1827
  %3984 = vst.msk [vmem:[%s1 + $0x30e] sm:$0x3] %vm3592, %v1831
  %3985 = vst.msk [vmem:[%s1 + $0x310] sm:$0x3] %vm3592, %v1835
  %3986 = vst.msk [vmem:[%s1 + $0x312] sm:$0x3] %vm3592, %v1839
  %3987 = vst.msk [vmem:[%s1 + $0x314] sm:$0x3] %vm3592, %v1843
  %3988 = vst.msk [vmem:[%s1 + $0x316] sm:$0x3] %vm3592, %v1847
  %3989 = vst.msk [vmem:[%s1 + $0x318] sm:$0x3] %vm3592, %v1851
  %3990 = vst.msk [vmem:[%s1 + $0x31a] sm:$0x3] %vm3592, %v1855
  %3991 = vst.msk [vmem:[%s1 + $0x31c] sm:$0x3] %vm3592, %v1859
  %3992 = vst.msk [vmem:[%s1 + $0x31e] sm:$0x3] %vm3592, %v1863
  %3993 = vst.msk [vmem:[%s1 + $0x320] sm:$0x3] %vm3592, %v1803
  %3994 = vst.msk [vmem:[%s1 + $0x322] sm:$0x3] %vm3592, %v1807
  %3995 = vst.msk [vmem:[%s1 + $0x324] sm:$0x3] %vm3592, %v1811
  %3996 = vst.msk [vmem:[%s1 + $0x326] sm:$0x3] %vm3592, %v1815
  %3997 = vst.msk [vmem:[%s1 + $0x328] sm:$0x3] %vm3592, %v1819
  %3998 = vst.msk [vmem:[%s1 + $0x32a] sm:$0x3] %vm3592, %v1823
  %3999 = vst.msk [vmem:[%s1 + $0x32c] sm:$0x3] %vm3592, %v1827
  %4000 = vst.msk [vmem:[%s1 + $0x32e] sm:$0x3] %vm3592, %v1831
  %4001 = vst.msk [vmem:[%s1 + $0x330] sm:$0x3] %vm3592, %v1835
  %4002 = vst.msk [vmem:[%s1 + $0x332] sm:$0x3] %vm3592, %v1839
  %4003 = vst.msk [vmem:[%s1 + $0x334] sm:$0x3] %vm3592, %v1843
  %4004 = vst.msk [vmem:[%s1 + $0x336] sm:$0x3] %vm3592, %v1847
  %4005 = vst.msk [vmem:[%s1 + $0x338] sm:$0x3] %vm3592, %v1851
  %4006 = vst.msk [vmem:[%s1 + $0x33a] sm:$0x3] %vm3592, %v1855
  %4007 = vst.msk [vmem:[%s1 + $0x33c] sm:$0x3] %vm3592, %v1859
  %4008 = vst.msk [vmem:[%s1 + $0x33e] sm:$0x3] %vm3592, %v1863
  %4009 = vst.msk [vmem:[%s1 + $0x340] sm:$0x3] %vm3592, %v1867
  %4010 = vst.msk [vmem:[%s1 + $0x342] sm:$0x3] %vm3592, %v1871
  %4011 = vst.msk [vmem:[%s1 + $0x344] sm:$0x3] %vm3592, %v1875
  %4012 = vst.msk [vmem:[%s1 + $0x346] sm:$0x3] %vm3592, %v1879
  %4013 = vst.msk [vmem:[%s1 + $0x348] sm:$0x3] %vm3592, %v1883
  %4014 = vst.msk [vmem:[%s1 + $0x34a] sm:$0x3] %vm3592, %v1887
  %4015 = vst.msk [vmem:[%s1 + $0x34c] sm:$0x3] %vm3592, %v1891
  %4016 = vst.msk [vmem:[%s1 + $0x34e] sm:$0x3] %vm3592, %v1895
  %4017 = vst.msk [vmem:[%s1 + $0x350] sm:$0x3] %vm3592, %v1899
  %4018 = vst.msk [vmem:[%s1 + $0x352] sm:$0x3] %vm3592, %v1903
  %4019 = vst.msk [vmem:[%s1 + $0x354] sm:$0x3] %vm3592, %v1907
  %4020 = vst.msk [vmem:[%s1 + $0x356] sm:$0x3] %vm3592, %v1911
  %4021 = vst.msk [vmem:[%s1 + $0x358] sm:$0x3] %vm3592, %v1915
  %4022 = vst.msk [vmem:[%s1 + $0x35a] sm:$0x3] %vm3592, %v1919
  %4023 = vst.msk [vmem:[%s1 + $0x35c] sm:$0x3] %vm3592, %v1923
  %4024 = vst.msk [vmem:[%s1 + $0x35e] sm:$0x3] %vm3592, %v1927
  %4025 = vst.msk [vmem:[%s1 + $0x360] sm:$0x3] %vm3592, %v1867
  %4026 = vst.msk [vmem:[%s1 + $0x362] sm:$0x3] %vm3592, %v1871
  %4027 = vst.msk [vmem:[%s1 + $0x364] sm:$0x3] %vm3592, %v1875
  %4028 = vst.msk [vmem:[%s1 + $0x366] sm:$0x3] %vm3592, %v1879
  %4029 = vst.msk [vmem:[%s1 + $0x368] sm:$0x3] %vm3592, %v1883
  %4030 = vst.msk [vmem:[%s1 + $0x36a] sm:$0x3] %vm3592, %v1887
  %4031 = vst.msk [vmem:[%s1 + $0x36c] sm:$0x3] %vm3592, %v1891
  %4032 = vst.msk [vmem:[%s1 + $0x36e] sm:$0x3] %vm3592, %v1895
  %4033 = vst.msk [vmem:[%s1 + $0x370] sm:$0x3] %vm3592, %v1899
  %4034 = vst.msk [vmem:[%s1 + $0x372] sm:$0x3] %vm3592, %v1903
  %4035 = vst.msk [vmem:[%s1 + $0x374] sm:$0x3] %vm3592, %v1907
  %4036 = vst.msk [vmem:[%s1 + $0x376] sm:$0x3] %vm3592, %v1911
  %4037 = vst.msk [vmem:[%s1 + $0x378] sm:$0x3] %vm3592, %v1915
  %4038 = vst.msk [vmem:[%s1 + $0x37a] sm:$0x3] %vm3592, %v1919
  %4039 = vst.msk [vmem:[%s1 + $0x37c] sm:$0x3] %vm3592, %v1923
  %4040 = vst.msk [vmem:[%s1 + $0x37e] sm:$0x3] %vm3592, %v1927
  %4041 = vst.msk [vmem:[%s1 + $0x380] sm:$0x3] %vm3592, %v1931
  %4042 = vst.msk [vmem:[%s1 + $0x382] sm:$0x3] %vm3592, %v1935
  %4043 = vst.msk [vmem:[%s1 + $0x384] sm:$0x3] %vm3592, %v1939
  %4044 = vst.msk [vmem:[%s1 + $0x386] sm:$0x3] %vm3592, %v1943
  %4045 = vst.msk [vmem:[%s1 + $0x388] sm:$0x3] %vm3592, %v1947
  %4046 = vst.msk [vmem:[%s1 + $0x38a] sm:$0x3] %vm3592, %v1951
  %4047 = vst.msk [vmem:[%s1 + $0x38c] sm:$0x3] %vm3592, %v1955
  %4048 = vst.msk [vmem:[%s1 + $0x38e] sm:$0x3] %vm3592, %v1959
  %4049 = vst.msk [vmem:[%s1 + $0x390] sm:$0x3] %vm3592, %v1963
  %4050 = vst.msk [vmem:[%s1 + $0x392] sm:$0x3] %vm3592, %v1967
  %4051 = vst.msk [vmem:[%s1 + $0x394] sm:$0x3] %vm3592, %v1971
  %4052 = vst.msk [vmem:[%s1 + $0x396] sm:$0x3] %vm3592, %v1975
  %4053 = vst.msk [vmem:[%s1 + $0x398] sm:$0x3] %vm3592, %v1979
  %4054 = vst.msk [vmem:[%s1 + $0x39a] sm:$0x3] %vm3592, %v1983
  %4055 = vst.msk [vmem:[%s1 + $0x39c] sm:$0x3] %vm3592, %v1987
  %4056 = vst.msk [vmem:[%s1 + $0x39e] sm:$0x3] %vm3592, %v1991
  %4057 = vst.msk [vmem:[%s1 + $0x3a0] sm:$0x3] %vm3592, %v1931
  %4058 = vst.msk [vmem:[%s1 + $0x3a2] sm:$0x3] %vm3592, %v1935
  %4059 = vst.msk [vmem:[%s1 + $0x3a4] sm:$0x3] %vm3592, %v1939
  %4060 = vst.msk [vmem:[%s1 + $0x3a6] sm:$0x3] %vm3592, %v1943
  %4061 = vst.msk [vmem:[%s1 + $0x3a8] sm:$0x3] %vm3592, %v1947
  %4062 = vst.msk [vmem:[%s1 + $0x3aa] sm:$0x3] %vm3592, %v1951
  %4063 = vst.msk [vmem:[%s1 + $0x3ac] sm:$0x3] %vm3592, %v1955
  %4064 = vst.msk [vmem:[%s1 + $0x3ae] sm:$0x3] %vm3592, %v1959
  %4065 = vst.msk [vmem:[%s1 + $0x3b0] sm:$0x3] %vm3592, %v1963
  %4066 = vst.msk [vmem:[%s1 + $0x3b2] sm:$0x3] %vm3592, %v1967
  %4067 = vst.msk [vmem:[%s1 + $0x3b4] sm:$0x3] %vm3592, %v1971
  %4068 = vst.msk [vmem:[%s1 + $0x3b6] sm:$0x3] %vm3592, %v1975
  %4069 = vst.msk [vmem:[%s1 + $0x3b8] sm:$0x3] %vm3592, %v1979
  %4070 = vst.msk [vmem:[%s1 + $0x3ba] sm:$0x3] %vm3592, %v1983
  %4071 = vst.msk [vmem:[%s1 + $0x3bc] sm:$0x3] %vm3592, %v1987
  %4072 = vst.msk [vmem:[%s1 + $0x3be] sm:$0x3] %vm3592, %v1991
  %4073 = vst.msk [vmem:[%s1 + $0x3c0] sm:$0x3] %vm3592, %v1995
  %4074 = vst.msk [vmem:[%s1 + $0x3c2] sm:$0x3] %vm3592, %v1999
  %4075 = vst.msk [vmem:[%s1 + $0x3c4] sm:$0x3] %vm3592, %v2003
  %4076 = vst.msk [vmem:[%s1 + $0x3c6] sm:$0x3] %vm3592, %v2007
  %4077 = vst.msk [vmem:[%s1 + $0x3c8] sm:$0x3] %vm3592, %v2011
  %4078 = vst.msk [vmem:[%s1 + $0x3ca] sm:$0x3] %vm3592, %v2015
  %4079 = vst.msk [vmem:[%s1 + $0x3cc] sm:$0x3] %vm3592, %v2019
  %4080 = vst.msk [vmem:[%s1 + $0x3ce] sm:$0x3] %vm3592, %v2023
  %4081 = vst.msk [vmem:[%s1 + $0x3d0] sm:$0x3] %vm3592, %v2027
  %4082 = vst.msk [vmem:[%s1 + $0x3d2] sm:$0x3] %vm3592, %v2031
  %4083 = vst.msk [vmem:[%s1 + $0x3d4] sm:$0x3] %vm3592, %v2035
  %4084 = vst.msk [vmem:[%s1 + $0x3d6] sm:$0x3] %vm3592, %v2039
  %4085 = vst.msk [vmem:[%s1 + $0x3d8] sm:$0x3] %vm3592, %v2043
  %4086 = vst.msk [vmem:[%s1 + $0x3da] sm:$0x3] %vm3592, %v2047
  %4087 = vst.msk [vmem:[%s1 + $0x3dc] sm:$0x3] %vm3592, %v2051
  %4088 = vst.msk [vmem:[%s1 + $0x3de] sm:$0x3] %vm3592, %v2055
  %4089 = vst.msk [vmem:[%s1 + $0x3e0] sm:$0x3] %vm3592, %v1995
  %4090 = vst.msk [vmem:[%s1 + $0x3e2] sm:$0x3] %vm3592, %v1999
  %4091 = vst.msk [vmem:[%s1 + $0x3e4] sm:$0x3] %vm3592, %v2003
  %4092 = vst.msk [vmem:[%s1 + $0x3e6] sm:$0x3] %vm3592, %v2007
  %4093 = vst.msk [vmem:[%s1 + $0x3e8] sm:$0x3] %vm3592, %v2011
  %4094 = vst.msk [vmem:[%s1 + $0x3ea] sm:$0x3] %vm3592, %v2015
  %4095 = vst.msk [vmem:[%s1 + $0x3ec] sm:$0x3] %vm3592, %v2019
  %4096 = vst.msk [vmem:[%s1 + $0x3ee] sm:$0x3] %vm3592, %v2023
  %4097 = vst.msk [vmem:[%s1 + $0x3f0] sm:$0x3] %vm3592, %v2027
  %4098 = vst.msk [vmem:[%s1 + $0x3f2] sm:$0x3] %vm3592, %v2031
  %4099 = vst.msk [vmem:[%s1 + $0x3f4] sm:$0x3] %vm3592, %v2035
  %4100 = vst.msk [vmem:[%s1 + $0x3f6] sm:$0x3] %vm3592, %v2039
  %4101 = vst.msk [vmem:[%s1 + $0x3f8] sm:$0x3] %vm3592, %v2043
  %4102 = vst.msk [vmem:[%s1 + $0x3fa] sm:$0x3] %vm3592, %v2047
  %4103 = vst.msk [vmem:[%s1 + $0x3fc] sm:$0x3] %vm3592, %v2051
  %4104 = vst.msk [vmem:[%s1 + $0x3fe] sm:$0x3] %vm3592, %v2055
  %4105 = vst.msk [vmem:[%s1 + $0x400] sm:$0x3] %vm3592, %v2059
  %4106 = vst.msk [vmem:[%s1 + $0x402] sm:$0x3] %vm3592, %v2063
  %4107 = vst.msk [vmem:[%s1 + $0x404] sm:$0x3] %vm3592, %v2067
  %4108 = vst.msk [vmem:[%s1 + $0x406] sm:$0x3] %vm3592, %v2071
  %4109 = vst.msk [vmem:[%s1 + $0x408] sm:$0x3] %vm3592, %v2075
  %4110 = vst.msk [vmem:[%s1 + $0x40a] sm:$0x3] %vm3592, %v2079
  %4111 = vst.msk [vmem:[%s1 + $0x40c] sm:$0x3] %vm3592, %v2083
  %4112 = vst.msk [vmem:[%s1 + $0x40e] sm:$0x3] %vm3592, %v2087
  %4113 = vst.msk [vmem:[%s1 + $0x410] sm:$0x3] %vm3592, %v2091
  %4114 = vst.msk [vmem:[%s1 + $0x412] sm:$0x3] %vm3592, %v2095
  %4115 = vst.msk [vmem:[%s1 + $0x414] sm:$0x3] %vm3592, %v2099
  %4116 = vst.msk [vmem:[%s1 + $0x416] sm:$0x3] %vm3592, %v2103
  %4117 = vst.msk [vmem:[%s1 + $0x418] sm:$0x3] %vm3592, %v2107
  %4118 = vst.msk [vmem:[%s1 + $0x41a] sm:$0x3] %vm3592, %v2111
  %4119 = vst.msk [vmem:[%s1 + $0x41c] sm:$0x3] %vm3592, %v2115
  %4120 = vst.msk [vmem:[%s1 + $0x41e] sm:$0x3] %vm3592, %v2119
  %4121 = vst.msk [vmem:[%s1 + $0x420] sm:$0x3] %vm3592, %v2059
  %4122 = vst.msk [vmem:[%s1 + $0x422] sm:$0x3] %vm3592, %v2063
  %4123 = vst.msk [vmem:[%s1 + $0x424] sm:$0x3] %vm3592, %v2067
  %4124 = vst.msk [vmem:[%s1 + $0x426] sm:$0x3] %vm3592, %v2071
  %4125 = vst.msk [vmem:[%s1 + $0x428] sm:$0x3] %vm3592, %v2075
  %4126 = vst.msk [vmem:[%s1 + $0x42a] sm:$0x3] %vm3592, %v2079
  %4127 = vst.msk [vmem:[%s1 + $0x42c] sm:$0x3] %vm3592, %v2083
  %4128 = vst.msk [vmem:[%s1 + $0x42e] sm:$0x3] %vm3592, %v2087
  %4129 = vst.msk [vmem:[%s1 + $0x430] sm:$0x3] %vm3592, %v2091
  %4130 = vst.msk [vmem:[%s1 + $0x432] sm:$0x3] %vm3592, %v2095
  %4131 = vst.msk [vmem:[%s1 + $0x434] sm:$0x3] %vm3592, %v2099
  %4132 = vst.msk [vmem:[%s1 + $0x436] sm:$0x3] %vm3592, %v2103
  %4133 = vst.msk [vmem:[%s1 + $0x438] sm:$0x3] %vm3592, %v2107
  %4134 = vst.msk [vmem:[%s1 + $0x43a] sm:$0x3] %vm3592, %v2111
  %4135 = vst.msk [vmem:[%s1 + $0x43c] sm:$0x3] %vm3592, %v2115
  %4136 = vst.msk [vmem:[%s1 + $0x43e] sm:$0x3] %vm3592, %v2119
  %4137 = vst.msk [vmem:[%s1 + $0x440] sm:$0x3] %vm3592, %v2123
  %4138 = vst.msk [vmem:[%s1 + $0x442] sm:$0x3] %vm3592, %v2127
  %4139 = vst.msk [vmem:[%s1 + $0x444] sm:$0x3] %vm3592, %v2131
  %4140 = vst.msk [vmem:[%s1 + $0x446] sm:$0x3] %vm3592, %v2135
  %4141 = vst.msk [vmem:[%s1 + $0x448] sm:$0x3] %vm3592, %v2139
  %4142 = vst.msk [vmem:[%s1 + $0x44a] sm:$0x3] %vm3592, %v2143
  %4143 = vst.msk [vmem:[%s1 + $0x44c] sm:$0x3] %vm3592, %v2147
  %4144 = vst.msk [vmem:[%s1 + $0x44e] sm:$0x3] %vm3592, %v2151
  %4145 = vst.msk [vmem:[%s1 + $0x450] sm:$0x3] %vm3592, %v2155
  %4146 = vst.msk [vmem:[%s1 + $0x452] sm:$0x3] %vm3592, %v2159
  %4147 = vst.msk [vmem:[%s1 + $0x454] sm:$0x3] %vm3592, %v2163
  %4148 = vst.msk [vmem:[%s1 + $0x456] sm:$0x3] %vm3592, %v2167
  %4149 = vst.msk [vmem:[%s1 + $0x458] sm:$0x3] %vm3592, %v2171
  %4150 = vst.msk [vmem:[%s1 + $0x45a] sm:$0x3] %vm3592, %v2175
  %4151 = vst.msk [vmem:[%s1 + $0x45c] sm:$0x3] %vm3592, %v2179
  %4152 = vst.msk [vmem:[%s1 + $0x45e] sm:$0x3] %vm3592, %v2183
  %4153 = vst.msk [vmem:[%s1 + $0x460] sm:$0x3] %vm3592, %v2123
  %4154 = vst.msk [vmem:[%s1 + $0x462] sm:$0x3] %vm3592, %v2127
  %4155 = vst.msk [vmem:[%s1 + $0x464] sm:$0x3] %vm3592, %v2131
  %4156 = vst.msk [vmem:[%s1 + $0x466] sm:$0x3] %vm3592, %v2135
  %4157 = vst.msk [vmem:[%s1 + $0x468] sm:$0x3] %vm3592, %v2139
  %4158 = vst.msk [vmem:[%s1 + $0x46a] sm:$0x3] %vm3592, %v2143
  %4159 = vst.msk [vmem:[%s1 + $0x46c] sm:$0x3] %vm3592, %v2147
  %4160 = vst.msk [vmem:[%s1 + $0x46e] sm:$0x3] %vm3592, %v2151
  %4161 = vst.msk [vmem:[%s1 + $0x470] sm:$0x3] %vm3592, %v2155
  %4162 = vst.msk [vmem:[%s1 + $0x472] sm:$0x3] %vm3592, %v2159
  %4163 = vst.msk [vmem:[%s1 + $0x474] sm:$0x3] %vm3592, %v2163
  %4164 = vst.msk [vmem:[%s1 + $0x476] sm:$0x3] %vm3592, %v2167
  %4165 = vst.msk [vmem:[%s1 + $0x478] sm:$0x3] %vm3592, %v2171
  %4166 = vst.msk [vmem:[%s1 + $0x47a] sm:$0x3] %vm3592, %v2175
  %4167 = vst.msk [vmem:[%s1 + $0x47c] sm:$0x3] %vm3592, %v2179
  %4168 = vst.msk [vmem:[%s1 + $0x47e] sm:$0x3] %vm3592, %v2183
  %4169 = vst.msk [vmem:[%s1 + $0x480] sm:$0x3] %vm3592, %v2187
  %4170 = vst.msk [vmem:[%s1 + $0x482] sm:$0x3] %vm3592, %v2191
  %4171 = vst.msk [vmem:[%s1 + $0x484] sm:$0x3] %vm3592, %v2195
  %4172 = vst.msk [vmem:[%s1 + $0x486] sm:$0x3] %vm3592, %v2199
  %4173 = vst.msk [vmem:[%s1 + $0x488] sm:$0x3] %vm3592, %v2203
  %4174 = vst.msk [vmem:[%s1 + $0x48a] sm:$0x3] %vm3592, %v2207
  %4175 = vst.msk [vmem:[%s1 + $0x48c] sm:$0x3] %vm3592, %v2211
  %4176 = vst.msk [vmem:[%s1 + $0x48e] sm:$0x3] %vm3592, %v2215
  %4177 = vst.msk [vmem:[%s1 + $0x490] sm:$0x3] %vm3592, %v2219
  %4178 = vst.msk [vmem:[%s1 + $0x492] sm:$0x3] %vm3592, %v2223
  %4179 = vst.msk [vmem:[%s1 + $0x494] sm:$0x3] %vm3592, %v2227
  %4180 = vst.msk [vmem:[%s1 + $0x496] sm:$0x3] %vm3592, %v2231
  %4181 = vst.msk [vmem:[%s1 + $0x498] sm:$0x3] %vm3592, %v2235
  %4182 = vst.msk [vmem:[%s1 + $0x49a] sm:$0x3] %vm3592, %v2239
  %4183 = vst.msk [vmem:[%s1 + $0x49c] sm:$0x3] %vm3592, %v2243
  %4184 = vst.msk [vmem:[%s1 + $0x49e] sm:$0x3] %vm3592, %v2247
  %4185 = vst.msk [vmem:[%s1 + $0x4a0] sm:$0x3] %vm3592, %v2187
  %4186 = vst.msk [vmem:[%s1 + $0x4a2] sm:$0x3] %vm3592, %v2191
  %4187 = vst.msk [vmem:[%s1 + $0x4a4] sm:$0x3] %vm3592, %v2195
  %4188 = vst.msk [vmem:[%s1 + $0x4a6] sm:$0x3] %vm3592, %v2199
  %4189 = vst.msk [vmem:[%s1 + $0x4a8] sm:$0x3] %vm3592, %v2203
  %4190 = vst.msk [vmem:[%s1 + $0x4aa] sm:$0x3] %vm3592, %v2207
  %4191 = vst.msk [vmem:[%s1 + $0x4ac] sm:$0x3] %vm3592, %v2211
  %4192 = vst.msk [vmem:[%s1 + $0x4ae] sm:$0x3] %vm3592, %v2215
  %4193 = vst.msk [vmem:[%s1 + $0x4b0] sm:$0x3] %vm3592, %v2219
  %4194 = vst.msk [vmem:[%s1 + $0x4b2] sm:$0x3] %vm3592, %v2223
  %4195 = vst.msk [vmem:[%s1 + $0x4b4] sm:$0x3] %vm3592, %v2227
  %4196 = vst.msk [vmem:[%s1 + $0x4b6] sm:$0x3] %vm3592, %v2231
  %4197 = vst.msk [vmem:[%s1 + $0x4b8] sm:$0x3] %vm3592, %v2235
  %4198 = vst.msk [vmem:[%s1 + $0x4ba] sm:$0x3] %vm3592, %v2239
  %4199 = vst.msk [vmem:[%s1 + $0x4bc] sm:$0x3] %vm3592, %v2243
  %4200 = vst.msk [vmem:[%s1 + $0x4be] sm:$0x3] %vm3592, %v2247
  %4201 = vst.msk [vmem:[%s1 + $0x4c0] sm:$0x3] %vm3592, %v2251
  %4202 = vst.msk [vmem:[%s1 + $0x4c2] sm:$0x3] %vm3592, %v2255
  %4203 = vst.msk [vmem:[%s1 + $0x4c4] sm:$0x3] %vm3592, %v2259
  %4204 = vst.msk [vmem:[%s1 + $0x4c6] sm:$0x3] %vm3592, %v2263
  %4205 = vst.msk [vmem:[%s1 + $0x4c8] sm:$0x3] %vm3592, %v2267
  %4206 = vst.msk [vmem:[%s1 + $0x4ca] sm:$0x3] %vm3592, %v2271
  %4207 = vst.msk [vmem:[%s1 + $0x4cc] sm:$0x3] %vm3592, %v2275
  %4208 = vst.msk [vmem:[%s1 + $0x4ce] sm:$0x3] %vm3592, %v2279
  %4209 = vst.msk [vmem:[%s1 + $0x4d0] sm:$0x3] %vm3592, %v2283
  %4210 = vst.msk [vmem:[%s1 + $0x4d2] sm:$0x3] %vm3592, %v2287
  %4211 = vst.msk [vmem:[%s1 + $0x4d4] sm:$0x3] %vm3592, %v2291
  %4212 = vst.msk [vmem:[%s1 + $0x4d6] sm:$0x3] %vm3592, %v2295
  %4213 = vst.msk [vmem:[%s1 + $0x4d8] sm:$0x3] %vm3592, %v2299
  %4214 = vst.msk [vmem:[%s1 + $0x4da] sm:$0x3] %vm3592, %v2303
  %4215 = vst.msk [vmem:[%s1 + $0x4dc] sm:$0x3] %vm3592, %v2307
  %4216 = vst.msk [vmem:[%s1 + $0x4de] sm:$0x3] %vm3592, %v2311
  %4217 = vst.msk [vmem:[%s1 + $0x4e0] sm:$0x3] %vm3592, %v2251
  %4218 = vst.msk [vmem:[%s1 + $0x4e2] sm:$0x3] %vm3592, %v2255
  %4219 = vst.msk [vmem:[%s1 + $0x4e4] sm:$0x3] %vm3592, %v2259
  %4220 = vst.msk [vmem:[%s1 + $0x4e6] sm:$0x3] %vm3592, %v2263
  %4221 = vst.msk [vmem:[%s1 + $0x4e8] sm:$0x3] %vm3592, %v2267
  %4222 = vst.msk [vmem:[%s1 + $0x4ea] sm:$0x3] %vm3592, %v2271
  %4223 = vst.msk [vmem:[%s1 + $0x4ec] sm:$0x3] %vm3592, %v2275
  %4224 = vst.msk [vmem:[%s1 + $0x4ee] sm:$0x3] %vm3592, %v2279
  %4225 = vst.msk [vmem:[%s1 + $0x4f0] sm:$0x3] %vm3592, %v2283
  %4226 = vst.msk [vmem:[%s1 + $0x4f2] sm:$0x3] %vm3592, %v2287
  %4227 = vst.msk [vmem:[%s1 + $0x4f4] sm:$0x3] %vm3592, %v2291
  %4228 = vst.msk [vmem:[%s1 + $0x4f6] sm:$0x3] %vm3592, %v2295
  %4229 = vst.msk [vmem:[%s1 + $0x4f8] sm:$0x3] %vm3592, %v2299
  %4230 = vst.msk [vmem:[%s1 + $0x4fa] sm:$0x3] %vm3592, %v2303
  %4231 = vst.msk [vmem:[%s1 + $0x4fc] sm:$0x3] %vm3592, %v2307
  %4232 = vst.msk [vmem:[%s1 + $0x4fe] sm:$0x3] %vm3592, %v2311
  %4233 = vst.msk [vmem:[%s1 + $0x500] sm:$0x3] %vm3592, %v2315
  %4234 = vst.msk [vmem:[%s1 + $0x502] sm:$0x3] %vm3592, %v2319
  %4235 = vst.msk [vmem:[%s1 + $0x504] sm:$0x3] %vm3592, %v2323
  %4236 = vst.msk [vmem:[%s1 + $0x506] sm:$0x3] %vm3592, %v2327
  %4237 = vst.msk [vmem:[%s1 + $0x508] sm:$0x3] %vm3592, %v2331
  %4238 = vst.msk [vmem:[%s1 + $0x50a] sm:$0x3] %vm3592, %v2335
  %4239 = vst.msk [vmem:[%s1 + $0x50c] sm:$0x3] %vm3592, %v2339
  %4240 = vst.msk [vmem:[%s1 + $0x50e] sm:$0x3] %vm3592, %v2343
  %4241 = vst.msk [vmem:[%s1 + $0x510] sm:$0x3] %vm3592, %v2347
  %4242 = vst.msk [vmem:[%s1 + $0x512] sm:$0x3] %vm3592, %v2351
  %4243 = vst.msk [vmem:[%s1 + $0x514] sm:$0x3] %vm3592, %v2355
  %4244 = vst.msk [vmem:[%s1 + $0x516] sm:$0x3] %vm3592, %v2359
  %4245 = vst.msk [vmem:[%s1 + $0x518] sm:$0x3] %vm3592, %v2363
  %4246 = vst.msk [vmem:[%s1 + $0x51a] sm:$0x3] %vm3592, %v2367
  %4247 = vst.msk [vmem:[%s1 + $0x51c] sm:$0x3] %vm3592, %v2371
  %4248 = vst.msk [vmem:[%s1 + $0x51e] sm:$0x3] %vm3592, %v2375
  %4249 = vst.msk [vmem:[%s1 + $0x520] sm:$0x3] %vm3592, %v2315
  %4250 = vst.msk [vmem:[%s1 + $0x522] sm:$0x3] %vm3592, %v2319
  %4251 = vst.msk [vmem:[%s1 + $0x524] sm:$0x3] %vm3592, %v2323
  %4252 = vst.msk [vmem:[%s1 + $0x526] sm:$0x3] %vm3592, %v2327
  %4253 = vst.msk [vmem:[%s1 + $0x528] sm:$0x3] %vm3592, %v2331
  %4254 = vst.msk [vmem:[%s1 + $0x52a] sm:$0x3] %vm3592, %v2335
  %4255 = vst.msk [vmem:[%s1 + $0x52c] sm:$0x3] %vm3592, %v2339
  %4256 = vst.msk [vmem:[%s1 + $0x52e] sm:$0x3] %vm3592, %v2343
  %4257 = vst.msk [vmem:[%s1 + $0x530] sm:$0x3] %vm3592, %v2347
  %4258 = vst.msk [vmem:[%s1 + $0x532] sm:$0x3] %vm3592, %v2351
  %4259 = vst.msk [vmem:[%s1 + $0x534] sm:$0x3] %vm3592, %v2355
  %4260 = vst.msk [vmem:[%s1 + $0x536] sm:$0x3] %vm3592, %v2359
  %4261 = vst.msk [vmem:[%s1 + $0x538] sm:$0x3] %vm3592, %v2363
  %4262 = vst.msk [vmem:[%s1 + $0x53a] sm:$0x3] %vm3592, %v2367
  %4263 = vst.msk [vmem:[%s1 + $0x53c] sm:$0x3] %vm3592, %v2371
  %4264 = vst.msk [vmem:[%s1 + $0x53e] sm:$0x3] %vm3592, %v2375
  %4265 = vst.msk [vmem:[%s1 + $0x540] sm:$0x3] %vm3592, %v2379
  %4266 = vst.msk [vmem:[%s1 + $0x542] sm:$0x3] %vm3592, %v2383
  %4267 = vst.msk [vmem:[%s1 + $0x544] sm:$0x3] %vm3592, %v2387
  %4268 = vst.msk [vmem:[%s1 + $0x546] sm:$0x3] %vm3592, %v2391
  %4269 = vst.msk [vmem:[%s1 + $0x548] sm:$0x3] %vm3592, %v2395
  %4270 = vst.msk [vmem:[%s1 + $0x54a] sm:$0x3] %vm3592, %v2399
  %4271 = vst.msk [vmem:[%s1 + $0x54c] sm:$0x3] %vm3592, %v2403
  %4272 = vst.msk [vmem:[%s1 + $0x54e] sm:$0x3] %vm3592, %v2407
  %4273 = vst.msk [vmem:[%s1 + $0x550] sm:$0x3] %vm3592, %v2411
  %4274 = vst.msk [vmem:[%s1 + $0x552] sm:$0x3] %vm3592, %v2415
  %4275 = vst.msk [vmem:[%s1 + $0x554] sm:$0x3] %vm3592, %v2419
  %4276 = vst.msk [vmem:[%s1 + $0x556] sm:$0x3] %vm3592, %v2423
  %4277 = vst.msk [vmem:[%s1 + $0x558] sm:$0x3] %vm3592, %v2427
  %4278 = vst.msk [vmem:[%s1 + $0x55a] sm:$0x3] %vm3592, %v2431
  %4279 = vst.msk [vmem:[%s1 + $0x55c] sm:$0x3] %vm3592, %v2435
  %4280 = vst.msk [vmem:[%s1 + $0x55e] sm:$0x3] %vm3592, %v2439
  %4281 = vst.msk [vmem:[%s1 + $0x560] sm:$0x3] %vm3592, %v2379
  %4282 = vst.msk [vmem:[%s1 + $0x562] sm:$0x3] %vm3592, %v2383
  %4283 = vst.msk [vmem:[%s1 + $0x564] sm:$0x3] %vm3592, %v2387
  %4284 = vst.msk [vmem:[%s1 + $0x566] sm:$0x3] %vm3592, %v2391
  %4285 = vst.msk [vmem:[%s1 + $0x568] sm:$0x3] %vm3592, %v2395
  %4286 = vst.msk [vmem:[%s1 + $0x56a] sm:$0x3] %vm3592, %v2399
  %4287 = vst.msk [vmem:[%s1 + $0x56c] sm:$0x3] %vm3592, %v2403
  %4288 = vst.msk [vmem:[%s1 + $0x56e] sm:$0x3] %vm3592, %v2407
  %4289 = vst.msk [vmem:[%s1 + $0x570] sm:$0x3] %vm3592, %v2411
  %4290 = vst.msk [vmem:[%s1 + $0x572] sm:$0x3] %vm3592, %v2415
  %4291 = vst.msk [vmem:[%s1 + $0x574] sm:$0x3] %vm3592, %v2419
  %4292 = vst.msk [vmem:[%s1 + $0x576] sm:$0x3] %vm3592, %v2423
  %4293 = vst.msk [vmem:[%s1 + $0x578] sm:$0x3] %vm3592, %v2427
  %4294 = vst.msk [vmem:[%s1 + $0x57a] sm:$0x3] %vm3592, %v2431
  %4295 = vst.msk [vmem:[%s1 + $0x57c] sm:$0x3] %vm3592, %v2435
  %4296 = vst.msk [vmem:[%s1 + $0x57e] sm:$0x3] %vm3592, %v2439
  %4297 = vst.msk [vmem:[%s1 + $0x580] sm:$0x3] %vm3592, %v2443
  %4298 = vst.msk [vmem:[%s1 + $0x582] sm:$0x3] %vm3592, %v2447
  %4299 = vst.msk [vmem:[%s1 + $0x584] sm:$0x3] %vm3592, %v2451
  %4300 = vst.msk [vmem:[%s1 + $0x586] sm:$0x3] %vm3592, %v2455
  %4301 = vst.msk [vmem:[%s1 + $0x588] sm:$0x3] %vm3592, %v2459
  %4302 = vst.msk [vmem:[%s1 + $0x58a] sm:$0x3] %vm3592, %v2463
  %4303 = vst.msk [vmem:[%s1 + $0x58c] sm:$0x3] %vm3592, %v2467
  %4304 = vst.msk [vmem:[%s1 + $0x58e] sm:$0x3] %vm3592, %v2471
  %4305 = vst.msk [vmem:[%s1 + $0x590] sm:$0x3] %vm3592, %v2475
  %4306 = vst.msk [vmem:[%s1 + $0x592] sm:$0x3] %vm3592, %v2479
  %4307 = vst.msk [vmem:[%s1 + $0x594] sm:$0x3] %vm3592, %v2483
  %4308 = vst.msk [vmem:[%s1 + $0x596] sm:$0x3] %vm3592, %v2487
  %4309 = vst.msk [vmem:[%s1 + $0x598] sm:$0x3] %vm3592, %v2491
  %4310 = vst.msk [vmem:[%s1 + $0x59a] sm:$0x3] %vm3592, %v2495
  %4311 = vst.msk [vmem:[%s1 + $0x59c] sm:$0x3] %vm3592, %v2499
  %4312 = vst.msk [vmem:[%s1 + $0x59e] sm:$0x3] %vm3592, %v2503
  %4313 = vst.msk [vmem:[%s1 + $0x5a0] sm:$0x3] %vm3592, %v2443
  %4314 = vst.msk [vmem:[%s1 + $0x5a2] sm:$0x3] %vm3592, %v2447
  %4315 = vst.msk [vmem:[%s1 + $0x5a4] sm:$0x3] %vm3592, %v2451
  %4316 = vst.msk [vmem:[%s1 + $0x5a6] sm:$0x3] %vm3592, %v2455
  %4317 = vst.msk [vmem:[%s1 + $0x5a8] sm:$0x3] %vm3592, %v2459
  %4318 = vst.msk [vmem:[%s1 + $0x5aa] sm:$0x3] %vm3592, %v2463
  %4319 = vst.msk [vmem:[%s1 + $0x5ac] sm:$0x3] %vm3592, %v2467
  %4320 = vst.msk [vmem:[%s1 + $0x5ae] sm:$0x3] %vm3592, %v2471
  %4321 = vst.msk [vmem:[%s1 + $0x5b0] sm:$0x3] %vm3592, %v2475
  %4322 = vst.msk [vmem:[%s1 + $0x5b2] sm:$0x3] %vm3592, %v2479
  %4323 = vst.msk [vmem:[%s1 + $0x5b4] sm:$0x3] %vm3592, %v2483
  %4324 = vst.msk [vmem:[%s1 + $0x5b6] sm:$0x3] %vm3592, %v2487
  %4325 = vst.msk [vmem:[%s1 + $0x5b8] sm:$0x3] %vm3592, %v2491
  %4326 = vst.msk [vmem:[%s1 + $0x5ba] sm:$0x3] %vm3592, %v2495
  %4327 = vst.msk [vmem:[%s1 + $0x5bc] sm:$0x3] %vm3592, %v2499
  %4328 = vst.msk [vmem:[%s1 + $0x5be] sm:$0x3] %vm3592, %v2503
  %4329 = vst.msk [vmem:[%s1 + $0x5c0] sm:$0x3] %vm3592, %v2507
  %4330 = vst.msk [vmem:[%s1 + $0x5c2] sm:$0x3] %vm3592, %v2511
  %4331 = vst.msk [vmem:[%s1 + $0x5c4] sm:$0x3] %vm3592, %v2515
  %4332 = vst.msk [vmem:[%s1 + $0x5c6] sm:$0x3] %vm3592, %v2519
  %4333 = vst.msk [vmem:[%s1 + $0x5c8] sm:$0x3] %vm3592, %v2523
  %4334 = vst.msk [vmem:[%s1 + $0x5ca] sm:$0x3] %vm3592, %v2527
  %4335 = vst.msk [vmem:[%s1 + $0x5cc] sm:$0x3] %vm3592, %v2531
  %4336 = vst.msk [vmem:[%s1 + $0x5ce] sm:$0x3] %vm3592, %v2535
  %4337 = vst.msk [vmem:[%s1 + $0x5d0] sm:$0x3] %vm3592, %v2539
  %4338 = vst.msk [vmem:[%s1 + $0x5d2] sm:$0x3] %vm3592, %v2543
  %4339 = vst.msk [vmem:[%s1 + $0x5d4] sm:$0x3] %vm3592, %v2547
  %4340 = vst.msk [vmem:[%s1 + $0x5d6] sm:$0x3] %vm3592, %v2551
  %4341 = vst.msk [vmem:[%s1 + $0x5d8] sm:$0x3] %vm3592, %v2555
  %4342 = vst.msk [vmem:[%s1 + $0x5da] sm:$0x3] %vm3592, %v2559
  %4343 = vst.msk [vmem:[%s1 + $0x5dc] sm:$0x3] %vm3592, %v2563
  %4344 = vst.msk [vmem:[%s1 + $0x5de] sm:$0x3] %vm3592, %v2567
  %4345 = vst.msk [vmem:[%s1 + $0x5e0] sm:$0x3] %vm3592, %v2507
  %4346 = vst.msk [vmem:[%s1 + $0x5e2] sm:$0x3] %vm3592, %v2511
  %4347 = vst.msk [vmem:[%s1 + $0x5e4] sm:$0x3] %vm3592, %v2515
  %4348 = vst.msk [vmem:[%s1 + $0x5e6] sm:$0x3] %vm3592, %v2519
  %4349 = vst.msk [vmem:[%s1 + $0x5e8] sm:$0x3] %vm3592, %v2523
  %4350 = vst.msk [vmem:[%s1 + $0x5ea] sm:$0x3] %vm3592, %v2527
  %4351 = vst.msk [vmem:[%s1 + $0x5ec] sm:$0x3] %vm3592, %v2531
  %4352 = vst.msk [vmem:[%s1 + $0x5ee] sm:$0x3] %vm3592, %v2535
  %4353 = vst.msk [vmem:[%s1 + $0x5f0] sm:$0x3] %vm3592, %v2539
  %4354 = vst.msk [vmem:[%s1 + $0x5f2] sm:$0x3] %vm3592, %v2543
  %4355 = vst.msk [vmem:[%s1 + $0x5f4] sm:$0x3] %vm3592, %v2547
  %4356 = vst.msk [vmem:[%s1 + $0x5f6] sm:$0x3] %vm3592, %v2551
  %4357 = vst.msk [vmem:[%s1 + $0x5f8] sm:$0x3] %vm3592, %v2555
  %4358 = vst.msk [vmem:[%s1 + $0x5fa] sm:$0x3] %vm3592, %v2559
  %4359 = vst.msk [vmem:[%s1 + $0x5fc] sm:$0x3] %vm3592, %v2563
  %4360 = vst.msk [vmem:[%s1 + $0x5fe] sm:$0x3] %vm3592, %v2567
  %4361 = vst.msk [vmem:[%s1 + $0x600] sm:$0x3] %vm3592, %v2571
  %4362 = vst.msk [vmem:[%s1 + $0x602] sm:$0x3] %vm3592, %v2575
  %4363 = vst.msk [vmem:[%s1 + $0x604] sm:$0x3] %vm3592, %v2579
  %4364 = vst.msk [vmem:[%s1 + $0x606] sm:$0x3] %vm3592, %v2583
  %4365 = vst.msk [vmem:[%s1 + $0x608] sm:$0x3] %vm3592, %v2587
  %4366 = vst.msk [vmem:[%s1 + $0x60a] sm:$0x3] %vm3592, %v2591
  %4367 = vst.msk [vmem:[%s1 + $0x60c] sm:$0x3] %vm3592, %v2595
  %4368 = vst.msk [vmem:[%s1 + $0x60e] sm:$0x3] %vm3592, %v2599
  %4369 = vst.msk [vmem:[%s1 + $0x610] sm:$0x3] %vm3592, %v2603
  %4370 = vst.msk [vmem:[%s1 + $0x612] sm:$0x3] %vm3592, %v2607
  %4371 = vst.msk [vmem:[%s1 + $0x614] sm:$0x3] %vm3592, %v2611
  %4372 = vst.msk [vmem:[%s1 + $0x616] sm:$0x3] %vm3592, %v2615
  %4373 = vst.msk [vmem:[%s1 + $0x618] sm:$0x3] %vm3592, %v2619
  %4374 = vst.msk [vmem:[%s1 + $0x61a] sm:$0x3] %vm3592, %v2623
  %4375 = vst.msk [vmem:[%s1 + $0x61c] sm:$0x3] %vm3592, %v2627
  %4376 = vst.msk [vmem:[%s1 + $0x61e] sm:$0x3] %vm3592, %v2631
  %4377 = vst.msk [vmem:[%s1 + $0x620] sm:$0x3] %vm3592, %v2571
  %4378 = vst.msk [vmem:[%s1 + $0x622] sm:$0x3] %vm3592, %v2575
  %4379 = vst.msk [vmem:[%s1 + $0x624] sm:$0x3] %vm3592, %v2579
  %4380 = vst.msk [vmem:[%s1 + $0x626] sm:$0x3] %vm3592, %v2583
  %4381 = vst.msk [vmem:[%s1 + $0x628] sm:$0x3] %vm3592, %v2587
  %4382 = vst.msk [vmem:[%s1 + $0x62a] sm:$0x3] %vm3592, %v2591
  %4383 = vst.msk [vmem:[%s1 + $0x62c] sm:$0x3] %vm3592, %v2595
  %4384 = vst.msk [vmem:[%s1 + $0x62e] sm:$0x3] %vm3592, %v2599
  %4385 = vst.msk [vmem:[%s1 + $0x630] sm:$0x3] %vm3592, %v2603
  %4386 = vst.msk [vmem:[%s1 + $0x632] sm:$0x3] %vm3592, %v2607
  %4387 = vst.msk [vmem:[%s1 + $0x634] sm:$0x3] %vm3592, %v2611
  %4388 = vst.msk [vmem:[%s1 + $0x636] sm:$0x3] %vm3592, %v2615
  %4389 = vst.msk [vmem:[%s1 + $0x638] sm:$0x3] %vm3592, %v2619
  %4390 = vst.msk [vmem:[%s1 + $0x63a] sm:$0x3] %vm3592, %v2623
  %4391 = vst.msk [vmem:[%s1 + $0x63c] sm:$0x3] %vm3592, %v2627
  %4392 = vst.msk [vmem:[%s1 + $0x63e] sm:$0x3] %vm3592, %v2631
  %4393 = vst.msk [vmem:[%s1 + $0x640] sm:$0x3] %vm3592, %v2635
  %4394 = vst.msk [vmem:[%s1 + $0x642] sm:$0x3] %vm3592, %v2639
  %4395 = vst.msk [vmem:[%s1 + $0x644] sm:$0x3] %vm3592, %v2643
  %4396 = vst.msk [vmem:[%s1 + $0x646] sm:$0x3] %vm3592, %v2647
  %4397 = vst.msk [vmem:[%s1 + $0x648] sm:$0x3] %vm3592, %v2651
  %4398 = vst.msk [vmem:[%s1 + $0x64a] sm:$0x3] %vm3592, %v2655
  %4399 = vst.msk [vmem:[%s1 + $0x64c] sm:$0x3] %vm3592, %v2659
  %4400 = vst.msk [vmem:[%s1 + $0x64e] sm:$0x3] %vm3592, %v2663
  %4401 = vst.msk [vmem:[%s1 + $0x650] sm:$0x3] %vm3592, %v2667
  %4402 = vst.msk [vmem:[%s1 + $0x652] sm:$0x3] %vm3592, %v2671
  %4403 = vst.msk [vmem:[%s1 + $0x654] sm:$0x3] %vm3592, %v2675
  %4404 = vst.msk [vmem:[%s1 + $0x656] sm:$0x3] %vm3592, %v2679
  %4405 = vst.msk [vmem:[%s1 + $0x658] sm:$0x3] %vm3592, %v2683
  %4406 = vst.msk [vmem:[%s1 + $0x65a] sm:$0x3] %vm3592, %v2687
  %4407 = vst.msk [vmem:[%s1 + $0x65c] sm:$0x3] %vm3592, %v2691
  %4408 = vst.msk [vmem:[%s1 + $0x65e] sm:$0x3] %vm3592, %v2695
  %4409 = vst.msk [vmem:[%s1 + $0x660] sm:$0x3] %vm3592, %v2635
  %4410 = vst.msk [vmem:[%s1 + $0x662] sm:$0x3] %vm3592, %v2639
  %4411 = vst.msk [vmem:[%s1 + $0x664] sm:$0x3] %vm3592, %v2643
  %4412 = vst.msk [vmem:[%s1 + $0x666] sm:$0x3] %vm3592, %v2647
  %4413 = vst.msk [vmem:[%s1 + $0x668] sm:$0x3] %vm3592, %v2651
  %4414 = vst.msk [vmem:[%s1 + $0x66a] sm:$0x3] %vm3592, %v2655
  %4415 = vst.msk [vmem:[%s1 + $0x66c] sm:$0x3] %vm3592, %v2659
  %4416 = vst.msk [vmem:[%s1 + $0x66e] sm:$0x3] %vm3592, %v2663
  %4417 = vst.msk [vmem:[%s1 + $0x670] sm:$0x3] %vm3592, %v2667
  %4418 = vst.msk [vmem:[%s1 + $0x672] sm:$0x3] %vm3592, %v2671
  %4419 = vst.msk [vmem:[%s1 + $0x674] sm:$0x3] %vm3592, %v2675
  %4420 = vst.msk [vmem:[%s1 + $0x676] sm:$0x3] %vm3592, %v2679
  %4421 = vst.msk [vmem:[%s1 + $0x678] sm:$0x3] %vm3592, %v2683
  %4422 = vst.msk [vmem:[%s1 + $0x67a] sm:$0x3] %vm3592, %v2687
  %4423 = vst.msk [vmem:[%s1 + $0x67c] sm:$0x3] %vm3592, %v2691
  %4424 = vst.msk [vmem:[%s1 + $0x67e] sm:$0x3] %vm3592, %v2695
  %4425 = vst.msk [vmem:[%s1 + $0x680] sm:$0x3] %vm3592, %v2699
  %4426 = vst.msk [vmem:[%s1 + $0x682] sm:$0x3] %vm3592, %v2703
  %4427 = vst.msk [vmem:[%s1 + $0x684] sm:$0x3] %vm3592, %v2707
  %4428 = vst.msk [vmem:[%s1 + $0x686] sm:$0x3] %vm3592, %v2711
  %4429 = vst.msk [vmem:[%s1 + $0x688] sm:$0x3] %vm3592, %v2715
  %4430 = vst.msk [vmem:[%s1 + $0x68a] sm:$0x3] %vm3592, %v2719
  %4431 = vst.msk [vmem:[%s1 + $0x68c] sm:$0x3] %vm3592, %v2723
  %4432 = vst.msk [vmem:[%s1 + $0x68e] sm:$0x3] %vm3592, %v2727
  %4433 = vst.msk [vmem:[%s1 + $0x690] sm:$0x3] %vm3592, %v2731
  %4434 = vst.msk [vmem:[%s1 + $0x692] sm:$0x3] %vm3592, %v2735
  %4435 = vst.msk [vmem:[%s1 + $0x694] sm:$0x3] %vm3592, %v2739
  %4436 = vst.msk [vmem:[%s1 + $0x696] sm:$0x3] %vm3592, %v2743
  %4437 = vst.msk [vmem:[%s1 + $0x698] sm:$0x3] %vm3592, %v2747
  %4438 = vst.msk [vmem:[%s1 + $0x69a] sm:$0x3] %vm3592, %v2751
  %4439 = vst.msk [vmem:[%s1 + $0x69c] sm:$0x3] %vm3592, %v2755
  %4440 = vst.msk [vmem:[%s1 + $0x69e] sm:$0x3] %vm3592, %v2759
  %4441 = vst.msk [vmem:[%s1 + $0x6a0] sm:$0x3] %vm3592, %v2699
  %4442 = vst.msk [vmem:[%s1 + $0x6a2] sm:$0x3] %vm3592, %v2703
  %4443 = vst.msk [vmem:[%s1 + $0x6a4] sm:$0x3] %vm3592, %v2707
  %4444 = vst.msk [vmem:[%s1 + $0x6a6] sm:$0x3] %vm3592, %v2711
  %4445 = vst.msk [vmem:[%s1 + $0x6a8] sm:$0x3] %vm3592, %v2715
  %4446 = vst.msk [vmem:[%s1 + $0x6aa] sm:$0x3] %vm3592, %v2719
  %4447 = vst.msk [vmem:[%s1 + $0x6ac] sm:$0x3] %vm3592, %v2723
  %4448 = vst.msk [vmem:[%s1 + $0x6ae] sm:$0x3] %vm3592, %v2727
  %4449 = vst.msk [vmem:[%s1 + $0x6b0] sm:$0x3] %vm3592, %v2731
  %4450 = vst.msk [vmem:[%s1 + $0x6b2] sm:$0x3] %vm3592, %v2735
  %4451 = vst.msk [vmem:[%s1 + $0x6b4] sm:$0x3] %vm3592, %v2739
  %4452 = vst.msk [vmem:[%s1 + $0x6b6] sm:$0x3] %vm3592, %v2743
  %4453 = vst.msk [vmem:[%s1 + $0x6b8] sm:$0x3] %vm3592, %v2747
  %4454 = vst.msk [vmem:[%s1 + $0x6ba] sm:$0x3] %vm3592, %v2751
  %4455 = vst.msk [vmem:[%s1 + $0x6bc] sm:$0x3] %vm3592, %v2755
  %4456 = vst.msk [vmem:[%s1 + $0x6be] sm:$0x3] %vm3592, %v2759
  %4457 = vst.msk [vmem:[%s1 + $0x6c0] sm:$0x3] %vm3592, %v2763
  %4458 = vst.msk [vmem:[%s1 + $0x6c2] sm:$0x3] %vm3592, %v2767
  %4459 = vst.msk [vmem:[%s1 + $0x6c4] sm:$0x3] %vm3592, %v2771
  %4460 = vst.msk [vmem:[%s1 + $0x6c6] sm:$0x3] %vm3592, %v2775
  %4461 = vst.msk [vmem:[%s1 + $0x6c8] sm:$0x3] %vm3592, %v2779
  %4462 = vst.msk [vmem:[%s1 + $0x6ca] sm:$0x3] %vm3592, %v2783
  %4463 = vst.msk [vmem:[%s1 + $0x6cc] sm:$0x3] %vm3592, %v2787
  %4464 = vst.msk [vmem:[%s1 + $0x6ce] sm:$0x3] %vm3592, %v2791
  %4465 = vst.msk [vmem:[%s1 + $0x6d0] sm:$0x3] %vm3592, %v2795
  %4466 = vst.msk [vmem:[%s1 + $0x6d2] sm:$0x3] %vm3592, %v2799
  %4467 = vst.msk [vmem:[%s1 + $0x6d4] sm:$0x3] %vm3592, %v2803
  %4468 = vst.msk [vmem:[%s1 + $0x6d6] sm:$0x3] %vm3592, %v2807
  %4469 = vst.msk [vmem:[%s1 + $0x6d8] sm:$0x3] %vm3592, %v2811
  %4470 = vst.msk [vmem:[%s1 + $0x6da] sm:$0x3] %vm3592, %v2815
  %4471 = vst.msk [vmem:[%s1 + $0x6dc] sm:$0x3] %vm3592, %v2819
  %4472 = vst.msk [vmem:[%s1 + $0x6de] sm:$0x3] %vm3592, %v2823
  %4473 = vst.msk [vmem:[%s1 + $0x6e0] sm:$0x3] %vm3592, %v2763
  %4474 = vst.msk [vmem:[%s1 + $0x6e2] sm:$0x3] %vm3592, %v2767
  %4475 = vst.msk [vmem:[%s1 + $0x6e4] sm:$0x3] %vm3592, %v2771
  %4476 = vst.msk [vmem:[%s1 + $0x6e6] sm:$0x3] %vm3592, %v2775
  %4477 = vst.msk [vmem:[%s1 + $0x6e8] sm:$0x3] %vm3592, %v2779
  %4478 = vst.msk [vmem:[%s1 + $0x6ea] sm:$0x3] %vm3592, %v2783
  %4479 = vst.msk [vmem:[%s1 + $0x6ec] sm:$0x3] %vm3592, %v2787
  %4480 = vst.msk [vmem:[%s1 + $0x6ee] sm:$0x3] %vm3592, %v2791
  %4481 = vst.msk [vmem:[%s1 + $0x6f0] sm:$0x3] %vm3592, %v2795
  %4482 = vst.msk [vmem:[%s1 + $0x6f2] sm:$0x3] %vm3592, %v2799
  %4483 = vst.msk [vmem:[%s1 + $0x6f4] sm:$0x3] %vm3592, %v2803
  %4484 = vst.msk [vmem:[%s1 + $0x6f6] sm:$0x3] %vm3592, %v2807
  %4485 = vst.msk [vmem:[%s1 + $0x6f8] sm:$0x3] %vm3592, %v2811
  %4486 = vst.msk [vmem:[%s1 + $0x6fa] sm:$0x3] %vm3592, %v2815
  %4487 = vst.msk [vmem:[%s1 + $0x6fc] sm:$0x3] %vm3592, %v2819
  %4488 = vst.msk [vmem:[%s1 + $0x6fe] sm:$0x3] %vm3592, %v2823
  %4489 = vst.msk [vmem:[%s1 + $0x700] sm:$0x3] %vm3592, %v2827
  %4490 = vst.msk [vmem:[%s1 + $0x702] sm:$0x3] %vm3592, %v2831
  %4491 = vst.msk [vmem:[%s1 + $0x704] sm:$0x3] %vm3592, %v2835
  %4492 = vst.msk [vmem:[%s1 + $0x706] sm:$0x3] %vm3592, %v2839
  %4493 = vst.msk [vmem:[%s1 + $0x708] sm:$0x3] %vm3592, %v2843
  %4494 = vst.msk [vmem:[%s1 + $0x70a] sm:$0x3] %vm3592, %v2847
  %4495 = vst.msk [vmem:[%s1 + $0x70c] sm:$0x3] %vm3592, %v2851
  %4496 = vst.msk [vmem:[%s1 + $0x70e] sm:$0x3] %vm3592, %v2855
  %4497 = vst.msk [vmem:[%s1 + $0x710] sm:$0x3] %vm3592, %v2859
  %4498 = vst.msk [vmem:[%s1 + $0x712] sm:$0x3] %vm3592, %v2863
  %4499 = vst.msk [vmem:[%s1 + $0x714] sm:$0x3] %vm3592, %v2867
  %4500 = vst.msk [vmem:[%s1 + $0x716] sm:$0x3] %vm3592, %v2871
  %4501 = vst.msk [vmem:[%s1 + $0x718] sm:$0x3] %vm3592, %v2875
  %4502 = vst.msk [vmem:[%s1 + $0x71a] sm:$0x3] %vm3592, %v2879
  %4503 = vst.msk [vmem:[%s1 + $0x71c] sm:$0x3] %vm3592, %v2883
  %4504 = vst.msk [vmem:[%s1 + $0x71e] sm:$0x3] %vm3592, %v2887
  %4505 = vst.msk [vmem:[%s1 + $0x720] sm:$0x3] %vm3592, %v2827
  %4506 = vst.msk [vmem:[%s1 + $0x722] sm:$0x3] %vm3592, %v2831
  %4507 = vst.msk [vmem:[%s1 + $0x724] sm:$0x3] %vm3592, %v2835
  %4508 = vst.msk [vmem:[%s1 + $0x726] sm:$0x3] %vm3592, %v2839
  %4509 = vst.msk [vmem:[%s1 + $0x728] sm:$0x3] %vm3592, %v2843
  %4510 = vst.msk [vmem:[%s1 + $0x72a] sm:$0x3] %vm3592, %v2847
  %4511 = vst.msk [vmem:[%s1 + $0x72c] sm:$0x3] %vm3592, %v2851
  %4512 = vst.msk [vmem:[%s1 + $0x72e] sm:$0x3] %vm3592, %v2855
  %4513 = vst.msk [vmem:[%s1 + $0x730] sm:$0x3] %vm3592, %v2859
  %4514 = vst.msk [vmem:[%s1 + $0x732] sm:$0x3] %vm3592, %v2863
  %4515 = vst.msk [vmem:[%s1 + $0x734] sm:$0x3] %vm3592, %v2867
  %4516 = vst.msk [vmem:[%s1 + $0x736] sm:$0x3] %vm3592, %v2871
  %4517 = vst.msk [vmem:[%s1 + $0x738] sm:$0x3] %vm3592, %v2875
  %4518 = vst.msk [vmem:[%s1 + $0x73a] sm:$0x3] %vm3592, %v2879
  %4519 = vst.msk [vmem:[%s1 + $0x73c] sm:$0x3] %vm3592, %v2883
  %4520 = vst.msk [vmem:[%s1 + $0x73e] sm:$0x3] %vm3592, %v2887
  %4521 = vst.msk [vmem:[%s1 + $0x740] sm:$0x3] %vm3592, %v2891
  %4522 = vst.msk [vmem:[%s1 + $0x742] sm:$0x3] %vm3592, %v2895
  %4523 = vst.msk [vmem:[%s1 + $0x744] sm:$0x3] %vm3592, %v2899
  %4524 = vst.msk [vmem:[%s1 + $0x746] sm:$0x3] %vm3592, %v2903
  %4525 = vst.msk [vmem:[%s1 + $0x748] sm:$0x3] %vm3592, %v2907
  %4526 = vst.msk [vmem:[%s1 + $0x74a] sm:$0x3] %vm3592, %v2911
  %4527 = vst.msk [vmem:[%s1 + $0x74c] sm:$0x3] %vm3592, %v2915
  %4528 = vst.msk [vmem:[%s1 + $0x74e] sm:$0x3] %vm3592, %v2919
  %4529 = vst.msk [vmem:[%s1 + $0x750] sm:$0x3] %vm3592, %v2923
  %4530 = vst.msk [vmem:[%s1 + $0x752] sm:$0x3] %vm3592, %v2927
  %4531 = vst.msk [vmem:[%s1 + $0x754] sm:$0x3] %vm3592, %v2931
  %4532 = vst.msk [vmem:[%s1 + $0x756] sm:$0x3] %vm3592, %v2935
  %4533 = vst.msk [vmem:[%s1 + $0x758] sm:$0x3] %vm3592, %v2939
  %4534 = vst.msk [vmem:[%s1 + $0x75a] sm:$0x3] %vm3592, %v2943
  %4535 = vst.msk [vmem:[%s1 + $0x75c] sm:$0x3] %vm3592, %v2947
  %4536 = vst.msk [vmem:[%s1 + $0x75e] sm:$0x3] %vm3592, %v2951
  %4537 = vst.msk [vmem:[%s1 + $0x760] sm:$0x3] %vm3592, %v2891
  %4538 = vst.msk [vmem:[%s1 + $0x762] sm:$0x3] %vm3592, %v2895
  %4539 = vst.msk [vmem:[%s1 + $0x764] sm:$0x3] %vm3592, %v2899
  %4540 = vst.msk [vmem:[%s1 + $0x766] sm:$0x3] %vm3592, %v2903
  %4541 = vst.msk [vmem:[%s1 + $0x768] sm:$0x3] %vm3592, %v2907
  %4542 = vst.msk [vmem:[%s1 + $0x76a] sm:$0x3] %vm3592, %v2911
  %4543 = vst.msk [vmem:[%s1 + $0x76c] sm:$0x3] %vm3592, %v2915
  %4544 = vst.msk [vmem:[%s1 + $0x76e] sm:$0x3] %vm3592, %v2919
  %4545 = vst.msk [vmem:[%s1 + $0x770] sm:$0x3] %vm3592, %v2923
  %4546 = vst.msk [vmem:[%s1 + $0x772] sm:$0x3] %vm3592, %v2927
  %4547 = vst.msk [vmem:[%s1 + $0x774] sm:$0x3] %vm3592, %v2931
  %4548 = vst.msk [vmem:[%s1 + $0x776] sm:$0x3] %vm3592, %v2935
  %4549 = vst.msk [vmem:[%s1 + $0x778] sm:$0x3] %vm3592, %v2939
  %4550 = vst.msk [vmem:[%s1 + $0x77a] sm:$0x3] %vm3592, %v2943
  %4551 = vst.msk [vmem:[%s1 + $0x77c] sm:$0x3] %vm3592, %v2947
  %4552 = vst.msk [vmem:[%s1 + $0x77e] sm:$0x3] %vm3592, %v2951
  %4553 = vst.msk [vmem:[%s1 + $0x780] sm:$0x3] %vm3592, %v2955
  %4554 = vst.msk [vmem:[%s1 + $0x782] sm:$0x3] %vm3592, %v2959
  %4555 = vst.msk [vmem:[%s1 + $0x784] sm:$0x3] %vm3592, %v2963
  %4556 = vst.msk [vmem:[%s1 + $0x786] sm:$0x3] %vm3592, %v2967
  %4557 = vst.msk [vmem:[%s1 + $0x788] sm:$0x3] %vm3592, %v2971
  %4558 = vst.msk [vmem:[%s1 + $0x78a] sm:$0x3] %vm3592, %v2975
  %4559 = vst.msk [vmem:[%s1 + $0x78c] sm:$0x3] %vm3592, %v2979
  %4560 = vst.msk [vmem:[%s1 + $0x78e] sm:$0x3] %vm3592, %v2983
  %4561 = vst.msk [vmem:[%s1 + $0x790] sm:$0x3] %vm3592, %v2987
  %4562 = vst.msk [vmem:[%s1 + $0x792] sm:$0x3] %vm3592, %v2991
  %4563 = vst.msk [vmem:[%s1 + $0x794] sm:$0x3] %vm3592, %v2995
  %4564 = vst.msk [vmem:[%s1 + $0x796] sm:$0x3] %vm3592, %v2999
  %4565 = vst.msk [vmem:[%s1 + $0x798] sm:$0x3] %vm3592, %v3003
  %4566 = vst.msk [vmem:[%s1 + $0x79a] sm:$0x3] %vm3592, %v3007
  %4567 = vst.msk [vmem:[%s1 + $0x79c] sm:$0x3] %vm3592, %v3011
  %4568 = vst.msk [vmem:[%s1 + $0x79e] sm:$0x3] %vm3592, %v3015
  %4569 = vst.msk [vmem:[%s1 + $0x7a0] sm:$0x3] %vm3592, %v2955
  %4570 = vst.msk [vmem:[%s1 + $0x7a2] sm:$0x3] %vm3592, %v2959
  %4571 = vst.msk [vmem:[%s1 + $0x7a4] sm:$0x3] %vm3592, %v2963
  %4572 = vst.msk [vmem:[%s1 + $0x7a6] sm:$0x3] %vm3592, %v2967
  %4573 = vst.msk [vmem:[%s1 + $0x7a8] sm:$0x3] %vm3592, %v2971
  %4574 = vst.msk [vmem:[%s1 + $0x7aa] sm:$0x3] %vm3592, %v2975
  %4575 = vst.msk [vmem:[%s1 + $0x7ac] sm:$0x3] %vm3592, %v2979
  %4576 = vst.msk [vmem:[%s1 + $0x7ae] sm:$0x3] %vm3592, %v2983
  %4577 = vst.msk [vmem:[%s1 + $0x7b0] sm:$0x3] %vm3592, %v2987
  %4578 = vst.msk [vmem:[%s1 + $0x7b2] sm:$0x3] %vm3592, %v2991
  %4579 = vst.msk [vmem:[%s1 + $0x7b4] sm:$0x3] %vm3592, %v2995
  %4580 = vst.msk [vmem:[%s1 + $0x7b6] sm:$0x3] %vm3592, %v2999
  %4581 = vst.msk [vmem:[%s1 + $0x7b8] sm:$0x3] %vm3592, %v3003
  %4582 = vst.msk [vmem:[%s1 + $0x7ba] sm:$0x3] %vm3592, %v3007
  %4583 = vst.msk [vmem:[%s1 + $0x7bc] sm:$0x3] %vm3592, %v3011
  %4584 = vst.msk [vmem:[%s1 + $0x7be] sm:$0x3] %vm3592, %v3015
  %4585 = vst.msk [vmem:[%s1 + $0x7c0] sm:$0x3] %vm3592, %v3019
  %4586 = vst.msk [vmem:[%s1 + $0x7c2] sm:$0x3] %vm3592, %v3023
  %4587 = vst.msk [vmem:[%s1 + $0x7c4] sm:$0x3] %vm3592, %v3027
  %4588 = vst.msk [vmem:[%s1 + $0x7c6] sm:$0x3] %vm3592, %v3031
  %4589 = vst.msk [vmem:[%s1 + $0x7c8] sm:$0x3] %vm3592, %v3035
  %4590 = vst.msk [vmem:[%s1 + $0x7ca] sm:$0x3] %vm3592, %v3039
  %4591 = vst.msk [vmem:[%s1 + $0x7cc] sm:$0x3] %vm3592, %v3043
  %4592 = vst.msk [vmem:[%s1 + $0x7ce] sm:$0x3] %vm3592, %v3047
  %4593 = vst.msk [vmem:[%s1 + $0x7d0] sm:$0x3] %vm3592, %v3051
  %4594 = vst.msk [vmem:[%s1 + $0x7d2] sm:$0x3] %vm3592, %v3055
  %4595 = vst.msk [vmem:[%s1 + $0x7d4] sm:$0x3] %vm3592, %v3059
  %4596 = vst.msk [vmem:[%s1 + $0x7d6] sm:$0x3] %vm3592, %v3063
  %4597 = vst.msk [vmem:[%s1 + $0x7d8] sm:$0x3] %vm3592, %v3067
  %4598 = vst.msk [vmem:[%s1 + $0x7da] sm:$0x3] %vm3592, %v3071
  %4599 = vst.msk [vmem:[%s1 + $0x7dc] sm:$0x3] %vm3592, %v3075
  %4600 = vst.msk [vmem:[%s1 + $0x7de] sm:$0x3] %vm3592, %v3079
  %4601 = vst.msk [vmem:[%s1 + $0x7e0] sm:$0x3] %vm3592, %v3019
  %4602 = vst.msk [vmem:[%s1 + $0x7e2] sm:$0x3] %vm3592, %v3023
  %4603 = vst.msk [vmem:[%s1 + $0x7e4] sm:$0x3] %vm3592, %v3027
  %4604 = vst.msk [vmem:[%s1 + $0x7e6] sm:$0x3] %vm3592, %v3031
  %4605 = vst.msk [vmem:[%s1 + $0x7e8] sm:$0x3] %vm3592, %v3035
  %4606 = vst.msk [vmem:[%s1 + $0x7ea] sm:$0x3] %vm3592, %v3039
  %4607 = vst.msk [vmem:[%s1 + $0x7ec] sm:$0x3] %vm3592, %v3043
  %4608 = vst.msk [vmem:[%s1 + $0x7ee] sm:$0x3] %vm3592, %v3047
  %4609 = vst.msk [vmem:[%s1 + $0x7f0] sm:$0x3] %vm3592, %v3051
  %4610 = vst.msk [vmem:[%s1 + $0x7f2] sm:$0x3] %vm3592, %v3055
  %4611 = vst.msk [vmem:[%s1 + $0x7f4] sm:$0x3] %vm3592, %v3059
  %4612 = vst.msk [vmem:[%s1 + $0x7f6] sm:$0x3] %vm3592, %v3063
  %4613 = vst.msk [vmem:[%s1 + $0x7f8] sm:$0x3] %vm3592, %v3067
  %4614 = vst.msk [vmem:[%s1 + $0x7fa] sm:$0x3] %vm3592, %v3071
  %4615 = vst.msk [vmem:[%s1 + $0x7fc] sm:$0x3] %vm3592, %v3075
  %4616 = vst.msk [vmem:[%s1 + $0x7fe] sm:$0x3] %vm3592, %v3079
  // Predicated region
  $region6: #{tpu_custom_call.1} parent=0 // pred_check
    _
  $region7: #{tpu_custom_call.1} parent=0 // pred_check_branch
    %4618 = sbr.rel (0) target = $region9
  $region8: #{tpu_custom_call.1} parent=0 // pred_region
    _
  $region9: #{tpu_custom_call.1} parent=0 // pred_fallthru
    _
  // Predicated region
  $region10: #{tpu_custom_call.1} parent=0 // pred_check
    _
  $region11: #{tpu_custom_call.1} parent=0 // pred_check_branch
    %4620 = sbr.rel (0) target = $region13
  $region12: #{tpu_custom_call.1} parent=0 // pred_region
    _
  $region13: #{tpu_custom_call.1} parent=0 // pred_fallthru
    _

</llo_original>
